<compile_context>
chip_gen: v7x
topology: tpu7x:2x2x1
jax: 0.10.0
libtpu: 0.0.40
codegen_flags: <defaults>
</compile_context>

<pallas_src>
import functools

import jax
import jax.numpy as jnp
from jax.experimental import pallas as pl
from jax.experimental.pallas import tpu as pltpu

# ---- hyperparameters (globals in the reference module; chosen here) --------
LSTM_HIDDENS = 32          # lstm_hiddens
LSTM_LAYERS = 1            # lstm_layers (single BiLSTM layer)
DROPOUT = 0.0              # eval-mode dropout == identity

WORD_DIM, BOUND_DIM, FLAG_DIM, RADICAL_DIM, PINYIN_DIM = 100, 20, 50, 50, 50
D_IN = WORD_DIM + BOUND_DIM + FLAG_DIM + RADICAL_DIM + PINYIN_DIM  # 270

# synthetic vocab sizes (len(dict[...][0]) in the reference)
NUM_WORD, NUM_BOUND, NUM_FLAG, NUM_RADICAL, NUM_PINYIN = 50, 8, 10, 12, 15
NUM_LABEL = 5

HP = 128                   # per-gate lane group: [fwd H | bwd H | zero pad]
GP = 4 * HP                # 4 gates (i, f, g, o) -> 512 lanes
CP = 128                   # lane-padded projection output width
DP = 384                   # lane-padded input feature width (270 -> 3*128)
SUB = 8                    # f32 sublane tile -> batch padding target


# ---------------------------------------------------------------------------
# The fused Pallas kernel: 3 phases, single invocation, everything in VMEM.
# ---------------------------------------------------------------------------
def bilstm_proj_kernel(xx_ref, wih_ref, bih_ref, whh_ref, wl_ref, bl_ref,
                       out_ref, gx_scr, ha_scr, hb_scr, *, T, B):
    H = LSTM_HIDDENS

    # --- phase 0: all-timestep input projection, one bf16 MXU pass ----------
    # gx row-block t holds fwd gates(time t) in fwd lanes and bwd gates(time t)
    # in bwd lanes (single wih carries both directions; no flipped copy of x).
    gx_scr[...] = (jnp.dot(xx_ref[...], wih_ref[...],
                           preferred_element_type=jnp.float32)
                   + bih_ref[...])

    # direction lane mask: first H lanes of each 128-lane gate group are fwd
    fwd_gp = (jax.lax.broadcasted_iota(jnp.int32, (B, GP), 1) % HP) < H

    whh = whh_ref[...]                                  # (HP, GP), block-diag
    h = jnp.zeros((B, HP), jnp.float32)                 # [h_fwd | h_bwd | 0]
    c = jnp.zeros((B, HP), jnp.float32)

    # --- phase 1: fused fwd+bwd recurrence (fully unrolled, T static) -------
    # B is padded to 8, so every slice below is a full (8,128)-aligned tile.
    # TODO(synk): for long T, switch to lax.fori_loop(unroll=8) and hold whh
    # stationary in the MXU (matmul_push_rhs / matmul_acc_lhs / matmul_pop).
    for s in range(T):
        gx_f = gx_scr[pl.ds(s * B, B), :]               # fwd gates @ time s
        gx_b = gx_scr[pl.ds((T - 1 - s) * B, B), :]     # bwd gates @ time T-1-s
        gates = jnp.where(fwd_gp, gx_f, gx_b) + jnp.dot(
            h, whh, preferred_element_type=jnp.float32)      # (B, GP)
        # each gate occupies its own 128-lane group -> vreg-aligned slices
        i_g = jax.nn.sigmoid(gates[:, 0 * HP:1 * HP])
        f_g = jax.nn.sigmoid(gates[:, 1 * HP:2 * HP])
        g_g = jnp.tanh(gates[:, 2 * HP:3 * HP])
        o_g = jax.nn.sigmoid(gates[:, 3 * HP:4 * HP])
        c = f_g * c + i_g * g_g
        h = o_g * jnp.tanh(c)
        # ha: processing-step order (fwd lanes valid at row-block s)
        # hb: original-time order for the backward direction
        #     (bwd lanes valid at row-block T-1-s)
        ha_scr[pl.ds(s * B, B), :] = h
        hb_scr[pl.ds((T - 1 - s) * B, B), :] = h

    # --- phase 2: blend directions -> ONE tanh -> ONE matmul, lane-dense ----
    fwd_hp = jax.lax.broadcasted_iota(jnp.int32, (T * B, HP), 1) < H
    hc = jnp.where(fwd_hp, ha_scr[...], hb_scr[...])     # [fwd h(t) | bwd h(t)]
    out_ref[...] = (jnp.dot(jnp.tanh(hc).astype(jnp.bfloat16), wl_ref[...],
                            preferred_element_type=jnp.float32)
                    + bl_ref[...])


# ---------------------------------------------------------------------------
# Weight preparation: pack both directions + gate padding into MXU-friendly
# operands (plain JAX glue; constant-folded/hoisted under jit).
# ---------------------------------------------------------------------------
def build_combined(pf, pb, linear_w, linear_b):
    H, D, C = LSTM_HIDDENS, D_IN, NUM_LABEL
    wih_f_t = jnp.transpose(pf["w_ih"])     # (D, 4H), gate order i,f,g,o
    wih_b_t = jnp.transpose(pb["w_ih"])
    whh_f_t = jnp.transpose(pf["w_hh"])     # (H, 4H)
    whh_b_t = jnp.transpose(pb["w_hh"])
    bf = pf["b_ih"] + pf["b_hh"]            # (4H,)
    bb = pb["b_ih"] + pb["b_hh"]

    wih = jnp.zeros((DP, GP), jnp.float32)
    whh = jnp.zeros((HP, GP), jnp.float32)
    bias = jnp.zeros((1, GP), jnp.float32)
    for k in range(4):
        # both directions' input weights share the same rows (single x pass)
        wih = wih.at[0:D, k * HP:k * HP + H].set(wih_f_t[:, k * H:(k + 1) * H])
        wih = wih.at[0:D, k * HP + H:k * HP + 2 * H].set(
            wih_b_t[:, k * H:(k + 1) * H])
        # block-diagonal recurrent weights
        whh = whh.at[0:H, k * HP:k * HP + H].set(whh_f_t[:, k * H:(k + 1) * H])
        whh = whh.at[H:2 * H, k * HP + H:k * HP + 2 * H].set(
            whh_b_t[:, k * H:(k + 1) * H])
        bias = bias.at[0, k * HP:k * HP + H].set(bf[k * H:(k + 1) * H])
        bias = bias.at[0, k * HP + H:k * HP + 2 * H].set(bb[k * H:(k + 1) * H])

    # single combined output projection (disjoint non-zero rows -> exact sum)
    wl = (jnp.zeros((HP, CP), jnp.float32)
          .at[0:H, 0:C].set(jnp.transpose(linear_w[:, 0:H]))
          .at[H:2 * H, 0:C].set(jnp.transpose(linear_w[:, H:2 * H])))
    bl = jnp.zeros((1, CP), jnp.float32).at[0, 0:C].set(linear_b)
    return (wih.astype(jnp.bfloat16), bias, whh,
            wl.astype(jnp.bfloat16), bl)


# ---------------------------------------------------------------------------
# Parameter init (deterministic, mimics the nn.Module shapes)
# ---------------------------------------------------------------------------
def init_params(key):
    ks = list(jax.random.split(key, 20))

    def emb(k, n, d):
        lim = jnp.sqrt(3.0 / d)
        w = jax.random.uniform(k, (n, d), jnp.float32, -lim, lim)
        return w.at[0].set(0.0)           # padding_idx=0

    H = LSTM_HIDDENS
    lim = 1.0 / jnp.sqrt(H)

    def lstm_dir(k):
        k1, k2, k3, k4 = jax.random.split(k, 4)
        return dict(
            w_ih=jax.random.uniform(k1, (4 * H, D_IN), jnp.float32, -lim, lim),
            w_hh=jax.random.uniform(k2, (4 * H, H), jnp.float32, -lim, lim),
            b_ih=jax.random.uniform(k3, (4 * H,), jnp.float32, -lim, lim),
            b_hh=jax.random.uniform(k4, (4 * H,), jnp.float32, -lim, lim),
        )

    lin_lim = 1.0 / jnp.sqrt(2 * H)
    return dict(
        word_embed=emb(ks[0], NUM_WORD, WORD_DIM),
        bound_embed=emb(ks[1], NUM_BOUND, BOUND_DIM),
        flag_embed=emb(ks[2], NUM_FLAG, FLAG_DIM),
        radical_embed=emb(ks[3], NUM_RADICAL, RADICAL_DIM),
        pinyin_embed=emb(ks[4], NUM_PINYIN, PINYIN_DIM),
        lstm_fwd=lstm_dir(ks[5]),
        lstm_bwd=lstm_dir(ks[6]),
        linear_w=jax.random.uniform(ks[7], (NUM_LABEL, 2 * H), jnp.float32,
                                    -lin_lim, lin_lim),
        linear_b=jax.random.uniform(ks[8], (NUM_LABEL,), jnp.float32,
                                    -lin_lim, lin_lim),
    )


# ---------------------------------------------------------------------------
# Forward pass
# ---------------------------------------------------------------------------
def model_forward(params, word, bound, flag, radical, pinyin):
    # embedding gathers + concat (plain JAX glue)
    x = jnp.concatenate(
        [params["word_embed"][word],
         params["bound_embed"][bound],
         params["flag_embed"][flag],
         params["radical_embed"][radical],
         params["pinyin_embed"][pinyin]],
        axis=-1)                                     # (B, T, D_IN)
    # dropout: eval mode -> identity

    B, T, _ = x.shape
    B_pad = max(SUB, ((B + SUB - 1) // SUB) * SUB)   # sublane-aligned batch

    x_tbd = jnp.transpose(x, (1, 0, 2))              # (T, B, D) time-major
    x_tbd = jnp.pad(x_tbd, ((0, 0), (0, B_pad - B), (0, DP - D_IN)))
    xx = x_tbd.reshape(T * B_pad, DP).astype(jnp.bfloat16)

    wih, bih, whh, wl, bl = build_combined(
        params["lstm_fwd"], params["lstm_bwd"],
        params["linear_w"], params["linear_b"])

    # Single-program kernel: everything fits comfortably in VMEM at this size.
    # (For production batch sizes on v7x, add a "parallel" batch grid axis to
    #  use the second TensorCore and time-chunk the slabs against 64 MiB VMEM.)
    out = pl.pallas_call(
        functools.partial(bilstm_proj_kernel, T=T, B=B_pad),
        out_shape=jax.ShapeDtypeStruct((T * B_pad, CP), jnp.float32),
        scratch_shapes=[
            pltpu.VMEM((T * B_pad, GP), jnp.float32),    # gx: all-step gates
            pltpu.VMEM((T * B_pad, HP), jnp.float32),    # h, processing order
            pltpu.VMEM((T * B_pad, HP), jnp.float32),    # h, bwd time order
        ],
        compiler_params=pltpu.CompilerParams(vmem_limit_bytes=32 << 20),
    )(xx, wih, bih, whh, wl, bl)

    logits = out.reshape(T, B_pad, CP)[:, :B, :NUM_LABEL]  # strip padding
    return jnp.transpose(logits, (1, 0, 2))                # (B, T, C)


if __name__ == "__main__":
    key = jax.random.PRNGKey(0)
    pkey, ikey = jax.random.split(key)
    params = init_params(pkey)

    B, T = 2, 8
    ks = jax.random.split(ikey, 5)
    word = jax.random.randint(ks[0], (B, T), 0, NUM_WORD, dtype=jnp.int32)
    bound = jax.random.randint(ks[1], (B, T), 0, NUM_BOUND, dtype=jnp.int32)
    flag = jax.random.randint(ks[2], (B, T), 0, NUM_FLAG, dtype=jnp.int32)
    radical = jax.random.randint(ks[3], (B, T), 0, NUM_RADICAL, dtype=jnp.int32)
    pinyin = jax.random.randint(ks[4], (B, T), 0, NUM_PINYIN, dtype=jnp.int32)

    logits = jax.jit(model_forward)(params, word, bound, flag, radical, pinyin)
    jax.block_until_ready(logits)
    assert logits.shape == (B, T, NUM_LABEL), logits.shape
    assert jnp.all(jnp.isfinite(logits))
    print("KERNEL_OK")
</pallas_src>

<mosaic_0001>
module attributes {stable_mosaic.version = 11 : i64} {
  func.func @bilstm_proj_kernel(%arg0: memref<64x384xbf16, #tpu.memory_space<vmem>>, %arg1: memref<384x512xbf16, #tpu.memory_space<vmem>>, %arg2: memref<1x512xf32, #tpu.memory_space<vmem>>, %arg3: memref<128x512xf32, #tpu.memory_space<vmem>>, %arg4: memref<128x128xbf16, #tpu.memory_space<vmem>>, %arg5: memref<1x128xf32, #tpu.memory_space<vmem>>, %arg6: memref<64x128xf32, #tpu.memory_space<vmem>>, %arg7: memref<64x512xf32, #tpu.memory_space<vmem>>, %arg8: memref<64x128xf32, #tpu.memory_space<vmem>>, %arg9: memref<64x128xf32, #tpu.memory_space<vmem>>) attributes {dimension_semantics = [], scalar_prefetch = 0 : i64, scratch_operands = 3 : i64, tpu.core_type = #tpu.core_type<tc>} {
    %c0 = arith.constant 0 : index
    %c0_0 = arith.constant 0 : index
    %0 = vector.load %arg0[%c0, %c0_0] : memref<64x384xbf16, #tpu.memory_space<vmem>>, vector<64x384xbf16>
    %c0_1 = arith.constant 0 : index
    %c0_2 = arith.constant 0 : index
    %1 = vector.load %arg1[%c0_1, %c0_2] : memref<384x512xbf16, #tpu.memory_space<vmem>>, vector<384x512xbf16>
    %cst = arith.constant dense<0.000000e+00> : vector<64x512xf32>
    %2 = tpu.matmul %0, %1, %cst {dimension_numbers = #tpu.dot_dimension_numbers<[1], [0], [0], [1], [0, 0, 1, 1], [], []>} : vector<64x384xbf16>, vector<384x512xbf16>, vector<64x512xf32> -> vector<64x512xf32>
    %c0_3 = arith.constant 0 : index
    %c0_4 = arith.constant 0 : index
    %3 = vector.load %arg2[%c0_3, %c0_4] : memref<1x512xf32, #tpu.memory_space<vmem>>, vector<1x512xf32>
    %4 = vector.broadcast %3 : vector<1x512xf32> to vector<64x512xf32>
    %5 = arith.addf %2, %4 : vector<64x512xf32>
    %c0_5 = arith.constant 0 : index
    %c0_6 = arith.constant 0 : index
    %6 = vector.load %arg7[%c0_5, %c0_6] : memref<64x512xf32, #tpu.memory_space<vmem>>, vector<64x512xf32>
    tpu.vector_store %arg7[%c0_5, %c0_6], %5 {strides = array<i32>} : memref<64x512xf32, #tpu.memory_space<vmem>>, vector<64x512xf32>,
    %7 = tpu.iota {dimensions = array<i32: 1>} : vector<8x512xi32>
    %c128_i32 = arith.constant 128 : i32
    %c0_i32 = arith.constant 0 : i32
    %8 = arith.cmpi eq, %c128_i32, %c0_i32 : i32
    %c1_i32 = arith.constant 1 : i32
    %9 = arith.select %8, %c1_i32, %c128_i32 : i32
    %10 = vector.broadcast %9 : i32 to vector<8x512xi32>
    %11 = arith.remsi %7, %10 : vector<8x512xi32>
    %c0_i32_7 = arith.constant 0 : i32
    %12 = vector.broadcast %c0_i32_7 : i32 to vector<8x512xi32>
    %13 = arith.cmpi ne, %11, %12 : vector<8x512xi32>
    %c0_i32_8 = arith.constant 0 : i32
    %14 = vector.broadcast %c0_i32_8 : i32 to vector<8x512xi32>
    %15 = arith.cmpi slt, %11, %14 : vector<8x512xi32>
    %c0_i32_9 = arith.constant 0 : i32
    %16 = arith.cmpi slt, %9, %c0_i32_9 : i32
    %17 = vector.broadcast %16 : i1 to vector<8x512xi1>
    %18 = vector.broadcast %17 : vector<8x512xi1> to vector<8x512xi1>
    %19 = arith.xori %15, %18 : vector<8x512xi1>
    %20 = arith.andi %19, %13 : vector<8x512xi1>
    %21 = vector.broadcast %9 : i32 to vector<8x512xi32>
    %22 = arith.addi %11, %21 : vector<8x512xi32>
    %23 = arith.select %20, %22, %11 : vector<8x512xi1>, vector<8x512xi32>
    %c32_i32 = arith.constant 32 : i32
    %24 = vector.broadcast %c32_i32 : i32 to vector<8x512xi32>
    %25 = arith.cmpi slt, %23, %24 : vector<8x512xi32>
    %c0_10 = arith.constant 0 : index
    %c0_11 = arith.constant 0 : index
    %26 = vector.load %arg3[%c0_10, %c0_11] : memref<128x512xf32, #tpu.memory_space<vmem>>, vector<128x512xf32>
    %cst_12 = arith.constant 0.000000e+00 : f32
    %27 = vector.broadcast %cst_12 : f32 to vector<8x128xf32>
    %cst_13 = arith.constant 0.000000e+00 : f32
    %28 = vector.broadcast %cst_13 : f32 to vector<8x128xf32>
    %c0_14 = arith.constant 0 : index
    %c0_15 = arith.constant 0 : index
    %29 = vector.load %arg7[%c0_14, %c0_15] : memref<64x512xf32, #tpu.memory_space<vmem>>, vector<8x512xf32>
    %c56 = arith.constant 56 : index
    %c0_16 = arith.constant 0 : index
    %30 = vector.load %arg7[%c56, %c0_16] : memref<64x512xf32, #tpu.memory_space<vmem>>, vector<8x512xf32>
    %31 = arith.select %25, %29, %30 : vector<8x512xi1>, vector<8x512xf32>
    %cst_17 = arith.constant dense<0.000000e+00> : vector<8x512xf32>
    %32 = tpu.matmul %27, %26, %cst_17 {dimension_numbers = #tpu.dot_dimension_numbers<[1], [0], [0], [1], [0, 0, 1, 1], [], []>} : vector<8x128xf32>, vector<128x512xf32>, vector<8x512xf32> -> vector<8x512xf32>
    %33 = arith.addf %31, %32 : vector<8x512xf32>
    %34 = vector.extract_strided_slice %33 {offsets = [0, 0], sizes = [8, 128], strides = [1, 1]} : vector<8x512xf32> to vector<8x128xf32>
    %35 = arith.negf %34 : vector<8x128xf32>
    %36 = math.exp %35 : vector<8x128xf32>
    %cst_18 = arith.constant 1.000000e+00 : f32
    %37 = vector.broadcast %cst_18 : f32 to vector<8x128xf32>
    %38 = arith.addf %37, %36 : vector<8x128xf32>
    %39 = arith.divf %37, %38 : vector<8x128xf32>
    %40 = vector.extract_strided_slice %33 {offsets = [0, 128], sizes = [8, 128], strides = [1, 1]} : vector<8x512xf32> to vector<8x128xf32>
    %41 = arith.negf %40 : vector<8x128xf32>
    %42 = math.exp %41 : vector<8x128xf32>
    %cst_19 = arith.constant 1.000000e+00 : f32
    %43 = vector.broadcast %cst_19 : f32 to vector<8x128xf32>
    %44 = arith.addf %43, %42 : vector<8x128xf32>
    %45 = arith.divf %43, %44 : vector<8x128xf32>
    %46 = vector.extract_strided_slice %33 {offsets = [0, 256], sizes = [8, 128], strides = [1, 1]} : vector<8x512xf32> to vector<8x128xf32>
    %47 = math.tanh %46 : vector<8x128xf32>
    %48 = vector.extract_strided_slice %33 {offsets = [0, 384], sizes = [8, 128], strides = [1, 1]} : vector<8x512xf32> to vector<8x128xf32>
    %49 = arith.negf %48 : vector<8x128xf32>
    %50 = math.exp %49 : vector<8x128xf32>
    %cst_20 = arith.constant 1.000000e+00 : f32
    %51 = vector.broadcast %cst_20 : f32 to vector<8x128xf32>
    %52 = arith.addf %51, %50 : vector<8x128xf32>
    %53 = arith.divf %51, %52 : vector<8x128xf32>
    %54 = arith.mulf %45, %28 : vector<8x128xf32>
    %55 = arith.mulf %39, %47 : vector<8x128xf32>
    %56 = arith.addf %54, %55 : vector<8x128xf32>
    %57 = math.tanh %56 : vector<8x128xf32>
    %58 = arith.mulf %53, %57 : vector<8x128xf32>
    %c0_21 = arith.constant 0 : index
    %c0_22 = arith.constant 0 : index
    %59 = vector.load %arg8[%c0_21, %c0_22] : memref<64x128xf32, #tpu.memory_space<vmem>>, vector<8x128xf32>
    tpu.vector_store %arg8[%c0_21, %c0_22], %58 {strides = array<i32>} : memref<64x128xf32, #tpu.memory_space<vmem>>, vector<8x128xf32>,
    %c56_23 = arith.constant 56 : index
    %c0_24 = arith.constant 0 : index
    %60 = vector.load %arg9[%c56_23, %c0_24] : memref<64x128xf32, #tpu.memory_space<vmem>>, vector<8x128xf32>
    tpu.vector_store %arg9[%c56_23, %c0_24], %58 {strides = array<i32>} : memref<64x128xf32, #tpu.memory_space<vmem>>, vector<8x128xf32>,
    %c8 = arith.constant 8 : index
    %c0_25 = arith.constant 0 : index
    %61 = vector.load %arg7[%c8, %c0_25] : memref<64x512xf32, #tpu.memory_space<vmem>>, vector<8x512xf32>
    %c48 = arith.constant 48 : index
    %c0_26 = arith.constant 0 : index
    %62 = vector.load %arg7[%c48, %c0_26] : memref<64x512xf32, #tpu.memory_space<vmem>>, vector<8x512xf32>
    %63 = arith.select %25, %61, %62 : vector<8x512xi1>, vector<8x512xf32>
    %cst_27 = arith.constant dense<0.000000e+00> : vector<8x512xf32>
    %64 = tpu.matmul %58, %26, %cst_27 {dimension_numbers = #tpu.dot_dimension_numbers<[1], [0], [0], [1], [0, 0, 1, 1], [], []>} : vector<8x128xf32>, vector<128x512xf32>, vector<8x512xf32> -> vector<8x512xf32>
    %65 = arith.addf %63, %64 : vector<8x512xf32>
    %66 = vector.extract_strided_slice %65 {offsets = [0, 0], sizes = [8, 128], strides = [1, 1]} : vector<8x512xf32> to vector<8x128xf32>
    %67 = arith.negf %66 : vector<8x128xf32>
    %68 = math.exp %67 : vector<8x128xf32>
    %cst_28 = arith.constant 1.000000e+00 : f32
    %69 = vector.broadcast %cst_28 : f32 to vector<8x128xf32>
    %70 = arith.addf %69, %68 : vector<8x128xf32>
    %71 = arith.divf %69, %70 : vector<8x128xf32>
    %72 = vector.extract_strided_slice %65 {offsets = [0, 128], sizes = [8, 128], strides = [1, 1]} : vector<8x512xf32> to vector<8x128xf32>
    %73 = arith.negf %72 : vector<8x128xf32>
    %74 = math.exp %73 : vector<8x128xf32>
    %cst_29 = arith.constant 1.000000e+00 : f32
    %75 = vector.broadcast %cst_29 : f32 to vector<8x128xf32>
    %76 = arith.addf %75, %74 : vector<8x128xf32>
    %77 = arith.divf %75, %76 : vector<8x128xf32>
    %78 = vector.extract_strided_slice %65 {offsets = [0, 256], sizes = [8, 128], strides = [1, 1]} : vector<8x512xf32> to vector<8x128xf32>
    %79 = math.tanh %78 : vector<8x128xf32>
    %80 = vector.extract_strided_slice %65 {offsets = [0, 384], sizes = [8, 128], strides = [1, 1]} : vector<8x512xf32> to vector<8x128xf32>
    %81 = arith.negf %80 : vector<8x128xf32>
    %82 = math.exp %81 : vector<8x128xf32>
    %cst_30 = arith.constant 1.000000e+00 : f32
    %83 = vector.broadcast %cst_30 : f32 to vector<8x128xf32>
    %84 = arith.addf %83, %82 : vector<8x128xf32>
    %85 = arith.divf %83, %84 : vector<8x128xf32>
    %86 = arith.mulf %77, %56 : vector<8x128xf32>
    %87 = arith.mulf %71, %79 : vector<8x128xf32>
    %88 = arith.addf %86, %87 : vector<8x128xf32>
    %89 = math.tanh %88 : vector<8x128xf32>
    %90 = arith.mulf %85, %89 : vector<8x128xf32>
    %c8_31 = arith.constant 8 : index
    %c0_32 = arith.constant 0 : index
    %91 = vector.load %arg8[%c8_31, %c0_32] : memref<64x128xf32, #tpu.memory_space<vmem>>, vector<8x128xf32>
    tpu.vector_store %arg8[%c8_31, %c0_32], %90 {strides = array<i32>} : memref<64x128xf32, #tpu.memory_space<vmem>>, vector<8x128xf32>,
    %c48_33 = arith.constant 48 : index
    %c0_34 = arith.constant 0 : index
    %92 = vector.load %arg9[%c48_33, %c0_34] : memref<64x128xf32, #tpu.memory_space<vmem>>, vector<8x128xf32>
    tpu.vector_store %arg9[%c48_33, %c0_34], %90 {strides = array<i32>} : memref<64x128xf32, #tpu.memory_space<vmem>>, vector<8x128xf32>,
    %c16 = arith.constant 16 : index
    %c0_35 = arith.constant 0 : index
    %93 = vector.load %arg7[%c16, %c0_35] : memref<64x512xf32, #tpu.memory_space<vmem>>, vector<8x512xf32>
    %c40 = arith.constant 40 : index
    %c0_36 = arith.constant 0 : index
    %94 = vector.load %arg7[%c40, %c0_36] : memref<64x512xf32, #tpu.memory_space<vmem>>, vector<8x512xf32>
    %95 = arith.select %25, %93, %94 : vector<8x512xi1>, vector<8x512xf32>
    %cst_37 = arith.constant dense<0.000000e+00> : vector<8x512xf32>
    %96 = tpu.matmul %90, %26, %cst_37 {dimension_numbers = #tpu.dot_dimension_numbers<[1], [0], [0], [1], [0, 0, 1, 1], [], []>} : vector<8x128xf32>, vector<128x512xf32>, vector<8x512xf32> -> vector<8x512xf32>
    %97 = arith.addf %95, %96 : vector<8x512xf32>
    %98 = vector.extract_strided_slice %97 {offsets = [0, 0], sizes = [8, 128], strides = [1, 1]} : vector<8x512xf32> to vector<8x128xf32>
    %99 = arith.negf %98 : vector<8x128xf32>
    %100 = math.exp %99 : vector<8x128xf32>
    %cst_38 = arith.constant 1.000000e+00 : f32
    %101 = vector.broadcast %cst_38 : f32 to vector<8x128xf32>
    %102 = arith.addf %101, %100 : vector<8x128xf32>
    %103 = arith.divf %101, %102 : vector<8x128xf32>
    %104 = vector.extract_strided_slice %97 {offsets = [0, 128], sizes = [8, 128], strides = [1, 1]} : vector<8x512xf32> to vector<8x128xf32>
    %105 = arith.negf %104 : vector<8x128xf32>
    %106 = math.exp %105 : vector<8x128xf32>
    %cst_39 = arith.constant 1.000000e+00 : f32
    %107 = vector.broadcast %cst_39 : f32 to vector<8x128xf32>
    %108 = arith.addf %107, %106 : vector<8x128xf32>
    %109 = arith.divf %107, %108 : vector<8x128xf32>
    %110 = vector.extract_strided_slice %97 {offsets = [0, 256], sizes = [8, 128], strides = [1, 1]} : vector<8x512xf32> to vector<8x128xf32>
    %111 = math.tanh %110 : vector<8x128xf32>
    %112 = vector.extract_strided_slice %97 {offsets = [0, 384], sizes = [8, 128], strides = [1, 1]} : vector<8x512xf32> to vector<8x128xf32>
    %113 = arith.negf %112 : vector<8x128xf32>
    %114 = math.exp %113 : vector<8x128xf32>
    %cst_40 = arith.constant 1.000000e+00 : f32
    %115 = vector.broadcast %cst_40 : f32 to vector<8x128xf32>
    %116 = arith.addf %115, %114 : vector<8x128xf32>
    %117 = arith.divf %115, %116 : vector<8x128xf32>
    %118 = arith.mulf %109, %88 : vector<8x128xf32>
    %119 = arith.mulf %103, %111 : vector<8x128xf32>
    %120 = arith.addf %118, %119 : vector<8x128xf32>
    %121 = math.tanh %120 : vector<8x128xf32>
    %122 = arith.mulf %117, %121 : vector<8x128xf32>
    %c16_41 = arith.constant 16 : index
    %c0_42 = arith.constant 0 : index
    %123 = vector.load %arg8[%c16_41, %c0_42] : memref<64x128xf32, #tpu.memory_space<vmem>>, vector<8x128xf32>
    tpu.vector_store %arg8[%c16_41, %c0_42], %122 {strides = array<i32>} : memref<64x128xf32, #tpu.memory_space<vmem>>, vector<8x128xf32>,
    %c40_43 = arith.constant 40 : index
    %c0_44 = arith.constant 0 : index
    %124 = vector.load %arg9[%c40_43, %c0_44] : memref<64x128xf32, #tpu.memory_space<vmem>>, vector<8x128xf32>
    tpu.vector_store %arg9[%c40_43, %c0_44], %122 {strides = array<i32>} : memref<64x128xf32, #tpu.memory_space<vmem>>, vector<8x128xf32>,
    %c24 = arith.constant 24 : index
    %c0_45 = arith.constant 0 : index
    %125 = vector.load %arg7[%c24, %c0_45] : memref<64x512xf32, #tpu.memory_space<vmem>>, vector<8x512xf32>
    %c32 = arith.constant 32 : index
    %c0_46 = arith.constant 0 : index
    %126 = vector.load %arg7[%c32, %c0_46] : memref<64x512xf32, #tpu.memory_space<vmem>>, vector<8x512xf32>
    %127 = arith.select %25, %125, %126 : vector<8x512xi1>, vector<8x512xf32>
    %cst_47 = arith.constant dense<0.000000e+00> : vector<8x512xf32>
    %128 = tpu.matmul %122, %26, %cst_47 {dimension_numbers = #tpu.dot_dimension_numbers<[1], [0], [0], [1], [0, 0, 1, 1], [], []>} : vector<8x128xf32>, vector<128x512xf32>, vector<8x512xf32> -> vector<8x512xf32>
    %129 = arith.addf %127, %128 : vector<8x512xf32>
    %130 = vector.extract_strided_slice %129 {offsets = [0, 0], sizes = [8, 128], strides = [1, 1]} : vector<8x512xf32> to vector<8x128xf32>
    %131 = arith.negf %130 : vector<8x128xf32>
    %132 = math.exp %131 : vector<8x128xf32>
    %cst_48 = arith.constant 1.000000e+00 : f32
    %133 = vector.broadcast %cst_48 : f32 to vector<8x128xf32>
    %134 = arith.addf %133, %132 : vector<8x128xf32>
    %135 = arith.divf %133, %134 : vector<8x128xf32>
    %136 = vector.extract_strided_slice %129 {offsets = [0, 128], sizes = [8, 128], strides = [1, 1]} : vector<8x512xf32> to vector<8x128xf32>
    %137 = arith.negf %136 : vector<8x128xf32>
    %138 = math.exp %137 : vector<8x128xf32>
    %cst_49 = arith.constant 1.000000e+00 : f32
    %139 = vector.broadcast %cst_49 : f32 to vector<8x128xf32>
    %140 = arith.addf %139, %138 : vector<8x128xf32>
    %141 = arith.divf %139, %140 : vector<8x128xf32>
    %142 = vector.extract_strided_slice %129 {offsets = [0, 256], sizes = [8, 128], strides = [1, 1]} : vector<8x512xf32> to vector<8x128xf32>
    %143 = math.tanh %142 : vector<8x128xf32>
    %144 = vector.extract_strided_slice %129 {offsets = [0, 384], sizes = [8, 128], strides = [1, 1]} : vector<8x512xf32> to vector<8x128xf32>
    %145 = arith.negf %144 : vector<8x128xf32>
    %146 = math.exp %145 : vector<8x128xf32>
    %cst_50 = arith.constant 1.000000e+00 : f32
    %147 = vector.broadcast %cst_50 : f32 to vector<8x128xf32>
    %148 = arith.addf %147, %146 : vector<8x128xf32>
    %149 = arith.divf %147, %148 : vector<8x128xf32>
    %150 = arith.mulf %141, %120 : vector<8x128xf32>
    %151 = arith.mulf %135, %143 : vector<8x128xf32>
    %152 = arith.addf %150, %151 : vector<8x128xf32>
    %153 = math.tanh %152 : vector<8x128xf32>
    %154 = arith.mulf %149, %153 : vector<8x128xf32>
    %c24_51 = arith.constant 24 : index
    %c0_52 = arith.constant 0 : index
    %155 = vector.load %arg8[%c24_51, %c0_52] : memref<64x128xf32, #tpu.memory_space<vmem>>, vector<8x128xf32>
    tpu.vector_store %arg8[%c24_51, %c0_52], %154 {strides = array<i32>} : memref<64x128xf32, #tpu.memory_space<vmem>>, vector<8x128xf32>,
    %c32_53 = arith.constant 32 : index
    %c0_54 = arith.constant 0 : index
    %156 = vector.load %arg9[%c32_53, %c0_54] : memref<64x128xf32, #tpu.memory_space<vmem>>, vector<8x128xf32>
    tpu.vector_store %arg9[%c32_53, %c0_54], %154 {strides = array<i32>} : memref<64x128xf32, #tpu.memory_space<vmem>>, vector<8x128xf32>,
    %c32_55 = arith.constant 32 : index
    %c0_56 = arith.constant 0 : index
    %157 = vector.load %arg7[%c32_55, %c0_56] : memref<64x512xf32, #tpu.memory_space<vmem>>, vector<8x512xf32>
    %c24_57 = arith.constant 24 : index
    %c0_58 = arith.constant 0 : index
    %158 = vector.load %arg7[%c24_57, %c0_58] : memref<64x512xf32, #tpu.memory_space<vmem>>, vector<8x512xf32>
    %159 = arith.select %25, %157, %158 : vector<8x512xi1>, vector<8x512xf32>
    %cst_59 = arith.constant dense<0.000000e+00> : vector<8x512xf32>
    %160 = tpu.matmul %154, %26, %cst_59 {dimension_numbers = #tpu.dot_dimension_numbers<[1], [0], [0], [1], [0, 0, 1, 1], [], []>} : vector<8x128xf32>, vector<128x512xf32>, vector<8x512xf32> -> vector<8x512xf32>
    %161 = arith.addf %159, %160 : vector<8x512xf32>
    %162 = vector.extract_strided_slice %161 {offsets = [0, 0], sizes = [8, 128], strides = [1, 1]} : vector<8x512xf32> to vector<8x128xf32>
    %163 = arith.negf %162 : vector<8x128xf32>
    %164 = math.exp %163 : vector<8x128xf32>
    %cst_60 = arith.constant 1.000000e+00 : f32
    %165 = vector.broadcast %cst_60 : f32 to vector<8x128xf32>
    %166 = arith.addf %165, %164 : vector<8x128xf32>
    %167 = arith.divf %165, %166 : vector<8x128xf32>
    %168 = vector.extract_strided_slice %161 {offsets = [0, 128], sizes = [8, 128], strides = [1, 1]} : vector<8x512xf32> to vector<8x128xf32>
    %169 = arith.negf %168 : vector<8x128xf32>
    %170 = math.exp %169 : vector<8x128xf32>
    %cst_61 = arith.constant 1.000000e+00 : f32
    %171 = vector.broadcast %cst_61 : f32 to vector<8x128xf32>
    %172 = arith.addf %171, %170 : vector<8x128xf32>
    %173 = arith.divf %171, %172 : vector<8x128xf32>
    %174 = vector.extract_strided_slice %161 {offsets = [0, 256], sizes = [8, 128], strides = [1, 1]} : vector<8x512xf32> to vector<8x128xf32>
    %175 = math.tanh %174 : vector<8x128xf32>
    %176 = vector.extract_strided_slice %161 {offsets = [0, 384], sizes = [8, 128], strides = [1, 1]} : vector<8x512xf32> to vector<8x128xf32>
    %177 = arith.negf %176 : vector<8x128xf32>
    %178 = math.exp %177 : vector<8x128xf32>
    %cst_62 = arith.constant 1.000000e+00 : f32
    %179 = vector.broadcast %cst_62 : f32 to vector<8x128xf32>
    %180 = arith.addf %179, %178 : vector<8x128xf32>
    %181 = arith.divf %179, %180 : vector<8x128xf32>
    %182 = arith.mulf %173, %152 : vector<8x128xf32>
    %183 = arith.mulf %167, %175 : vector<8x128xf32>
    %184 = arith.addf %182, %183 : vector<8x128xf32>
    %185 = math.tanh %184 : vector<8x128xf32>
    %186 = arith.mulf %181, %185 : vector<8x128xf32>
    %c32_63 = arith.constant 32 : index
    %c0_64 = arith.constant 0 : index
    %187 = vector.load %arg8[%c32_63, %c0_64] : memref<64x128xf32, #tpu.memory_space<vmem>>, vector<8x128xf32>
    tpu.vector_store %arg8[%c32_63, %c0_64], %186 {strides = array<i32>} : memref<64x128xf32, #tpu.memory_space<vmem>>, vector<8x128xf32>,
    %c24_65 = arith.constant 24 : index
    %c0_66 = arith.constant 0 : index
    %188 = vector.load %arg9[%c24_65, %c0_66] : memref<64x128xf32, #tpu.memory_space<vmem>>, vector<8x128xf32>
    tpu.vector_store %arg9[%c24_65, %c0_66], %186 {strides = array<i32>} : memref<64x128xf32, #tpu.memory_space<vmem>>, vector<8x128xf32>,
    %c40_67 = arith.constant 40 : index
    %c0_68 = arith.constant 0 : index
    %189 = vector.load %arg7[%c40_67, %c0_68] : memref<64x512xf32, #tpu.memory_space<vmem>>, vector<8x512xf32>
    %c16_69 = arith.constant 16 : index
    %c0_70 = arith.constant 0 : index
    %190 = vector.load %arg7[%c16_69, %c0_70] : memref<64x512xf32, #tpu.memory_space<vmem>>, vector<8x512xf32>
    %191 = arith.select %25, %189, %190 : vector<8x512xi1>, vector<8x512xf32>
    %cst_71 = arith.constant dense<0.000000e+00> : vector<8x512xf32>
    %192 = tpu.matmul %186, %26, %cst_71 {dimension_numbers = #tpu.dot_dimension_numbers<[1], [0], [0], [1], [0, 0, 1, 1], [], []>} : vector<8x128xf32>, vector<128x512xf32>, vector<8x512xf32> -> vector<8x512xf32>
    %193 = arith.addf %191, %192 : vector<8x512xf32>
    %194 = vector.extract_strided_slice %193 {offsets = [0, 0], sizes = [8, 128], strides = [1, 1]} : vector<8x512xf32> to vector<8x128xf32>
    %195 = arith.negf %194 : vector<8x128xf32>
    %196 = math.exp %195 : vector<8x128xf32>
    %cst_72 = arith.constant 1.000000e+00 : f32
    %197 = vector.broadcast %cst_72 : f32 to vector<8x128xf32>
    %198 = arith.addf %197, %196 : vector<8x128xf32>
    %199 = arith.divf %197, %198 : vector<8x128xf32>
    %200 = vector.extract_strided_slice %193 {offsets = [0, 128], sizes = [8, 128], strides = [1, 1]} : vector<8x512xf32> to vector<8x128xf32>
    %201 = arith.negf %200 : vector<8x128xf32>
    %202 = math.exp %201 : vector<8x128xf32>
    %cst_73 = arith.constant 1.000000e+00 : f32
    %203 = vector.broadcast %cst_73 : f32 to vector<8x128xf32>
    %204 = arith.addf %203, %202 : vector<8x128xf32>
    %205 = arith.divf %203, %204 : vector<8x128xf32>
    %206 = vector.extract_strided_slice %193 {offsets = [0, 256], sizes = [8, 128], strides = [1, 1]} : vector<8x512xf32> to vector<8x128xf32>
    %207 = math.tanh %206 : vector<8x128xf32>
    %208 = vector.extract_strided_slice %193 {offsets = [0, 384], sizes = [8, 128], strides = [1, 1]} : vector<8x512xf32> to vector<8x128xf32>
    %209 = arith.negf %208 : vector<8x128xf32>
    %210 = math.exp %209 : vector<8x128xf32>
    %cst_74 = arith.constant 1.000000e+00 : f32
    %211 = vector.broadcast %cst_74 : f32 to vector<8x128xf32>
    %212 = arith.addf %211, %210 : vector<8x128xf32>
    %213 = arith.divf %211, %212 : vector<8x128xf32>
    %214 = arith.mulf %205, %184 : vector<8x128xf32>
    %215 = arith.mulf %199, %207 : vector<8x128xf32>
    %216 = arith.addf %214, %215 : vector<8x128xf32>
    %217 = math.tanh %216 : vector<8x128xf32>
    %218 = arith.mulf %213, %217 : vector<8x128xf32>
    %c40_75 = arith.constant 40 : index
    %c0_76 = arith.constant 0 : index
    %219 = vector.load %arg8[%c40_75, %c0_76] : memref<64x128xf32, #tpu.memory_space<vmem>>, vector<8x128xf32>
    tpu.vector_store %arg8[%c40_75, %c0_76], %218 {strides = array<i32>} : memref<64x128xf32, #tpu.memory_space<vmem>>, vector<8x128xf32>,
    %c16_77 = arith.constant 16 : index
    %c0_78 = arith.constant 0 : index
    %220 = vector.load %arg9[%c16_77, %c0_78] : memref<64x128xf32, #tpu.memory_space<vmem>>, vector<8x128xf32>
    tpu.vector_store %arg9[%c16_77, %c0_78], %218 {strides = array<i32>} : memref<64x128xf32, #tpu.memory_space<vmem>>, vector<8x128xf32>,
    %c48_79 = arith.constant 48 : index
    %c0_80 = arith.constant 0 : index
    %221 = vector.load %arg7[%c48_79, %c0_80] : memref<64x512xf32, #tpu.memory_space<vmem>>, vector<8x512xf32>
    %c8_81 = arith.constant 8 : index
    %c0_82 = arith.constant 0 : index
    %222 = vector.load %arg7[%c8_81, %c0_82] : memref<64x512xf32, #tpu.memory_space<vmem>>, vector<8x512xf32>
    %223 = arith.select %25, %221, %222 : vector<8x512xi1>, vector<8x512xf32>
    %cst_83 = arith.constant dense<0.000000e+00> : vector<8x512xf32>
    %224 = tpu.matmul %218, %26, %cst_83 {dimension_numbers = #tpu.dot_dimension_numbers<[1], [0], [0], [1], [0, 0, 1, 1], [], []>} : vector<8x128xf32>, vector<128x512xf32>, vector<8x512xf32> -> vector<8x512xf32>
    %225 = arith.addf %223, %224 : vector<8x512xf32>
    %226 = vector.extract_strided_slice %225 {offsets = [0, 0], sizes = [8, 128], strides = [1, 1]} : vector<8x512xf32> to vector<8x128xf32>
    %227 = arith.negf %226 : vector<8x128xf32>
    %228 = math.exp %227 : vector<8x128xf32>
    %cst_84 = arith.constant 1.000000e+00 : f32
    %229 = vector.broadcast %cst_84 : f32 to vector<8x128xf32>
    %230 = arith.addf %229, %228 : vector<8x128xf32>
    %231 = arith.divf %229, %230 : vector<8x128xf32>
    %232 = vector.extract_strided_slice %225 {offsets = [0, 128], sizes = [8, 128], strides = [1, 1]} : vector<8x512xf32> to vector<8x128xf32>
    %233 = arith.negf %232 : vector<8x128xf32>
    %234 = math.exp %233 : vector<8x128xf32>
    %cst_85 = arith.constant 1.000000e+00 : f32
    %235 = vector.broadcast %cst_85 : f32 to vector<8x128xf32>
    %236 = arith.addf %235, %234 : vector<8x128xf32>
    %237 = arith.divf %235, %236 : vector<8x128xf32>
    %238 = vector.extract_strided_slice %225 {offsets = [0, 256], sizes = [8, 128], strides = [1, 1]} : vector<8x512xf32> to vector<8x128xf32>
    %239 = math.tanh %238 : vector<8x128xf32>
    %240 = vector.extract_strided_slice %225 {offsets = [0, 384], sizes = [8, 128], strides = [1, 1]} : vector<8x512xf32> to vector<8x128xf32>
    %241 = arith.negf %240 : vector<8x128xf32>
    %242 = math.exp %241 : vector<8x128xf32>
    %cst_86 = arith.constant 1.000000e+00 : f32
    %243 = vector.broadcast %cst_86 : f32 to vector<8x128xf32>
    %244 = arith.addf %243, %242 : vector<8x128xf32>
    %245 = arith.divf %243, %244 : vector<8x128xf32>
    %246 = arith.mulf %237, %216 : vector<8x128xf32>
    %247 = arith.mulf %231, %239 : vector<8x128xf32>
    %248 = arith.addf %246, %247 : vector<8x128xf32>
    %249 = math.tanh %248 : vector<8x128xf32>
    %250 = arith.mulf %245, %249 : vector<8x128xf32>
    %c48_87 = arith.constant 48 : index
    %c0_88 = arith.constant 0 : index
    %251 = vector.load %arg8[%c48_87, %c0_88] : memref<64x128xf32, #tpu.memory_space<vmem>>, vector<8x128xf32>
    tpu.vector_store %arg8[%c48_87, %c0_88], %250 {strides = array<i32>} : memref<64x128xf32, #tpu.memory_space<vmem>>, vector<8x128xf32>,
    %c8_89 = arith.constant 8 : index
    %c0_90 = arith.constant 0 : index
    %252 = vector.load %arg9[%c8_89, %c0_90] : memref<64x128xf32, #tpu.memory_space<vmem>>, vector<8x128xf32>
    tpu.vector_store %arg9[%c8_89, %c0_90], %250 {strides = array<i32>} : memref<64x128xf32, #tpu.memory_space<vmem>>, vector<8x128xf32>,
    %c56_91 = arith.constant 56 : index
    %c0_92 = arith.constant 0 : index
    %253 = vector.load %arg7[%c56_91, %c0_92] : memref<64x512xf32, #tpu.memory_space<vmem>>, vector<8x512xf32>
    %c0_93 = arith.constant 0 : index
    %c0_94 = arith.constant 0 : index
    %254 = vector.load %arg7[%c0_93, %c0_94] : memref<64x512xf32, #tpu.memory_space<vmem>>, vector<8x512xf32>
    %255 = arith.select %25, %253, %254 : vector<8x512xi1>, vector<8x512xf32>
    %cst_95 = arith.constant dense<0.000000e+00> : vector<8x512xf32>
    %256 = tpu.matmul %250, %26, %cst_95 {dimension_numbers = #tpu.dot_dimension_numbers<[1], [0], [0], [1], [0, 0, 1, 1], [], []>} : vector<8x128xf32>, vector<128x512xf32>, vector<8x512xf32> -> vector<8x512xf32>
    %257 = arith.addf %255, %256 : vector<8x512xf32>
    %258 = vector.extract_strided_slice %257 {offsets = [0, 0], sizes = [8, 128], strides = [1, 1]} : vector<8x512xf32> to vector<8x128xf32>
    %259 = arith.negf %258 : vector<8x128xf32>
    %260 = math.exp %259 : vector<8x128xf32>
    %cst_96 = arith.constant 1.000000e+00 : f32
    %261 = vector.broadcast %cst_96 : f32 to vector<8x128xf32>
    %262 = arith.addf %261, %260 : vector<8x128xf32>
    %263 = arith.divf %261, %262 : vector<8x128xf32>
    %264 = vector.extract_strided_slice %257 {offsets = [0, 128], sizes = [8, 128], strides = [1, 1]} : vector<8x512xf32> to vector<8x128xf32>
    %265 = arith.negf %264 : vector<8x128xf32>
    %266 = math.exp %265 : vector<8x128xf32>
    %cst_97 = arith.constant 1.000000e+00 : f32
    %267 = vector.broadcast %cst_97 : f32 to vector<8x128xf32>
    %268 = arith.addf %267, %266 : vector<8x128xf32>
    %269 = arith.divf %267, %268 : vector<8x128xf32>
    %270 = vector.extract_strided_slice %257 {offsets = [0, 256], sizes = [8, 128], strides = [1, 1]} : vector<8x512xf32> to vector<8x128xf32>
    %271 = math.tanh %270 : vector<8x128xf32>
    %272 = vector.extract_strided_slice %257 {offsets = [0, 384], sizes = [8, 128], strides = [1, 1]} : vector<8x512xf32> to vector<8x128xf32>
    %273 = arith.negf %272 : vector<8x128xf32>
    %274 = math.exp %273 : vector<8x128xf32>
    %cst_98 = arith.constant 1.000000e+00 : f32
    %275 = vector.broadcast %cst_98 : f32 to vector<8x128xf32>
    %276 = arith.addf %275, %274 : vector<8x128xf32>
    %277 = arith.divf %275, %276 : vector<8x128xf32>
    %278 = arith.mulf %269, %248 : vector<8x128xf32>
    %279 = arith.mulf %263, %271 : vector<8x128xf32>
    %280 = arith.addf %278, %279 : vector<8x128xf32>
    %281 = math.tanh %280 : vector<8x128xf32>
    %282 = arith.mulf %277, %281 : vector<8x128xf32>
    %c56_99 = arith.constant 56 : index
    %c0_100 = arith.constant 0 : index
    %283 = vector.load %arg8[%c56_99, %c0_100] : memref<64x128xf32, #tpu.memory_space<vmem>>, vector<8x128xf32>
    tpu.vector_store %arg8[%c56_99, %c0_100], %282 {strides = array<i32>} : memref<64x128xf32, #tpu.memory_space<vmem>>, vector<8x128xf32>,
    %c0_101 = arith.constant 0 : index
    %c0_102 = arith.constant 0 : index
    %284 = vector.load %arg9[%c0_101, %c0_102] : memref<64x128xf32, #tpu.memory_space<vmem>>, vector<8x128xf32>
    tpu.vector_store %arg9[%c0_101, %c0_102], %282 {strides = array<i32>} : memref<64x128xf32, #tpu.memory_space<vmem>>, vector<8x128xf32>,
    %285 = tpu.iota {dimensions = array<i32: 1>} : vector<64x128xi32>
    %c32_i32_103 = arith.constant 32 : i32
    %286 = vector.broadcast %c32_i32_103 : i32 to vector<64x128xi32>
    %287 = arith.cmpi slt, %285, %286 : vector<64x128xi32>
    %c0_104 = arith.constant 0 : index
    %c0_105 = arith.constant 0 : index
    %288 = vector.load %arg8[%c0_104, %c0_105] : memref<64x128xf32, #tpu.memory_space<vmem>>, vector<64x128xf32>
    %c0_106 = arith.constant 0 : index
    %c0_107 = arith.constant 0 : index
    %289 = vector.load %arg9[%c0_106, %c0_107] : memref<64x128xf32, #tpu.memory_space<vmem>>, vector<64x128xf32>
    %290 = arith.select %287, %288, %289 : vector<64x128xi1>, vector<64x128xf32>
    %291 = math.tanh %290 : vector<64x128xf32>
    %292 = arith.truncf %291 : vector<64x128xf32> to vector<64x128xbf16>
    %c0_108 = arith.constant 0 : index
    %c0_109 = arith.constant 0 : index
    %293 = vector.load %arg4[%c0_108, %c0_109] : memref<128x128xbf16, #tpu.memory_space<vmem>>, vector<128x128xbf16>
    %cst_110 = arith.constant dense<0.000000e+00> : vector<64x128xf32>
    %294 = tpu.matmul %292, %293, %cst_110 {dimension_numbers = #tpu.dot_dimension_numbers<[1], [0], [0], [1], [0, 0, 1, 1], [], []>} : vector<64x128xbf16>, vector<128x128xbf16>, vector<64x128xf32> -> vector<64x128xf32>
    %c0_111 = arith.constant 0 : index
    %c0_112 = arith.constant 0 : index
    %295 = vector.load %arg5[%c0_111, %c0_112] : memref<1x128xf32, #tpu.memory_space<vmem>>, vector<1x128xf32>
    %296 = vector.broadcast %295 : vector<1x128xf32> to vector<64x128xf32>
    %297 = arith.addf %294, %296 : vector<64x128xf32>
    %c0_113 = arith.constant 0 : index
    %c0_114 = arith.constant 0 : index
    %298 = vector.load %arg6[%c0_113, %c0_114] : memref<64x128xf32, #tpu.memory_space<vmem>>, vector<64x128xf32>
    tpu.vector_store %arg6[%c0_113, %c0_114], %297 {strides = array<i32>} : memref<64x128xf32, #tpu.memory_space<vmem>>, vector<64x128xf32>,
    return
  }
}

</mosaic_0001>

<llo_original>
// kernel: model_forward.1
$region0: #{model_forward.1}
  #allocation0 [shape = 'u32[]', space=smem, size = 0x4, offset = 0x4, fixed_abs, tag = 'smem constant byte address 0x4 - core index']
  #allocation1 [shape = 'u32[144,128]{1,0:T(1,128)}', space=vmem, size = 0x12000, scoped, tag = 'internal scratch']
  #allocation2 [shape = 'f32[64,512]{1,0:T(8,128)}', space=vmem, size = 0x20000, scoped, tag = 'scratch operand']
  #allocation3 [shape = 'f32[64,128]{1,0:T(8,128)}', space=vmem, size = 0x8000, scoped, tag = 'scratch operand']
  #allocation4 [shape = 'f32[64,128]{1,0:T(8,128)}', space=vmem, size = 0x8000, scoped, tag = 'scratch operand']
  %s0 = inlined_call_operand.vmem [shape: bf16[64,384], index: 0, kind: input, shape index: {}]
  %s1 = inlined_call_operand.vmem [shape: bf16[384,512], index: 1, kind: input, shape index: {}]
  %s2 = inlined_call_operand.vmem [shape: f32[1,512], index: 2, kind: input, shape index: {}]
  %s3 = inlined_call_operand.vmem [shape: f32[128,512], index: 3, kind: input, shape index: {}]
  %s4 = inlined_call_operand.vmem [shape: bf16[128,128], index: 4, kind: input, shape index: {}]
  %s5 = inlined_call_operand.vmem [shape: f32[1,128], index: 5, kind: input, shape index: {}]
  %s6 = inlined_call_operand.vmem [shape: f32[64,128], index: 6, kind: output, shape index: {}]
  %s7 = sld [smem:[#allocation0]]
  $region34: #{model_forward.1} parent=0
    _
  %s9 = ssub.s32 1, %s7
  %s10 = scalar_select 0, %s9, %s7
  // Predicated region
  $region2: #{model_forward.1} parent=0 // pred_check
    _
  $region3: #{model_forward.1} parent=0 // pred_check_branch
    %12 = sbr.rel (0) target = $region5
  $region4: #{model_forward.1} parent=0 // pred_region
    _
  $region5: #{model_forward.1} parent=0 // pred_fallthru
    _
  // Predicated region
  $region6: #{model_forward.1} parent=0 // pred_check
    _
  $region7: #{model_forward.1} parent=0 // pred_check_branch
    %14 = sbr.rel (0) target = $region9
  $region8: #{model_forward.1} parent=0 // pred_region
    _
  $region9: #{model_forward.1} parent=0 // pred_fallthru
    _
  // Predicated region
  $region10: #{model_forward.1} parent=0 // pred_check
    _
  $region11: #{model_forward.1} parent=0 // pred_check_branch
    %16 = sbr.rel (0) target = $region13
  $region12: #{model_forward.1} parent=0 // pred_region
    _
  $region13: #{model_forward.1} parent=0 // pred_fallthru
    _
  // Predicated region
  $region14: #{model_forward.1} parent=0 // pred_check
    _
  $region15: #{model_forward.1} parent=0 // pred_check_branch
    %18 = sbr.rel (0) target = $region17
  $region16: #{model_forward.1} parent=0 // pred_region
    _
  $region17: #{model_forward.1} parent=0 // pred_fallthru
    _
  // Predicated region
  $region18: #{model_forward.1} parent=0 // pred_check
    _
  $region19: #{model_forward.1} parent=0 // pred_check_branch
    %20 = sbr.rel (0) target = $region21
  $region20: #{model_forward.1} parent=0 // pred_region
    _
  $region21: #{model_forward.1} parent=0 // pred_fallthru
    _
  // Predicated region
  $region22: #{model_forward.1} parent=0 // pred_check
    _
  $region23: #{model_forward.1} parent=0 // pred_check_branch
    %22 = sbr.rel (0) target = $region25
  $region24: #{model_forward.1} parent=0 // pred_region
    _
  $region25: #{model_forward.1} parent=0 // pred_fallthru
    _
  %v24 = vld [vmem:[%s0] sm:$0xff]
  %v25 = vld [vmem:[%s0 + $0x8] sm:$0xf]
  %v26 = vld [vmem:[%s0 + $0xc] sm:$0xff]
  %v27 = vld [vmem:[%s0 + $0x14] sm:$0xf]
  %v28 = vld [vmem:[%s0 + $0x18] sm:$0xff]
  %v29 = vld [vmem:[%s0 + $0x20] sm:$0xf]
  %v30 = vld [vmem:[%s0 + $0x24] sm:$0xff]
  %v31 = vld [vmem:[%s0 + $0x2c] sm:$0xf]
  %v32 = vld [vmem:[%s0 + $0x30] sm:$0xff]
  %v33 = vld [vmem:[%s0 + $0x38] sm:$0xf]
  %v34 = vld [vmem:[%s0 + $0x3c] sm:$0xff]
  %v35 = vld [vmem:[%s0 + $0x44] sm:$0xf]
  %v36 = vld [vmem:[%s0 + $0x48] sm:$0xff]
  %v37 = vld [vmem:[%s0 + $0x50] sm:$0xf]
  %v38 = vld [vmem:[%s0 + $0x54] sm:$0xff]
  %v39 = vld [vmem:[%s0 + $0x5c] sm:$0xf]
  %v40 = vld [vmem:[%s1] sm:$0xff]
  %v41 = vld [vmem:[%s1 + $0x8] sm:$0xff]
  %v42 = vld [vmem:[%s1 + $0x10] sm:$0xff]
  %v43 = vld [vmem:[%s1 + $0x18] sm:$0xff]
  %v44 = vld [vmem:[%s1 + $0x20] sm:$0xff]
  %v45 = vld [vmem:[%s1 + $0x28] sm:$0xff]
  %v46 = vld [vmem:[%s1 + $0x30] sm:$0xff]
  %v47 = vld [vmem:[%s1 + $0x38] sm:$0xff]
  %v48 = vld [vmem:[%s1 + $0x40] sm:$0xff]
  %v49 = vld [vmem:[%s1 + $0x48] sm:$0xff]
  %v50 = vld [vmem:[%s1 + $0x50] sm:$0xff]
  %v51 = vld [vmem:[%s1 + $0x58] sm:$0xff]
  %v52 = vld [vmem:[%s1 + $0x60] sm:$0xff]
  %v53 = vld [vmem:[%s1 + $0x68] sm:$0xff]
  %v54 = vld [vmem:[%s1 + $0x70] sm:$0xff]
  %v55 = vld [vmem:[%s1 + $0x78] sm:$0xff]
  %v56 = vld [vmem:[%s1 + $0x80] sm:$0xff]
  %v57 = vld [vmem:[%s1 + $0x88] sm:$0xff]
  %v58 = vld [vmem:[%s1 + $0x90] sm:$0xff]
  %v59 = vld [vmem:[%s1 + $0x98] sm:$0xff]
  %v60 = vld [vmem:[%s1 + $0xa0] sm:$0xff]
  %v61 = vld [vmem:[%s1 + $0xa8] sm:$0xff]
  %v62 = vld [vmem:[%s1 + $0xb0] sm:$0xff]
  %v63 = vld [vmem:[%s1 + $0xb8] sm:$0xff]
  %v64 = vld [vmem:[%s1 + $0xc0] sm:$0xff]
  %v65 = vld [vmem:[%s1 + $0xc8] sm:$0xff]
  %v66 = vld [vmem:[%s1 + $0xd0] sm:$0xff]
  %v67 = vld [vmem:[%s1 + $0xd8] sm:$0xff]
  %v68 = vld [vmem:[%s1 + $0xe0] sm:$0xff]
  %v69 = vld [vmem:[%s1 + $0xe8] sm:$0xff]
  %v70 = vld [vmem:[%s1 + $0xf0] sm:$0xff]
  %v71 = vld [vmem:[%s1 + $0xf8] sm:$0xff]
  %v72 = vld [vmem:[%s1 + $0x100] sm:$0xff]
  %v73 = vld [vmem:[%s1 + $0x108] sm:$0xff]
  %v74 = vld [vmem:[%s1 + $0x110] sm:$0xff]
  %v75 = vld [vmem:[%s1 + $0x118] sm:$0xff]
  %v76 = vld [vmem:[%s1 + $0x120] sm:$0xff]
  %v77 = vld [vmem:[%s1 + $0x128] sm:$0xff]
  %v78 = vld [vmem:[%s1 + $0x130] sm:$0xff]
  %v79 = vld [vmem:[%s1 + $0x138] sm:$0xff]
  %v80 = vld [vmem:[%s1 + $0x140] sm:$0xff]
  %v81 = vld [vmem:[%s1 + $0x148] sm:$0xff]
  %v82 = vld [vmem:[%s1 + $0x150] sm:$0xff]
  %v83 = vld [vmem:[%s1 + $0x158] sm:$0xff]
  %v84 = vld [vmem:[%s1 + $0x160] sm:$0xff]
  %v85 = vld [vmem:[%s1 + $0x168] sm:$0xff]
  %v86 = vld [vmem:[%s1 + $0x170] sm:$0xff]
  %v87 = vld [vmem:[%s1 + $0x178] sm:$0xff]
  %v88 = vld [vmem:[%s1 + $0x180] sm:$0xff]
  %v89 = vld [vmem:[%s1 + $0x188] sm:$0xff]
  %v90 = vld [vmem:[%s1 + $0x190] sm:$0xff]
  %v91 = vld [vmem:[%s1 + $0x198] sm:$0xff]
  %v92 = vld [vmem:[%s1 + $0x1a0] sm:$0xff]
  %v93 = vld [vmem:[%s1 + $0x1a8] sm:$0xff]
  %v94 = vld [vmem:[%s1 + $0x1b0] sm:$0xff]
  %v95 = vld [vmem:[%s1 + $0x1b8] sm:$0xff]
  %v96 = vld [vmem:[%s1 + $0x1c0] sm:$0xff]
  %v97 = vld [vmem:[%s1 + $0x1c8] sm:$0xff]
  %v98 = vld [vmem:[%s1 + $0x1d0] sm:$0xff]
  %v99 = vld [vmem:[%s1 + $0x1d8] sm:$0xff]
  %v100 = vld [vmem:[%s1 + $0x1e0] sm:$0xff]
  %v101 = vld [vmem:[%s1 + $0x1e8] sm:$0xff]
  %v102 = vld [vmem:[%s1 + $0x1f0] sm:$0xff]
  %v103 = vld [vmem:[%s1 + $0x1f8] sm:$0xff]
  %v104 = vld [vmem:[%s1 + $0x200] sm:$0xff]
  %v105 = vld [vmem:[%s1 + $0x208] sm:$0xff]
  %v106 = vld [vmem:[%s1 + $0x210] sm:$0xff]
  %v107 = vld [vmem:[%s1 + $0x218] sm:$0xff]
  %v108 = vld [vmem:[%s1 + $0x220] sm:$0xff]
  %v109 = vld [vmem:[%s1 + $0x228] sm:$0xff]
  %v110 = vld [vmem:[%s1 + $0x230] sm:$0xff]
  %v111 = vld [vmem:[%s1 + $0x238] sm:$0xff]
  %v112 = vld [vmem:[%s1 + $0x240] sm:$0xff]
  %v113 = vld [vmem:[%s1 + $0x248] sm:$0xff]
  %v114 = vld [vmem:[%s1 + $0x250] sm:$0xff]
  %v115 = vld [vmem:[%s1 + $0x258] sm:$0xff]
  %v116 = vld [vmem:[%s1 + $0x260] sm:$0xff]
  %v117 = vld [vmem:[%s1 + $0x268] sm:$0xff]
  %v118 = vld [vmem:[%s1 + $0x270] sm:$0xff]
  %v119 = vld [vmem:[%s1 + $0x278] sm:$0xff]
  %v120 = vld [vmem:[%s1 + $0x280] sm:$0xff]
  %v121 = vld [vmem:[%s1 + $0x288] sm:$0xff]
  %v122 = vld [vmem:[%s1 + $0x290] sm:$0xff]
  %v123 = vld [vmem:[%s1 + $0x298] sm:$0xff]
  %v124 = vld [vmem:[%s1 + $0x2a0] sm:$0xff]
  %v125 = vld [vmem:[%s1 + $0x2a8] sm:$0xff]
  %v126 = vld [vmem:[%s1 + $0x2b0] sm:$0xff]
  %v127 = vld [vmem:[%s1 + $0x2b8] sm:$0xff]
  %v128 = vld [vmem:[%s1 + $0x2c0] sm:$0xff]
  %v129 = vld [vmem:[%s1 + $0x2c8] sm:$0xff]
  %v130 = vld [vmem:[%s1 + $0x2d0] sm:$0xff]
  %v131 = vld [vmem:[%s1 + $0x2d8] sm:$0xff]
  %v132 = vld [vmem:[%s1 + $0x2e0] sm:$0xff]
  %v133 = vld [vmem:[%s1 + $0x2e8] sm:$0xff]
  %v134 = vld [vmem:[%s1 + $0x2f0] sm:$0xff]
  %v135 = vld [vmem:[%s1 + $0x2f8] sm:$0xff]
  %v136 = vld [vmem:[%s2] sm:$0xf]
  %v138 = vlaneseq
  %v139 = vshrl.u32 %v138, 7
  %v140 = vsub.s32 0, %v139
  %v141 = vrot.slane %v136, %v140
  %v142 = vlaneseq
  %v143 = vshrl.u32 %v142, 7
  %v144 = vsub.s32 1, %v143
  %v145 = vrot.slane %v136, %v144
  %v146 = vlaneseq
  %v147 = vshrl.u32 %v146, 7
  %v148 = vsub.s32 2, %v147
  %v149 = vrot.slane %v136, %v148
  %v150 = vlaneseq
  %v151 = vshrl.u32 %v150, 7
  %v152 = vsub.s32 3, %v151
  %v153 = vrot.slane %v136, %v152
  %v174 = vunpack.c.l.b16 %v24
  %v175 = vunpack.c.h.b16 %v24
  %v176 = vunpack.c.l.b16 %v25
  %v177 = vunpack.c.l.b16 %v26
  %v178 = vunpack.c.h.b16 %v26
  %v179 = vunpack.c.l.b16 %v27
  %v180 = vunpack.c.l.b16 %v28
  %v181 = vunpack.c.h.b16 %v28
  %v182 = vunpack.c.l.b16 %v29
  %v183 = vunpack.c.l.b16 %v30
  %v184 = vunpack.c.h.b16 %v30
  %v185 = vunpack.c.l.b16 %v31
  %v186 = vunpack.c.l.b16 %v32
  %v187 = vunpack.c.h.b16 %v32
  %v188 = vunpack.c.l.b16 %v33
  %v189 = vunpack.c.l.b16 %v34
  %v190 = vunpack.c.h.b16 %v34
  %v191 = vunpack.c.l.b16 %v35
  %v192 = vunpack.c.l.b16 %v36
  %v193 = vunpack.c.h.b16 %v36
  %v194 = vunpack.c.l.b16 %v37
  %v195 = vunpack.c.l.b16 %v38
  %v196 = vunpack.c.h.b16 %v38
  %v197 = vunpack.c.l.b16 %v39
  %v198 = vpack.c.b16 %v177, %v174
  %v199 = vpack.c.b16 %v178, %v175
  %v200 = vpack.c.b16 %v179, %v176
  %v201 = vpack.c.b16 %v183, %v180
  %v202 = vpack.c.b16 %v184, %v181
  %v203 = vpack.c.b16 %v185, %v182
  %v204 = vpack.c.b16 %v189, %v186
  %v205 = vpack.c.b16 %v190, %v187
  %v206 = vpack.c.b16 %v191, %v188
  %v207 = vpack.c.b16 %v195, %v192
  %v208 = vpack.c.b16 %v196, %v193
  %v209 = vpack.c.b16 %v197, %v194
  %v318 = vunpack.c.l.b16 %v40
  %v319 = vunpack.c.h.b16 %v40
  %v320 = vunpack.c.l.b16 %v41
  %v321 = vunpack.c.h.b16 %v41
  %v322 = vunpack.c.l.b16 %v42
  %v323 = vunpack.c.h.b16 %v42
  %v324 = vunpack.c.l.b16 %v43
  %v325 = vunpack.c.h.b16 %v43
  %v326 = vunpack.c.l.b16 %v44
  %v327 = vunpack.c.h.b16 %v44
  %v328 = vunpack.c.l.b16 %v45
  %v329 = vunpack.c.h.b16 %v45
  %v330 = vunpack.c.l.b16 %v46
  %v331 = vunpack.c.h.b16 %v46
  %v332 = vunpack.c.l.b16 %v47
  %v333 = vunpack.c.h.b16 %v47
  %v334 = vunpack.c.l.b16 %v48
  %v335 = vunpack.c.h.b16 %v48
  %v336 = vunpack.c.l.b16 %v49
  %v337 = vunpack.c.h.b16 %v49
  %v338 = vunpack.c.l.b16 %v50
  %v339 = vunpack.c.h.b16 %v50
  %v340 = vunpack.c.l.b16 %v51
  %v341 = vunpack.c.h.b16 %v51
  %v342 = vunpack.c.l.b16 %v52
  %v343 = vunpack.c.h.b16 %v52
  %v344 = vunpack.c.l.b16 %v53
  %v345 = vunpack.c.h.b16 %v53
  %v346 = vunpack.c.l.b16 %v54
  %v347 = vunpack.c.h.b16 %v54
  %v348 = vunpack.c.l.b16 %v55
  %v349 = vunpack.c.h.b16 %v55
  %v350 = vunpack.c.l.b16 %v56
  %v351 = vunpack.c.h.b16 %v56
  %v352 = vunpack.c.l.b16 %v57
  %v353 = vunpack.c.h.b16 %v57
  %v354 = vunpack.c.l.b16 %v58
  %v355 = vunpack.c.h.b16 %v58
  %v356 = vunpack.c.l.b16 %v59
  %v357 = vunpack.c.h.b16 %v59
  %v358 = vunpack.c.l.b16 %v60
  %v359 = vunpack.c.h.b16 %v60
  %v360 = vunpack.c.l.b16 %v61
  %v361 = vunpack.c.h.b16 %v61
  %v362 = vunpack.c.l.b16 %v62
  %v363 = vunpack.c.h.b16 %v62
  %v364 = vunpack.c.l.b16 %v63
  %v365 = vunpack.c.h.b16 %v63
  %v366 = vunpack.c.l.b16 %v64
  %v367 = vunpack.c.h.b16 %v64
  %v368 = vunpack.c.l.b16 %v65
  %v369 = vunpack.c.h.b16 %v65
  %v370 = vunpack.c.l.b16 %v66
  %v371 = vunpack.c.h.b16 %v66
  %v372 = vunpack.c.l.b16 %v67
  %v373 = vunpack.c.h.b16 %v67
  %v374 = vunpack.c.l.b16 %v68
  %v375 = vunpack.c.h.b16 %v68
  %v376 = vunpack.c.l.b16 %v69
  %v377 = vunpack.c.h.b16 %v69
  %v378 = vunpack.c.l.b16 %v70
  %v379 = vunpack.c.h.b16 %v70
  %v380 = vunpack.c.l.b16 %v71
  %v381 = vunpack.c.h.b16 %v71
  %v382 = vunpack.c.l.b16 %v72
  %v383 = vunpack.c.h.b16 %v72
  %v384 = vunpack.c.l.b16 %v73
  %v385 = vunpack.c.h.b16 %v73
  %v386 = vunpack.c.l.b16 %v74
  %v387 = vunpack.c.h.b16 %v74
  %v388 = vunpack.c.l.b16 %v75
  %v389 = vunpack.c.h.b16 %v75
  %v390 = vunpack.c.l.b16 %v76
  %v391 = vunpack.c.h.b16 %v76
  %v392 = vunpack.c.l.b16 %v77
  %v393 = vunpack.c.h.b16 %v77
  %v394 = vunpack.c.l.b16 %v78
  %v395 = vunpack.c.h.b16 %v78
  %v396 = vunpack.c.l.b16 %v79
  %v397 = vunpack.c.h.b16 %v79
  %v398 = vunpack.c.l.b16 %v80
  %v399 = vunpack.c.h.b16 %v80
  %v400 = vunpack.c.l.b16 %v81
  %v401 = vunpack.c.h.b16 %v81
  %v402 = vunpack.c.l.b16 %v82
  %v403 = vunpack.c.h.b16 %v82
  %v404 = vunpack.c.l.b16 %v83
  %v405 = vunpack.c.h.b16 %v83
  %v406 = vunpack.c.l.b16 %v84
  %v407 = vunpack.c.h.b16 %v84
  %v408 = vunpack.c.l.b16 %v85
  %v409 = vunpack.c.h.b16 %v85
  %v410 = vunpack.c.l.b16 %v86
  %v411 = vunpack.c.h.b16 %v86
  %v412 = vunpack.c.l.b16 %v87
  %v413 = vunpack.c.h.b16 %v87
  %v414 = vunpack.c.l.b16 %v88
  %v415 = vunpack.c.h.b16 %v88
  %v416 = vunpack.c.l.b16 %v89
  %v417 = vunpack.c.h.b16 %v89
  %v418 = vunpack.c.l.b16 %v90
  %v419 = vunpack.c.h.b16 %v90
  %v420 = vunpack.c.l.b16 %v91
  %v421 = vunpack.c.h.b16 %v91
  %v422 = vunpack.c.l.b16 %v92
  %v423 = vunpack.c.h.b16 %v92
  %v424 = vunpack.c.l.b16 %v93
  %v425 = vunpack.c.h.b16 %v93
  %v426 = vunpack.c.l.b16 %v94
  %v427 = vunpack.c.h.b16 %v94
  %v428 = vunpack.c.l.b16 %v95
  %v429 = vunpack.c.h.b16 %v95
  %v430 = vunpack.c.l.b16 %v96
  %v431 = vunpack.c.h.b16 %v96
  %v432 = vunpack.c.l.b16 %v97
  %v433 = vunpack.c.h.b16 %v97
  %v434 = vunpack.c.l.b16 %v98
  %v435 = vunpack.c.h.b16 %v98
  %v436 = vunpack.c.l.b16 %v99
  %v437 = vunpack.c.h.b16 %v99
  %v438 = vunpack.c.l.b16 %v100
  %v439 = vunpack.c.h.b16 %v100
  %v440 = vunpack.c.l.b16 %v101
  %v441 = vunpack.c.h.b16 %v101
  %v442 = vunpack.c.l.b16 %v102
  %v443 = vunpack.c.h.b16 %v102
  %v444 = vunpack.c.l.b16 %v103
  %v445 = vunpack.c.h.b16 %v103
  %v446 = vunpack.c.l.b16 %v104
  %v447 = vunpack.c.h.b16 %v104
  %v448 = vunpack.c.l.b16 %v105
  %v449 = vunpack.c.h.b16 %v105
  %v450 = vunpack.c.l.b16 %v106
  %v451 = vunpack.c.h.b16 %v106
  %v452 = vunpack.c.l.b16 %v107
  %v453 = vunpack.c.h.b16 %v107
  %v454 = vunpack.c.l.b16 %v108
  %v455 = vunpack.c.h.b16 %v108
  %v456 = vunpack.c.l.b16 %v109
  %v457 = vunpack.c.h.b16 %v109
  %v458 = vunpack.c.l.b16 %v110
  %v459 = vunpack.c.h.b16 %v110
  %v460 = vunpack.c.l.b16 %v111
  %v461 = vunpack.c.h.b16 %v111
  %v462 = vunpack.c.l.b16 %v112
  %v463 = vunpack.c.h.b16 %v112
  %v464 = vunpack.c.l.b16 %v113
  %v465 = vunpack.c.h.b16 %v113
  %v466 = vunpack.c.l.b16 %v114
  %v467 = vunpack.c.h.b16 %v114
  %v468 = vunpack.c.l.b16 %v115
  %v469 = vunpack.c.h.b16 %v115
  %v470 = vunpack.c.l.b16 %v116
  %v471 = vunpack.c.h.b16 %v116
  %v472 = vunpack.c.l.b16 %v117
  %v473 = vunpack.c.h.b16 %v117
  %v474 = vunpack.c.l.b16 %v118
  %v475 = vunpack.c.h.b16 %v118
  %v476 = vunpack.c.l.b16 %v119
  %v477 = vunpack.c.h.b16 %v119
  %v478 = vunpack.c.l.b16 %v120
  %v479 = vunpack.c.h.b16 %v120
  %v480 = vunpack.c.l.b16 %v121
  %v481 = vunpack.c.h.b16 %v121
  %v482 = vunpack.c.l.b16 %v122
  %v483 = vunpack.c.h.b16 %v122
  %v484 = vunpack.c.l.b16 %v123
  %v485 = vunpack.c.h.b16 %v123
  %v486 = vunpack.c.l.b16 %v124
  %v487 = vunpack.c.h.b16 %v124
  %v488 = vunpack.c.l.b16 %v125
  %v489 = vunpack.c.h.b16 %v125
  %v490 = vunpack.c.l.b16 %v126
  %v491 = vunpack.c.h.b16 %v126
  %v492 = vunpack.c.l.b16 %v127
  %v493 = vunpack.c.h.b16 %v127
  %v494 = vunpack.c.l.b16 %v128
  %v495 = vunpack.c.h.b16 %v128
  %v496 = vunpack.c.l.b16 %v129
  %v497 = vunpack.c.h.b16 %v129
  %v498 = vunpack.c.l.b16 %v130
  %v499 = vunpack.c.h.b16 %v130
  %v500 = vunpack.c.l.b16 %v131
  %v501 = vunpack.c.h.b16 %v131
  %v502 = vunpack.c.l.b16 %v132
  %v503 = vunpack.c.h.b16 %v132
  %v504 = vunpack.c.l.b16 %v133
  %v505 = vunpack.c.h.b16 %v133
  %v506 = vunpack.c.l.b16 %v134
  %v507 = vunpack.c.h.b16 %v134
  %v508 = vunpack.c.l.b16 %v135
  %v509 = vunpack.c.h.b16 %v135
  %v510 = vpack.c.b16 %v322, %v318
  %v511 = vpack.c.b16 %v323, %v319
  %v512 = vpack.c.b16 %v324, %v320
  %v513 = vpack.c.b16 %v325, %v321
  %v514 = vpack.c.b16 %v330, %v326
  %v515 = vpack.c.b16 %v331, %v327
  %v516 = vpack.c.b16 %v332, %v328
  %v517 = vpack.c.b16 %v333, %v329
  %v518 = vpack.c.b16 %v338, %v334
  %v519 = vpack.c.b16 %v339, %v335
  %v520 = vpack.c.b16 %v340, %v336
  %v521 = vpack.c.b16 %v341, %v337
  %v522 = vpack.c.b16 %v346, %v342
  %v523 = vpack.c.b16 %v347, %v343
  %v524 = vpack.c.b16 %v348, %v344
  %v525 = vpack.c.b16 %v349, %v345
  %v526 = vpack.c.b16 %v354, %v350
  %v527 = vpack.c.b16 %v355, %v351
  %v528 = vpack.c.b16 %v356, %v352
  %v529 = vpack.c.b16 %v357, %v353
  %v530 = vpack.c.b16 %v362, %v358
  %v531 = vpack.c.b16 %v363, %v359
  %v532 = vpack.c.b16 %v364, %v360
  %v533 = vpack.c.b16 %v365, %v361
  %v534 = vpack.c.b16 %v370, %v366
  %v535 = vpack.c.b16 %v371, %v367
  %v536 = vpack.c.b16 %v372, %v368
  %v537 = vpack.c.b16 %v373, %v369
  %v538 = vpack.c.b16 %v378, %v374
  %v539 = vpack.c.b16 %v379, %v375
  %v540 = vpack.c.b16 %v380, %v376
  %v541 = vpack.c.b16 %v381, %v377
  %v542 = vpack.c.b16 %v386, %v382
  %v543 = vpack.c.b16 %v387, %v383
  %v544 = vpack.c.b16 %v388, %v384
  %v545 = vpack.c.b16 %v389, %v385
  %v546 = vpack.c.b16 %v394, %v390
  %v547 = vpack.c.b16 %v395, %v391
  %v548 = vpack.c.b16 %v396, %v392
  %v549 = vpack.c.b16 %v397, %v393
  %v550 = vpack.c.b16 %v402, %v398
  %v551 = vpack.c.b16 %v403, %v399
  %v552 = vpack.c.b16 %v404, %v400
  %v553 = vpack.c.b16 %v405, %v401
  %v554 = vpack.c.b16 %v410, %v406
  %v555 = vpack.c.b16 %v411, %v407
  %v556 = vpack.c.b16 %v412, %v408
  %v557 = vpack.c.b16 %v413, %v409
  %v558 = vpack.c.b16 %v418, %v414
  %v559 = vpack.c.b16 %v419, %v415
  %v560 = vpack.c.b16 %v420, %v416
  %v561 = vpack.c.b16 %v421, %v417
  %v562 = vpack.c.b16 %v426, %v422
  %v563 = vpack.c.b16 %v427, %v423
  %v564 = vpack.c.b16 %v428, %v424
  %v565 = vpack.c.b16 %v429, %v425
  %v566 = vpack.c.b16 %v434, %v430
  %v567 = vpack.c.b16 %v435, %v431
  %v568 = vpack.c.b16 %v436, %v432
  %v569 = vpack.c.b16 %v437, %v433
  %v570 = vpack.c.b16 %v442, %v438
  %v571 = vpack.c.b16 %v443, %v439
  %v572 = vpack.c.b16 %v444, %v440
  %v573 = vpack.c.b16 %v445, %v441
  %v574 = vpack.c.b16 %v450, %v446
  %v575 = vpack.c.b16 %v451, %v447
  %v576 = vpack.c.b16 %v452, %v448
  %v577 = vpack.c.b16 %v453, %v449
  %v578 = vpack.c.b16 %v458, %v454
  %v579 = vpack.c.b16 %v459, %v455
  %v580 = vpack.c.b16 %v460, %v456
  %v581 = vpack.c.b16 %v461, %v457
  %v582 = vpack.c.b16 %v466, %v462
  %v583 = vpack.c.b16 %v467, %v463
  %v584 = vpack.c.b16 %v468, %v464
  %v585 = vpack.c.b16 %v469, %v465
  %v586 = vpack.c.b16 %v474, %v470
  %v587 = vpack.c.b16 %v475, %v471
  %v588 = vpack.c.b16 %v476, %v472
  %v589 = vpack.c.b16 %v477, %v473
  %v590 = vpack.c.b16 %v482, %v478
  %v591 = vpack.c.b16 %v483, %v479
  %v592 = vpack.c.b16 %v484, %v480
  %v593 = vpack.c.b16 %v485, %v481
  %v594 = vpack.c.b16 %v490, %v486
  %v595 = vpack.c.b16 %v491, %v487
  %v596 = vpack.c.b16 %v492, %v488
  %v597 = vpack.c.b16 %v493, %v489
  %v598 = vpack.c.b16 %v498, %v494
  %v599 = vpack.c.b16 %v499, %v495
  %v600 = vpack.c.b16 %v500, %v496
  %v601 = vpack.c.b16 %v501, %v497
  %v602 = vpack.c.b16 %v506, %v502
  %v603 = vpack.c.b16 %v507, %v503
  %v604 = vpack.c.b16 %v508, %v504
  %v605 = vpack.c.b16 %v509, %v505
  %702 = vmatprep.subr.bf16.mxu0 %v511
  %703 = vmatpush1.bf16.msra.mxu0 %v510
  %704 = vmatprep.subr.bf16.mxu0 %v515
  %705 = vmatpush1.bf16.msra.mxu0 %v514
  %706 = vmatprep.subr.bf16.mxu0 %v519
  %707 = vmatpush1.bf16.msra.mxu0 %v518
  %708 = vmatprep.subr.bf16.mxu0 %v523
  %709 = vmatpush1.bf16.msra.mxu0 %v522
  %710 = vmatprep.subr.bf16.mxu0 %v527
  %711 = vmatpush1.bf16.msra.mxu0 %v526
  %712 = vmatprep.subr.bf16.mxu0 %v531
  %713 = vmatpush1.bf16.msra.mxu0 %v530
  %714 = vmatprep.subr.bf16.mxu0 %v535
  %715 = vmatpush1.bf16.msra.mxu0 %v534
  %716 = vmatprep.subr.bf16.mxu0 %v539
  %717 = vmatpush1.bf16.msra.mxu0 %v538
  %718 = vmatprep.subr.bf16.mxu0 %v543
  %719 = vmatpush1.bf16.msra.mxu0 %v542
  %720 = vmatprep.subr.bf16.mxu0 %v547
  %721 = vmatpush1.bf16.msra.mxu0 %v546
  %722 = vmatprep.subr.bf16.mxu0 %v551
  %723 = vmatpush1.bf16.msra.mxu0 %v550
  %724 = vmatprep.subr.bf16.mxu0 %v555
  %725 = vmatpush1.bf16.msra.mxu0 %v554
  %726 = vmatprep.subr.bf16.mxu0 %v559
  %727 = vmatpush1.bf16.msra.mxu0 %v558
  %728 = vmatprep.subr.bf16.mxu0 %v563
  %729 = vmatpush1.bf16.msra.mxu0 %v562
  %730 = vmatprep.subr.bf16.mxu0 %v567
  %731 = vmatpush1.bf16.msra.mxu0 %v566
  %732 = vmatprep.subr.bf16.mxu0 %v571
  %733 = vmatpush1.bf16.msra.mxu0 %v570
  %734 = vmatprep.mubr.bf16.mxu0 %v199
  %735 = vmatmul.mubr.bf16.gmra.mrb[0].mxu0 %v198
  %v736 = vpop.f32.mrb[0].mxu0
  %v737 = vadd.f32 %v141, %v736
  %v738 = vpop.f32.mrb[0].mxu0
  %v739 = vadd.f32 %v145, %v738
  %v740 = vpop.f32.mrb[0].mxu0
  %v741 = vadd.f32 %v141, %v740
  %v742 = vpop.f32.mrb[0].mxu0
  %v743 = vadd.f32 %v145, %v742
  %744 = vmatprep.mubr.bf16.mxu0 %v202
  %745 = vmatmul.mubr.bf16.gmra.mrb[0].mxu0 %v201
  %v746 = vpop.f32.mrb[0].mxu0
  %v747 = vadd.f32 %v141, %v746
  %v748 = vpop.f32.mrb[0].mxu0
  %v749 = vadd.f32 %v145, %v748
  %v750 = vpop.f32.mrb[0].mxu0
  %v751 = vadd.f32 %v141, %v750
  %v752 = vpop.f32.mrb[0].mxu0
  %v753 = vadd.f32 %v145, %v752
  %754 = vmatprep.mubr.bf16.mxu0 %v205
  %755 = vmatmul.mubr.bf16.gmra.mrb[0].mxu0 %v204
  %v756 = vpop.f32.mrb[0].mxu0
  %v757 = vadd.f32 %v141, %v756
  %v758 = vpop.f32.mrb[0].mxu0
  %v759 = vadd.f32 %v145, %v758
  %v760 = vpop.f32.mrb[0].mxu0
  %v761 = vadd.f32 %v141, %v760
  %v762 = vpop.f32.mrb[0].mxu0
  %v763 = vadd.f32 %v145, %v762
  %764 = vmatprep.mubr.bf16.mxu0 %v208
  %765 = vmatmul.mubr.bf16.gmra.mrb[0].mxu0 %v207
  %v766 = vpop.f32.mrb[0].mxu0
  %v767 = vadd.f32 %v141, %v766
  %v768 = vpop.f32.mrb[0].mxu0
  %v769 = vadd.f32 %v145, %v768
  %v770 = vpop.f32.mrb[0].mxu0
  %v771 = vadd.f32 %v141, %v770
  %v772 = vpop.f32.mrb[0].mxu0
  %v773 = vadd.f32 %v145, %v772
  %774 = vdwg.mxu0
  %775 = vmatprep.subr.bf16.mxu0 %v575
  %776 = vmatpush1.bf16.msra.mxu0 %v574
  %777 = vmatprep.subr.bf16.mxu0 %v579
  %778 = vmatpush1.bf16.msra.mxu0 %v578
  %779 = vmatprep.subr.bf16.mxu0 %v583
  %780 = vmatpush1.bf16.msra.mxu0 %v582
  %781 = vmatprep.subr.bf16.mxu0 %v587
  %782 = vmatpush1.bf16.msra.mxu0 %v586
  %783 = vmatprep.subr.bf16.mxu0 %v591
  %784 = vmatpush1.bf16.msra.mxu0 %v590
  %785 = vmatprep.subr.bf16.mxu0 %v595
  %786 = vmatpush1.bf16.msra.mxu0 %v594
  %787 = vmatprep.subr.bf16.mxu0 %v599
  %788 = vmatpush1.bf16.msra.mxu0 %v598
  %789 = vmatprep.subr.bf16.mxu0 %v603
  %790 = vmatpush1.bf16.msra.mxu0 %v602
  %791 = vmatprep.subr.bf16.mxu0 0
  %792 = vmatpush1.bf16.msra.mxu0 0
  %793 = vmatprep.subr.bf16.mxu0 0
  %794 = vmatpush1.bf16.msra.mxu0 0
  %795 = vmatprep.subr.bf16.mxu0 0
  %796 = vmatpush1.bf16.msra.mxu0 0
  %797 = vmatprep.subr.bf16.mxu0 0
  %798 = vmatpush1.bf16.msra.mxu0 0
  %799 = vmatprep.subr.bf16.mxu0 0
  %800 = vmatpush1.bf16.msra.mxu0 0
  %801 = vmatprep.subr.bf16.mxu0 0
  %802 = vmatpush1.bf16.msra.mxu0 0
  %803 = vmatprep.subr.bf16.mxu0 0
  %804 = vmatpush1.bf16.msra.mxu0 0
  %805 = vmatprep.subr.bf16.mxu0 0
  %806 = vmatpush1.bf16.msra.mxu0 0
  %807 = vmatprep.mubr.bf16.mxu0 0
  %808 = vmatmul.mubr.bf16.gmra.mrb[0].mxu0 %v200
  %v809 = vpop.f32.mrb[0].mxu0
  %v810 = vadd.f32 %v737, %v809
  %v811 = vpop.f32.mrb[0].mxu0
  %v812 = vadd.f32 %v739, %v811
  %v813 = vpop.f32.mrb[0].mxu0
  %v814 = vadd.f32 %v741, %v813
  %v815 = vpop.f32.mrb[0].mxu0
  %v816 = vadd.f32 %v743, %v815
  %817 = vmatprep.mubr.bf16.mxu0 0
  %818 = vmatmul.mubr.bf16.gmra.mrb[0].mxu0 %v203
  %v819 = vpop.f32.mrb[0].mxu0
  %v820 = vadd.f32 %v747, %v819
  %v821 = vpop.f32.mrb[0].mxu0
  %v822 = vadd.f32 %v749, %v821
  %v823 = vpop.f32.mrb[0].mxu0
  %v824 = vadd.f32 %v751, %v823
  %v825 = vpop.f32.mrb[0].mxu0
  %v826 = vadd.f32 %v753, %v825
  %827 = vmatprep.mubr.bf16.mxu0 0
  %828 = vmatmul.mubr.bf16.gmra.mrb[0].mxu0 %v206
  %v829 = vpop.f32.mrb[0].mxu0
  %v830 = vadd.f32 %v757, %v829
  %v831 = vpop.f32.mrb[0].mxu0
  %v832 = vadd.f32 %v759, %v831
  %v833 = vpop.f32.mrb[0].mxu0
  %v834 = vadd.f32 %v761, %v833
  %v835 = vpop.f32.mrb[0].mxu0
  %v836 = vadd.f32 %v763, %v835
  %837 = vmatprep.mubr.bf16.mxu0 0
  %838 = vmatmul.mubr.bf16.gmra.mrb[0].mxu0 %v209
  %v839 = vpop.f32.mrb[0].mxu0
  %v840 = vadd.f32 %v767, %v839
  %v841 = vpop.f32.mrb[0].mxu0
  %v842 = vadd.f32 %v769, %v841
  %v843 = vpop.f32.mrb[0].mxu0
  %v844 = vadd.f32 %v771, %v843
  %v845 = vpop.f32.mrb[0].mxu0
  %v846 = vadd.f32 %v773, %v845
  %847 = vdwg.mxu0
  %848 = vmatprep.subr.bf16.mxu0 %v513
  %849 = vmatpush1.bf16.msra.mxu0 %v512
  %850 = vmatprep.subr.bf16.mxu0 %v517
  %851 = vmatpush1.bf16.msra.mxu0 %v516
  %852 = vmatprep.subr.bf16.mxu0 %v521
  %853 = vmatpush1.bf16.msra.mxu0 %v520
  %854 = vmatprep.subr.bf16.mxu0 %v525
  %855 = vmatpush1.bf16.msra.mxu0 %v524
  %856 = vmatprep.subr.bf16.mxu0 %v529
  %857 = vmatpush1.bf16.msra.mxu0 %v528
  %858 = vmatprep.subr.bf16.mxu0 %v533
  %859 = vmatpush1.bf16.msra.mxu0 %v532
  %860 = vmatprep.subr.bf16.mxu0 %v537
  %861 = vmatpush1.bf16.msra.mxu0 %v536
  %862 = vmatprep.subr.bf16.mxu0 %v541
  %863 = vmatpush1.bf16.msra.mxu0 %v540
  %864 = vmatprep.subr.bf16.mxu0 %v545
  %865 = vmatpush1.bf16.msra.mxu0 %v544
  %866 = vmatprep.subr.bf16.mxu0 %v549
  %867 = vmatpush1.bf16.msra.mxu0 %v548
  %868 = vmatprep.subr.bf16.mxu0 %v553
  %869 = vmatpush1.bf16.msra.mxu0 %v552
  %870 = vmatprep.subr.bf16.mxu0 %v557
  %871 = vmatpush1.bf16.msra.mxu0 %v556
  %872 = vmatprep.subr.bf16.mxu0 %v561
  %873 = vmatpush1.bf16.msra.mxu0 %v560
  %874 = vmatprep.subr.bf16.mxu0 %v565
  %875 = vmatpush1.bf16.msra.mxu0 %v564
  %876 = vmatprep.subr.bf16.mxu0 %v569
  %877 = vmatpush1.bf16.msra.mxu0 %v568
  %878 = vmatprep.subr.bf16.mxu0 %v573
  %879 = vmatpush1.bf16.msra.mxu0 %v572
  %880 = vmatprep.mubr.bf16.mxu0 %v199
  %881 = vmatmul.mubr.bf16.gmra.mrb[0].mxu0 %v198
  %v882 = vpop.f32.mrb[0].mxu0
  %v883 = vadd.f32 %v149, %v882
  %v884 = vpop.f32.mrb[0].mxu0
  %v885 = vadd.f32 %v153, %v884
  %v886 = vpop.f32.mrb[0].mxu0
  %v887 = vadd.f32 %v149, %v886
  %v888 = vpop.f32.mrb[0].mxu0
  %v889 = vadd.f32 %v153, %v888
  %890 = vmatprep.mubr.bf16.mxu0 %v202
  %891 = vmatmul.mubr.bf16.gmra.mrb[0].mxu0 %v201
  %v892 = vpop.f32.mrb[0].mxu0
  %v893 = vadd.f32 %v149, %v892
  %v894 = vpop.f32.mrb[0].mxu0
  %v895 = vadd.f32 %v153, %v894
  %v896 = vpop.f32.mrb[0].mxu0
  %v897 = vadd.f32 %v149, %v896
  %v898 = vpop.f32.mrb[0].mxu0
  %v899 = vadd.f32 %v153, %v898
  %900 = vmatprep.mubr.bf16.mxu0 %v205
  %901 = vmatmul.mubr.bf16.gmra.mrb[0].mxu0 %v204
  %v902 = vpop.f32.mrb[0].mxu0
  %v903 = vadd.f32 %v149, %v902
  %v904 = vpop.f32.mrb[0].mxu0
  %v905 = vadd.f32 %v153, %v904
  %v906 = vpop.f32.mrb[0].mxu0
  %v907 = vadd.f32 %v149, %v906
  %v908 = vpop.f32.mrb[0].mxu0
  %v909 = vadd.f32 %v153, %v908
  %910 = vmatprep.mubr.bf16.mxu0 %v208
  %911 = vmatmul.mubr.bf16.gmra.mrb[0].mxu0 %v207
  %v912 = vpop.f32.mrb[0].mxu0
  %v913 = vadd.f32 %v149, %v912
  %v914 = vpop.f32.mrb[0].mxu0
  %v915 = vadd.f32 %v153, %v914
  %v916 = vpop.f32.mrb[0].mxu0
  %v917 = vadd.f32 %v149, %v916
  %v918 = vpop.f32.mrb[0].mxu0
  %v919 = vadd.f32 %v153, %v918
  %920 = vdwg.mxu0
  %921 = vmatprep.subr.bf16.mxu0 %v577
  %922 = vmatpush1.bf16.msra.mxu0 %v576
  %923 = vmatprep.subr.bf16.mxu0 %v581
  %924 = vmatpush1.bf16.msra.mxu0 %v580
  %925 = vmatprep.subr.bf16.mxu0 %v585
  %926 = vmatpush1.bf16.msra.mxu0 %v584
  %927 = vmatprep.subr.bf16.mxu0 %v589
  %928 = vmatpush1.bf16.msra.mxu0 %v588
  %929 = vmatprep.subr.bf16.mxu0 %v593
  %930 = vmatpush1.bf16.msra.mxu0 %v592
  %931 = vmatprep.subr.bf16.mxu0 %v597
  %932 = vmatpush1.bf16.msra.mxu0 %v596
  %933 = vmatprep.subr.bf16.mxu0 %v601
  %934 = vmatpush1.bf16.msra.mxu0 %v600
  %935 = vmatprep.subr.bf16.mxu0 %v605
  %936 = vmatpush1.bf16.msra.mxu0 %v604
  %937 = vmatprep.subr.bf16.mxu0 0
  %938 = vmatpush1.bf16.msra.mxu0 0
  %939 = vmatprep.subr.bf16.mxu0 0
  %940 = vmatpush1.bf16.msra.mxu0 0
  %941 = vmatprep.subr.bf16.mxu0 0
  %942 = vmatpush1.bf16.msra.mxu0 0
  %943 = vmatprep.subr.bf16.mxu0 0
  %944 = vmatpush1.bf16.msra.mxu0 0
  %945 = vmatprep.subr.bf16.mxu0 0
  %946 = vmatpush1.bf16.msra.mxu0 0
  %947 = vmatprep.subr.bf16.mxu0 0
  %948 = vmatpush1.bf16.msra.mxu0 0
  %949 = vmatprep.subr.bf16.mxu0 0
  %950 = vmatpush1.bf16.msra.mxu0 0
  %951 = vmatprep.subr.bf16.mxu0 0
  %952 = vmatpush1.bf16.msra.mxu0 0
  %953 = vmatprep.mubr.bf16.mxu0 0
  %954 = vmatmul.mubr.bf16.gmra.mrb[0].mxu0 %v200
  %v955 = vpop.f32.mrb[0].mxu0
  %v956 = vadd.f32 %v883, %v955
  %v957 = vpop.f32.mrb[0].mxu0
  %v958 = vadd.f32 %v885, %v957
  %v959 = vpop.f32.mrb[0].mxu0
  %v960 = vadd.f32 %v887, %v959
  %v961 = vpop.f32.mrb[0].mxu0
  %v962 = vadd.f32 %v889, %v961
  %963 = vmatprep.mubr.bf16.mxu0 0
  %964 = vmatmul.mubr.bf16.gmra.mrb[0].mxu0 %v203
  %v965 = vpop.f32.mrb[0].mxu0
  %v966 = vadd.f32 %v893, %v965
  %v967 = vpop.f32.mrb[0].mxu0
  %v968 = vadd.f32 %v895, %v967
  %v969 = vpop.f32.mrb[0].mxu0
  %v970 = vadd.f32 %v897, %v969
  %v971 = vpop.f32.mrb[0].mxu0
  %v972 = vadd.f32 %v899, %v971
  %973 = vmatprep.mubr.bf16.mxu0 0
  %974 = vmatmul.mubr.bf16.gmra.mrb[0].mxu0 %v206
  %v975 = vpop.f32.mrb[0].mxu0
  %v976 = vadd.f32 %v903, %v975
  %v977 = vpop.f32.mrb[0].mxu0
  %v978 = vadd.f32 %v905, %v977
  %v979 = vpop.f32.mrb[0].mxu0
  %v980 = vadd.f32 %v907, %v979
  %v981 = vpop.f32.mrb[0].mxu0
  %v982 = vadd.f32 %v909, %v981
  %983 = vmatprep.mubr.bf16.mxu0 0
  %984 = vmatmul.mubr.bf16.gmra.mrb[0].mxu0 %v209
  %v985 = vpop.f32.mrb[0].mxu0
  %v986 = vadd.f32 %v913, %v985
  %v987 = vpop.f32.mrb[0].mxu0
  %v988 = vadd.f32 %v915, %v987
  %v989 = vpop.f32.mrb[0].mxu0
  %v990 = vadd.f32 %v917, %v989
  %v991 = vpop.f32.mrb[0].mxu0
  %v992 = vadd.f32 %v919, %v991
  %993 = vdwg.mxu0
  %994 = vst [vmem:[#allocation2] sm:$0xff] %v810
  %995 = vst [vmem:[#allocation2 + $0x8] sm:$0xff] %v812
  %996 = vst [vmem:[#allocation2 + $0x10] sm:$0xff] %v956
  %997 = vst [vmem:[#allocation2 + $0x18] sm:$0xff] %v958
  %998 = vst [vmem:[#allocation2 + $0x20] sm:$0xff] %v814
  %999 = vst [vmem:[#allocation2 + $0x28] sm:$0xff] %v816
  %1000 = vst [vmem:[#allocation2 + $0x30] sm:$0xff] %v960
  %1001 = vst [vmem:[#allocation2 + $0x38] sm:$0xff] %v962
  %1002 = vst [vmem:[#allocation2 + $0x40] sm:$0xff] %v820
  %1003 = vst [vmem:[#allocation2 + $0x48] sm:$0xff] %v822
  %1004 = vst [vmem:[#allocation2 + $0x50] sm:$0xff] %v966
  %1005 = vst [vmem:[#allocation2 + $0x58] sm:$0xff] %v968
  %1006 = vst [vmem:[#allocation2 + $0x60] sm:$0xff] %v824
  %1007 = vst [vmem:[#allocation2 + $0x68] sm:$0xff] %v826
  %1008 = vst [vmem:[#allocation2 + $0x70] sm:$0xff] %v970
  %1009 = vst [vmem:[#allocation2 + $0x78] sm:$0xff] %v972
  %1010 = vst [vmem:[#allocation2 + $0x80] sm:$0xff] %v830
  %1011 = vst [vmem:[#allocation2 + $0x88] sm:$0xff] %v832
  %1012 = vst [vmem:[#allocation2 + $0x90] sm:$0xff] %v976
  %1013 = vst [vmem:[#allocation2 + $0x98] sm:$0xff] %v978
  %1014 = vst [vmem:[#allocation2 + $0xa0] sm:$0xff] %v834
  %1015 = vst [vmem:[#allocation2 + $0xa8] sm:$0xff] %v836
  %1016 = vst [vmem:[#allocation2 + $0xb0] sm:$0xff] %v980
  %1017 = vst [vmem:[#allocation2 + $0xb8] sm:$0xff] %v982
  %1018 = vst [vmem:[#allocation2 + $0xc0] sm:$0xff] %v840
  %1019 = vst [vmem:[#allocation2 + $0xc8] sm:$0xff] %v842
  %1020 = vst [vmem:[#allocation2 + $0xd0] sm:$0xff] %v986
  %1021 = vst [vmem:[#allocation2 + $0xd8] sm:$0xff] %v988
  %1022 = vst [vmem:[#allocation2 + $0xe0] sm:$0xff] %v844
  %1023 = vst [vmem:[#allocation2 + $0xe8] sm:$0xff] %v846
  %1024 = vst [vmem:[#allocation2 + $0xf0] sm:$0xff] %v990
  %1025 = vst [vmem:[#allocation2 + $0xf8] sm:$0xff] %v992
  %v1026 = vlaneseq
  %v1027 = vand.u32 %v1026, 127
  %v1028 = vadd.s32 %v1027, 128
  %v1029 = vadd.s32 %v1027, 256
  %v1030 = vadd.s32 %v1027, 384
  %vm1031 = vcmp.lt.s32.totalorder %v1027, 0
  %v1032 = vsub.s32 0, %v1027
  %v1033 = vsel %vm1031, %v1032, %v1027
  %v1034 = vshrl.u32 %v1033, 7
  %v1035 = vand.u32 %v1033, 127
  %v1036 = vsub.s32 0, %v1035
  %v1037 = vsel %vm1031, %v1036, %v1035
  %vm1038 = vcmp.lt.s32.totalorder %v1028, 0
  %v1039 = vsub.s32 0, %v1028
  %v1040 = vsel %vm1038, %v1039, %v1028
  %v1041 = vshrl.u32 %v1040, 7
  %v1042 = vand.u32 %v1040, 127
  %v1043 = vsub.s32 0, %v1042
  %v1044 = vsel %vm1038, %v1043, %v1042
  %vm1045 = vcmp.lt.s32.totalorder %v1029, 0
  %v1046 = vsub.s32 0, %v1029
  %v1047 = vsel %vm1045, %v1046, %v1029
  %v1048 = vshrl.u32 %v1047, 7
  %v1049 = vand.u32 %v1047, 127
  %v1050 = vsub.s32 0, %v1049
  %v1051 = vsel %vm1045, %v1050, %v1049
  %vm1052 = vcmp.lt.s32.totalorder %v1030, 0
  %v1053 = vsub.s32 0, %v1030
  %v1054 = vsel %vm1052, %v1053, %v1030
  %v1055 = vshrl.u32 %v1054, 7
  %v1056 = vand.u32 %v1054, 127
  %v1057 = vsub.s32 0, %v1056
  %v1058 = vsel %vm1052, %v1057, %v1056
  %vm1059 = vcmp.ne.s32.totalorder %v1037, 0
  %vm1060 = vcmp.ne.s32.totalorder %v1044, 0
  %vm1061 = vcmp.ne.s32.totalorder %v1051, 0
  %vm1062 = vcmp.ne.s32.totalorder %v1058, 0
  %vm1063 = vcmp.lt.s32.totalorder %v1037, 0
  %vm1064 = vcmp.lt.s32.totalorder %v1044, 0
  %vm1065 = vcmp.lt.s32.totalorder %v1051, 0
  %vm1066 = vcmp.lt.s32.totalorder %v1058, 0
  %vm1067 = vmand %vm1063, %vm1059
  %vm1068 = vmand %vm1064, %vm1060
  %vm1069 = vmand %vm1065, %vm1061
  %vm1070 = vmand %vm1066, %vm1062
  %v1071 = vadd.s32 %v1037, 128
  %v1072 = vadd.s32 %v1044, 128
  %v1073 = vadd.s32 %v1051, 128
  %v1074 = vadd.s32 %v1058, 128
  %v1075 = vsel %vm1067, %v1071, %v1037
  %v1076 = vsel %vm1068, %v1072, %v1044
  %v1077 = vsel %vm1069, %v1073, %v1051
  %v1078 = vsel %vm1070, %v1074, %v1058
  %vm1079 = vcmp.lt.s32.totalorder %v1075, 32
  %vm1080 = vcmp.lt.s32.totalorder %v1076, 32
  %vm1081 = vcmp.lt.s32.totalorder %v1077, 32
  %vm1082 = vcmp.lt.s32.totalorder %v1078, 32
  %v1083 = vld [vmem:[%s3] sm:$0xff]
  %v1084 = vld [vmem:[%s3 + $0x8] sm:$0xff]
  %v1085 = vld [vmem:[%s3 + $0x10] sm:$0xff]
  %v1086 = vld [vmem:[%s3 + $0x18] sm:$0xff]
  %v1087 = vld [vmem:[%s3 + $0x20] sm:$0xff]
  %v1088 = vld [vmem:[%s3 + $0x28] sm:$0xff]
  %v1089 = vld [vmem:[%s3 + $0x30] sm:$0xff]
  %v1090 = vld [vmem:[%s3 + $0x38] sm:$0xff]
  %v1091 = vld [vmem:[%s3 + $0x40] sm:$0xff]
  %v1092 = vld [vmem:[%s3 + $0x48] sm:$0xff]
  %v1093 = vld [vmem:[%s3 + $0x50] sm:$0xff]
  %v1094 = vld [vmem:[%s3 + $0x58] sm:$0xff]
  %v1095 = vld [vmem:[%s3 + $0x60] sm:$0xff]
  %v1096 = vld [vmem:[%s3 + $0x68] sm:$0xff]
  %v1097 = vld [vmem:[%s3 + $0x70] sm:$0xff]
  %v1098 = vld [vmem:[%s3 + $0x78] sm:$0xff]
  %v1099 = vld [vmem:[%s3 + $0x80] sm:$0xff]
  %v1100 = vld [vmem:[%s3 + $0x88] sm:$0xff]
  %v1101 = vld [vmem:[%s3 + $0x90] sm:$0xff]
  %v1102 = vld [vmem:[%s3 + $0x98] sm:$0xff]
  %v1103 = vld [vmem:[%s3 + $0xa0] sm:$0xff]
  %v1104 = vld [vmem:[%s3 + $0xa8] sm:$0xff]
  %v1105 = vld [vmem:[%s3 + $0xb0] sm:$0xff]
  %v1106 = vld [vmem:[%s3 + $0xb8] sm:$0xff]
  %v1107 = vld [vmem:[%s3 + $0xc0] sm:$0xff]
  %v1108 = vld [vmem:[%s3 + $0xc8] sm:$0xff]
  %v1109 = vld [vmem:[%s3 + $0xd0] sm:$0xff]
  %v1110 = vld [vmem:[%s3 + $0xd8] sm:$0xff]
  %v1111 = vld [vmem:[%s3 + $0xe0] sm:$0xff]
  %v1112 = vld [vmem:[%s3 + $0xe8] sm:$0xff]
  %v1113 = vld [vmem:[%s3 + $0xf0] sm:$0xff]
  %v1114 = vld [vmem:[%s3 + $0xf8] sm:$0xff]
  %v1115 = vld [vmem:[%s3 + $0x100] sm:$0xff]
  %v1116 = vld [vmem:[%s3 + $0x108] sm:$0xff]
  %v1117 = vld [vmem:[%s3 + $0x110] sm:$0xff]
  %v1118 = vld [vmem:[%s3 + $0x118] sm:$0xff]
  %v1119 = vld [vmem:[%s3 + $0x120] sm:$0xff]
  %v1120 = vld [vmem:[%s3 + $0x128] sm:$0xff]
  %v1121 = vld [vmem:[%s3 + $0x130] sm:$0xff]
  %v1122 = vld [vmem:[%s3 + $0x138] sm:$0xff]
  %v1123 = vld [vmem:[%s3 + $0x140] sm:$0xff]
  %v1124 = vld [vmem:[%s3 + $0x148] sm:$0xff]
  %v1125 = vld [vmem:[%s3 + $0x150] sm:$0xff]
  %v1126 = vld [vmem:[%s3 + $0x158] sm:$0xff]
  %v1127 = vld [vmem:[%s3 + $0x160] sm:$0xff]
  %v1128 = vld [vmem:[%s3 + $0x168] sm:$0xff]
  %v1129 = vld [vmem:[%s3 + $0x170] sm:$0xff]
  %v1130 = vld [vmem:[%s3 + $0x178] sm:$0xff]
  %v1131 = vld [vmem:[%s3 + $0x180] sm:$0xff]
  %v1132 = vld [vmem:[%s3 + $0x188] sm:$0xff]
  %v1133 = vld [vmem:[%s3 + $0x190] sm:$0xff]
  %v1134 = vld [vmem:[%s3 + $0x198] sm:$0xff]
  %v1135 = vld [vmem:[%s3 + $0x1a0] sm:$0xff]
  %v1136 = vld [vmem:[%s3 + $0x1a8] sm:$0xff]
  %v1137 = vld [vmem:[%s3 + $0x1b0] sm:$0xff]
  %v1138 = vld [vmem:[%s3 + $0x1b8] sm:$0xff]
  %v1139 = vld [vmem:[%s3 + $0x1c0] sm:$0xff]
  %v1140 = vld [vmem:[%s3 + $0x1c8] sm:$0xff]
  %v1141 = vld [vmem:[%s3 + $0x1d0] sm:$0xff]
  %v1142 = vld [vmem:[%s3 + $0x1d8] sm:$0xff]
  %v1143 = vld [vmem:[%s3 + $0x1e0] sm:$0xff]
  %v1144 = vld [vmem:[%s3 + $0x1e8] sm:$0xff]
  %v1145 = vld [vmem:[%s3 + $0x1f0] sm:$0xff]
  %v1146 = vld [vmem:[%s3 + $0x1f8] sm:$0xff]
  %v1147 = vld [vmem:[#allocation2] sm:$0xff]
  %v1148 = vld [vmem:[#allocation2 + $0x8] sm:$0xff]
  %v1149 = vld [vmem:[#allocation2 + $0x10] sm:$0xff]
  %v1150 = vld [vmem:[#allocation2 + $0x18] sm:$0xff]
  %v1151 = vld [vmem:[#allocation2 + $0xe0] sm:$0xff]
  %v1152 = vld [vmem:[#allocation2 + $0xe8] sm:$0xff]
  %v1153 = vld [vmem:[#allocation2 + $0xf0] sm:$0xff]
  %v1154 = vld [vmem:[#allocation2 + $0xf8] sm:$0xff]
  %v1155 = vsel %vm1079, %v1147, %v1151
  %v1156 = vsel %vm1080, %v1148, %v1152
  %v1157 = vsel %vm1081, %v1149, %v1153
  %v1158 = vsel %vm1082, %v1150, %v1154
  %1159 = vmatprep.subr.mxu0 %v1084
  %1160 = vmatpush1.msra.mxu0 %v1083
  %1161 = vmatprep.subr.mxu0 %v1088
  %1162 = vmatpush1.msra.mxu0 %v1087
  %1163 = vmatprep.subr.mxu0 %v1092
  %1164 = vmatpush1.msra.mxu0 %v1091
  %1165 = vmatprep.subr.mxu0 %v1096
  %1166 = vmatpush1.msra.mxu0 %v1095
  %1167 = vmatprep.subr.mxu0 %v1100
  %1168 = vmatpush1.msra.mxu0 %v1099
  %1169 = vmatprep.subr.mxu0 %v1104
  %1170 = vmatpush1.msra.mxu0 %v1103
  %1171 = vmatprep.subr.mxu0 %v1108
  %1172 = vmatpush1.msra.mxu0 %v1107
  %1173 = vmatprep.subr.mxu0 %v1112
  %1174 = vmatpush1.msra.mxu0 %v1111
  %1175 = vmatprep.subr.mxu0 %v1116
  %1176 = vmatpush1.msra.mxu0 %v1115
  %1177 = vmatprep.subr.mxu0 %v1120
  %1178 = vmatpush1.msra.mxu0 %v1119
  %1179 = vmatprep.subr.mxu0 %v1124
  %1180 = vmatpush1.msra.mxu0 %v1123
  %1181 = vmatprep.subr.mxu0 %v1128
  %1182 = vmatpush1.msra.mxu0 %v1127
  %1183 = vmatprep.subr.mxu0 %v1132
  %1184 = vmatpush1.msra.mxu0 %v1131
  %1185 = vmatprep.subr.mxu0 %v1136
  %1186 = vmatpush1.msra.mxu0 %v1135
  %1187 = vmatprep.subr.mxu0 %v1140
  %1188 = vmatpush1.msra.mxu0 %v1139
  %1189 = vmatprep.subr.mxu0 %v1144
  %1190 = vmatpush1.msra.mxu0 %v1143
  %1191 = vmatprep.subr.mxu0 0.0
  %1192 = vmatpush1.msra.mxu0 0.0
  %1193 = vmatprep.subr.mxu0 0.0
  %1194 = vmatpush1.msra.mxu0 0.0
  %1195 = vmatprep.subr.mxu0 0.0
  %1196 = vmatpush1.msra.mxu0 0.0
  %1197 = vmatprep.subr.mxu0 0.0
  %1198 = vmatpush1.msra.mxu0 0.0
  %1199 = vmatprep.subr.mxu0 0.0
  %1200 = vmatpush1.msra.mxu0 0.0
  %1201 = vmatprep.subr.mxu0 0.0
  %1202 = vmatpush1.msra.mxu0 0.0
  %1203 = vmatprep.subr.mxu0 0.0
  %1204 = vmatpush1.msra.mxu0 0.0
  %1205 = vmatprep.subr.mxu0 0.0
  %1206 = vmatpush1.msra.mxu0 0.0
  %1207 = vmatprep.subr.mxu0 0.0
  %1208 = vmatpush1.msra.mxu0 0.0
  %1209 = vmatprep.subr.mxu0 0.0
  %1210 = vmatpush1.msra.mxu0 0.0
  %1211 = vmatprep.subr.mxu0 0.0
  %1212 = vmatpush1.msra.mxu0 0.0
  %1213 = vmatprep.subr.mxu0 0.0
  %1214 = vmatpush1.msra.mxu0 0.0
  %1215 = vmatprep.subr.mxu0 0.0
  %1216 = vmatpush1.msra.mxu0 0.0
  %1217 = vmatprep.subr.mxu0 0.0
  %1218 = vmatpush1.msra.mxu0 0.0
  %1219 = vmatprep.subr.mxu0 0.0
  %1220 = vmatpush1.msra.mxu0 0.0
  %1221 = vmatprep.subr.mxu0 0.0
  %1222 = vmatpush1.msra.mxu0 0.0
  %1223 = vmatprep.mubr.f32.mxu0 0.0
  %1224 = vmatmul.mubr.f32.gmra.mrb[0].mxu0 0.0
  %v1225 = vpop.f32.mrb[0].mxu0
  %v1226 = vadd.f32 0.0, %v1225
  %v1227 = vpop.f32.mrb[0].mxu0
  %v1228 = vadd.f32 0.0, %v1227
  %1229 = vdwg.mxu0
  %1230 = vmatprep.subr.mxu0 %v1086
  %1231 = vmatpush1.msra.mxu0 %v1085
  %1232 = vmatprep.subr.mxu0 %v1090
  %1233 = vmatpush1.msra.mxu0 %v1089
  %1234 = vmatprep.subr.mxu0 %v1094
  %1235 = vmatpush1.msra.mxu0 %v1093
  %1236 = vmatprep.subr.mxu0 %v1098
  %1237 = vmatpush1.msra.mxu0 %v1097
  %1238 = vmatprep.subr.mxu0 %v1102
  %1239 = vmatpush1.msra.mxu0 %v1101
  %1240 = vmatprep.subr.mxu0 %v1106
  %1241 = vmatpush1.msra.mxu0 %v1105
  %1242 = vmatprep.subr.mxu0 %v1110
  %1243 = vmatpush1.msra.mxu0 %v1109
  %1244 = vmatprep.subr.mxu0 %v1114
  %1245 = vmatpush1.msra.mxu0 %v1113
  %1246 = vmatprep.subr.mxu0 %v1118
  %1247 = vmatpush1.msra.mxu0 %v1117
  %1248 = vmatprep.subr.mxu0 %v1122
  %1249 = vmatpush1.msra.mxu0 %v1121
  %1250 = vmatprep.subr.mxu0 %v1126
  %1251 = vmatpush1.msra.mxu0 %v1125
  %1252 = vmatprep.subr.mxu0 %v1130
  %1253 = vmatpush1.msra.mxu0 %v1129
  %1254 = vmatprep.subr.mxu0 %v1134
  %1255 = vmatpush1.msra.mxu0 %v1133
  %1256 = vmatprep.subr.mxu0 %v1138
  %1257 = vmatpush1.msra.mxu0 %v1137
  %1258 = vmatprep.subr.mxu0 %v1142
  %1259 = vmatpush1.msra.mxu0 %v1141
  %1260 = vmatprep.subr.mxu0 %v1146
  %1261 = vmatpush1.msra.mxu0 %v1145
  %1262 = vmatprep.subr.mxu0 0.0
  %1263 = vmatpush1.msra.mxu0 0.0
  %1264 = vmatprep.subr.mxu0 0.0
  %1265 = vmatpush1.msra.mxu0 0.0
  %1266 = vmatprep.subr.mxu0 0.0
  %1267 = vmatpush1.msra.mxu0 0.0
  %1268 = vmatprep.subr.mxu0 0.0
  %1269 = vmatpush1.msra.mxu0 0.0
  %1270 = vmatprep.subr.mxu0 0.0
  %1271 = vmatpush1.msra.mxu0 0.0
  %1272 = vmatprep.subr.mxu0 0.0
  %1273 = vmatpush1.msra.mxu0 0.0
  %1274 = vmatprep.subr.mxu0 0.0
  %1275 = vmatpush1.msra.mxu0 0.0
  %1276 = vmatprep.subr.mxu0 0.0
  %1277 = vmatpush1.msra.mxu0 0.0
  %1278 = vmatprep.subr.mxu0 0.0
  %1279 = vmatpush1.msra.mxu0 0.0
  %1280 = vmatprep.subr.mxu0 0.0
  %1281 = vmatpush1.msra.mxu0 0.0
  %1282 = vmatprep.subr.mxu0 0.0
  %1283 = vmatpush1.msra.mxu0 0.0
  %1284 = vmatprep.subr.mxu0 0.0
  %1285 = vmatpush1.msra.mxu0 0.0
  %1286 = vmatprep.subr.mxu0 0.0
  %1287 = vmatpush1.msra.mxu0 0.0
  %1288 = vmatprep.subr.mxu0 0.0
  %1289 = vmatpush1.msra.mxu0 0.0
  %1290 = vmatprep.subr.mxu0 0.0
  %1291 = vmatpush1.msra.mxu0 0.0
  %1292 = vmatprep.subr.mxu0 0.0
  %1293 = vmatpush1.msra.mxu0 0.0
  %1294 = vmatprep.mubr.f32.mxu0 0.0
  %1295 = vmatmul.mubr.f32.gmra.mrb[0].mxu0 0.0
  %v1296 = vpop.f32.mrb[0].mxu0
  %v1297 = vadd.f32 0.0, %v1296
  %v1298 = vpop.f32.mrb[0].mxu0
  %v1299 = vadd.f32 0.0, %v1298
  %1300 = vdwg.mxu0
  %v1301 = vadd.f32 %v1155, %v1226
  %v1302 = vadd.f32 %v1156, %v1228
  %v1303 = vadd.f32 %v1157, %v1297
  %v1304 = vadd.f32 %v1158, %v1299
  %v1305 = vxor.u32 %v1301, 2147483648
  %v1306 = vmul.f32 %v1305, 1.442695
  %v1307 = vpow.pop %v1306
  %v1308 = vadd.f32 %v1307, 1.0
  %v1309 = vrcp.pop %v1308
  %v1310 = vmul.f32 1.0, %v1309
  %v1311 = vxor.u32 %v1302, 2147483648
  %v1312 = vmul.f32 %v1311, 1.442695
  %v1313 = vpow.pop %v1312
  %v1314 = vadd.f32 %v1313, 1.0
  %v1315 = vrcp.pop %v1314
  %v1316 = vmul.f32 1.0, %v1315
  %v1317 = vtanh.pop %v1303
  %v1318 = vxor.u32 %v1304, 2147483648
  %v1319 = vmul.f32 %v1318, 1.442695
  %v1320 = vpow.pop %v1319
  %v1321 = vadd.f32 %v1320, 1.0
  %v1322 = vrcp.pop %v1321
  %v1323 = vmul.f32 1.0, %v1322
  %v1324 = vmul.f32 %v1316, 0.0
  %v1325 = vmul.f32 %v1310, %v1317
  %v1326 = vadd.f32 %v1324, %v1325
  %v1327 = vtanh.pop %v1326
  %v1328 = vmul.f32 %v1323, %v1327
  %1329 = vst [vmem:[#allocation3] sm:$0xff] %v1328
  %1330 = vst [vmem:[#allocation4 + $0x38] sm:$0xff] %v1328
  %v1331 = vld [vmem:[#allocation2 + $0x20] sm:$0xff]
  %v1332 = vld [vmem:[#allocation2 + $0x28] sm:$0xff]
  %v1333 = vld [vmem:[#allocation2 + $0x30] sm:$0xff]
  %v1334 = vld [vmem:[#allocation2 + $0x38] sm:$0xff]
  %v1335 = vld [vmem:[#allocation2 + $0xc0] sm:$0xff]
  %v1336 = vld [vmem:[#allocation2 + $0xc8] sm:$0xff]
  %v1337 = vld [vmem:[#allocation2 + $0xd0] sm:$0xff]
  %v1338 = vld [vmem:[#allocation2 + $0xd8] sm:$0xff]
  %v1339 = vsel %vm1079, %v1331, %v1335
  %v1340 = vsel %vm1080, %v1332, %v1336
  %v1341 = vsel %vm1081, %v1333, %v1337
  %v1342 = vsel %vm1082, %v1334, %v1338
  %1343 = vmatprep.subr.mxu0 %v1084
  %1344 = vmatpush1.msra.mxu0 %v1083
  %1345 = vmatprep.subr.mxu0 %v1088
  %1346 = vmatpush1.msra.mxu0 %v1087
  %1347 = vmatprep.subr.mxu0 %v1092
  %1348 = vmatpush1.msra.mxu0 %v1091
  %1349 = vmatprep.subr.mxu0 %v1096
  %1350 = vmatpush1.msra.mxu0 %v1095
  %1351 = vmatprep.subr.mxu0 %v1100
  %1352 = vmatpush1.msra.mxu0 %v1099
  %1353 = vmatprep.subr.mxu0 %v1104
  %1354 = vmatpush1.msra.mxu0 %v1103
  %1355 = vmatprep.subr.mxu0 %v1108
  %1356 = vmatpush1.msra.mxu0 %v1107
  %1357 = vmatprep.subr.mxu0 %v1112
  %1358 = vmatpush1.msra.mxu0 %v1111
  %1359 = vmatprep.subr.mxu0 %v1116
  %1360 = vmatpush1.msra.mxu0 %v1115
  %1361 = vmatprep.subr.mxu0 %v1120
  %1362 = vmatpush1.msra.mxu0 %v1119
  %1363 = vmatprep.subr.mxu0 %v1124
  %1364 = vmatpush1.msra.mxu0 %v1123
  %1365 = vmatprep.subr.mxu0 %v1128
  %1366 = vmatpush1.msra.mxu0 %v1127
  %1367 = vmatprep.subr.mxu0 %v1132
  %1368 = vmatpush1.msra.mxu0 %v1131
  %1369 = vmatprep.subr.mxu0 %v1136
  %1370 = vmatpush1.msra.mxu0 %v1135
  %1371 = vmatprep.subr.mxu0 %v1140
  %1372 = vmatpush1.msra.mxu0 %v1139
  %1373 = vmatprep.subr.mxu0 %v1144
  %1374 = vmatpush1.msra.mxu0 %v1143
  %1375 = vmatprep.subr.mxu0 0.0
  %1376 = vmatpush1.msra.mxu0 0.0
  %1377 = vmatprep.subr.mxu0 0.0
  %1378 = vmatpush1.msra.mxu0 0.0
  %1379 = vmatprep.subr.mxu0 0.0
  %1380 = vmatpush1.msra.mxu0 0.0
  %1381 = vmatprep.subr.mxu0 0.0
  %1382 = vmatpush1.msra.mxu0 0.0
  %1383 = vmatprep.subr.mxu0 0.0
  %1384 = vmatpush1.msra.mxu0 0.0
  %1385 = vmatprep.subr.mxu0 0.0
  %1386 = vmatpush1.msra.mxu0 0.0
  %1387 = vmatprep.subr.mxu0 0.0
  %1388 = vmatpush1.msra.mxu0 0.0
  %1389 = vmatprep.subr.mxu0 0.0
  %1390 = vmatpush1.msra.mxu0 0.0
  %1391 = vmatprep.subr.mxu0 0.0
  %1392 = vmatpush1.msra.mxu0 0.0
  %1393 = vmatprep.subr.mxu0 0.0
  %1394 = vmatpush1.msra.mxu0 0.0
  %1395 = vmatprep.subr.mxu0 0.0
  %1396 = vmatpush1.msra.mxu0 0.0
  %1397 = vmatprep.subr.mxu0 0.0
  %1398 = vmatpush1.msra.mxu0 0.0
  %1399 = vmatprep.subr.mxu0 0.0
  %1400 = vmatpush1.msra.mxu0 0.0
  %1401 = vmatprep.subr.mxu0 0.0
  %1402 = vmatpush1.msra.mxu0 0.0
  %1403 = vmatprep.subr.mxu0 0.0
  %1404 = vmatpush1.msra.mxu0 0.0
  %1405 = vmatprep.subr.mxu0 0.0
  %1406 = vmatpush1.msra.mxu0 0.0
  %1407 = vmatprep.mubr.f32.mxu0 0.0
  %1408 = vmatmul.mubr.f32.gmra.mrb[0].mxu0 %v1328
  %v1409 = vpop.f32.mrb[0].mxu0
  %v1410 = vadd.f32 0.0, %v1409
  %v1411 = vpop.f32.mrb[0].mxu0
  %v1412 = vadd.f32 0.0, %v1411
  %1413 = vdwg.mxu0
  %1414 = vmatprep.subr.mxu0 %v1086
  %1415 = vmatpush1.msra.mxu0 %v1085
  %1416 = vmatprep.subr.mxu0 %v1090
  %1417 = vmatpush1.msra.mxu0 %v1089
  %1418 = vmatprep.subr.mxu0 %v1094
  %1419 = vmatpush1.msra.mxu0 %v1093
  %1420 = vmatprep.subr.mxu0 %v1098
  %1421 = vmatpush1.msra.mxu0 %v1097
  %1422 = vmatprep.subr.mxu0 %v1102
  %1423 = vmatpush1.msra.mxu0 %v1101
  %1424 = vmatprep.subr.mxu0 %v1106
  %1425 = vmatpush1.msra.mxu0 %v1105
  %1426 = vmatprep.subr.mxu0 %v1110
  %1427 = vmatpush1.msra.mxu0 %v1109
  %1428 = vmatprep.subr.mxu0 %v1114
  %1429 = vmatpush1.msra.mxu0 %v1113
  %1430 = vmatprep.subr.mxu0 %v1118
  %1431 = vmatpush1.msra.mxu0 %v1117
  %1432 = vmatprep.subr.mxu0 %v1122
  %1433 = vmatpush1.msra.mxu0 %v1121
  %1434 = vmatprep.subr.mxu0 %v1126
  %1435 = vmatpush1.msra.mxu0 %v1125
  %1436 = vmatprep.subr.mxu0 %v1130
  %1437 = vmatpush1.msra.mxu0 %v1129
  %1438 = vmatprep.subr.mxu0 %v1134
  %1439 = vmatpush1.msra.mxu0 %v1133
  %1440 = vmatprep.subr.mxu0 %v1138
  %1441 = vmatpush1.msra.mxu0 %v1137
  %1442 = vmatprep.subr.mxu0 %v1142
  %1443 = vmatpush1.msra.mxu0 %v1141
  %1444 = vmatprep.subr.mxu0 %v1146
  %1445 = vmatpush1.msra.mxu0 %v1145
  %1446 = vmatprep.subr.mxu0 0.0
  %1447 = vmatpush1.msra.mxu0 0.0
  %1448 = vmatprep.subr.mxu0 0.0
  %1449 = vmatpush1.msra.mxu0 0.0
  %1450 = vmatprep.subr.mxu0 0.0
  %1451 = vmatpush1.msra.mxu0 0.0
  %1452 = vmatprep.subr.mxu0 0.0
  %1453 = vmatpush1.msra.mxu0 0.0
  %1454 = vmatprep.subr.mxu0 0.0
  %1455 = vmatpush1.msra.mxu0 0.0
  %1456 = vmatprep.subr.mxu0 0.0
  %1457 = vmatpush1.msra.mxu0 0.0
  %1458 = vmatprep.subr.mxu0 0.0
  %1459 = vmatpush1.msra.mxu0 0.0
  %1460 = vmatprep.subr.mxu0 0.0
  %1461 = vmatpush1.msra.mxu0 0.0
  %1462 = vmatprep.subr.mxu0 0.0
  %1463 = vmatpush1.msra.mxu0 0.0
  %1464 = vmatprep.subr.mxu0 0.0
  %1465 = vmatpush1.msra.mxu0 0.0
  %1466 = vmatprep.subr.mxu0 0.0
  %1467 = vmatpush1.msra.mxu0 0.0
  %1468 = vmatprep.subr.mxu0 0.0
  %1469 = vmatpush1.msra.mxu0 0.0
  %1470 = vmatprep.subr.mxu0 0.0
  %1471 = vmatpush1.msra.mxu0 0.0
  %1472 = vmatprep.subr.mxu0 0.0
  %1473 = vmatpush1.msra.mxu0 0.0
  %1474 = vmatprep.subr.mxu0 0.0
  %1475 = vmatpush1.msra.mxu0 0.0
  %1476 = vmatprep.subr.mxu0 0.0
  %1477 = vmatpush1.msra.mxu0 0.0
  %1478 = vmatprep.mubr.f32.mxu0 0.0
  %1479 = vmatmul.mubr.f32.gmra.mrb[0].mxu0 %v1328
  %v1480 = vpop.f32.mrb[0].mxu0
  %v1481 = vadd.f32 0.0, %v1480
  %v1482 = vpop.f32.mrb[0].mxu0
  %v1483 = vadd.f32 0.0, %v1482
  %1484 = vdwg.mxu0
  %v1485 = vadd.f32 %v1339, %v1410
  %v1486 = vadd.f32 %v1340, %v1412
  %v1487 = vadd.f32 %v1341, %v1481
  %v1488 = vadd.f32 %v1342, %v1483
  %v1489 = vxor.u32 %v1485, 2147483648
  %v1490 = vmul.f32 %v1489, 1.442695
  %v1491 = vpow.pop %v1490
  %v1492 = vadd.f32 %v1491, 1.0
  %v1493 = vrcp.pop %v1492
  %v1494 = vmul.f32 1.0, %v1493
  %v1495 = vxor.u32 %v1486, 2147483648
  %v1496 = vmul.f32 %v1495, 1.442695
  %v1497 = vpow.pop %v1496
  %v1498 = vadd.f32 %v1497, 1.0
  %v1499 = vrcp.pop %v1498
  %v1500 = vmul.f32 1.0, %v1499
  %v1501 = vtanh.pop %v1487
  %v1502 = vxor.u32 %v1488, 2147483648
  %v1503 = vmul.f32 %v1502, 1.442695
  %v1504 = vpow.pop %v1503
  %v1505 = vadd.f32 %v1504, 1.0
  %v1506 = vrcp.pop %v1505
  %v1507 = vmul.f32 1.0, %v1506
  %v1508 = vmul.f32 %v1500, %v1326
  %v1509 = vmul.f32 %v1494, %v1501
  %v1510 = vadd.f32 %v1508, %v1509
  %v1511 = vtanh.pop %v1510
  %v1512 = vmul.f32 %v1507, %v1511
  %1513 = vst [vmem:[#allocation3 + $0x8] sm:$0xff] %v1512
  %1514 = vst [vmem:[#allocation4 + $0x30] sm:$0xff] %v1512
  %v1515 = vld [vmem:[#allocation2 + $0x40] sm:$0xff]
  %v1516 = vld [vmem:[#allocation2 + $0x48] sm:$0xff]
  %v1517 = vld [vmem:[#allocation2 + $0x50] sm:$0xff]
  %v1518 = vld [vmem:[#allocation2 + $0x58] sm:$0xff]
  %v1519 = vld [vmem:[#allocation2 + $0xa0] sm:$0xff]
  %v1520 = vld [vmem:[#allocation2 + $0xa8] sm:$0xff]
  %v1521 = vld [vmem:[#allocation2 + $0xb0] sm:$0xff]
  %v1522 = vld [vmem:[#allocation2 + $0xb8] sm:$0xff]
  %v1523 = vsel %vm1079, %v1515, %v1519
  %v1524 = vsel %vm1080, %v1516, %v1520
  %v1525 = vsel %vm1081, %v1517, %v1521
  %v1526 = vsel %vm1082, %v1518, %v1522
  %1527 = vmatprep.subr.mxu0 %v1084
  %1528 = vmatpush1.msra.mxu0 %v1083
  %1529 = vmatprep.subr.mxu0 %v1088
  %1530 = vmatpush1.msra.mxu0 %v1087
  %1531 = vmatprep.subr.mxu0 %v1092
  %1532 = vmatpush1.msra.mxu0 %v1091
  %1533 = vmatprep.subr.mxu0 %v1096
  %1534 = vmatpush1.msra.mxu0 %v1095
  %1535 = vmatprep.subr.mxu0 %v1100
  %1536 = vmatpush1.msra.mxu0 %v1099
  %1537 = vmatprep.subr.mxu0 %v1104
  %1538 = vmatpush1.msra.mxu0 %v1103
  %1539 = vmatprep.subr.mxu0 %v1108
  %1540 = vmatpush1.msra.mxu0 %v1107
  %1541 = vmatprep.subr.mxu0 %v1112
  %1542 = vmatpush1.msra.mxu0 %v1111
  %1543 = vmatprep.subr.mxu0 %v1116
  %1544 = vmatpush1.msra.mxu0 %v1115
  %1545 = vmatprep.subr.mxu0 %v1120
  %1546 = vmatpush1.msra.mxu0 %v1119
  %1547 = vmatprep.subr.mxu0 %v1124
  %1548 = vmatpush1.msra.mxu0 %v1123
  %1549 = vmatprep.subr.mxu0 %v1128
  %1550 = vmatpush1.msra.mxu0 %v1127
  %1551 = vmatprep.subr.mxu0 %v1132
  %1552 = vmatpush1.msra.mxu0 %v1131
  %1553 = vmatprep.subr.mxu0 %v1136
  %1554 = vmatpush1.msra.mxu0 %v1135
  %1555 = vmatprep.subr.mxu0 %v1140
  %1556 = vmatpush1.msra.mxu0 %v1139
  %1557 = vmatprep.subr.mxu0 %v1144
  %1558 = vmatpush1.msra.mxu0 %v1143
  %1559 = vmatprep.subr.mxu0 0.0
  %1560 = vmatpush1.msra.mxu0 0.0
  %1561 = vmatprep.subr.mxu0 0.0
  %1562 = vmatpush1.msra.mxu0 0.0
  %1563 = vmatprep.subr.mxu0 0.0
  %1564 = vmatpush1.msra.mxu0 0.0
  %1565 = vmatprep.subr.mxu0 0.0
  %1566 = vmatpush1.msra.mxu0 0.0
  %1567 = vmatprep.subr.mxu0 0.0
  %1568 = vmatpush1.msra.mxu0 0.0
  %1569 = vmatprep.subr.mxu0 0.0
  %1570 = vmatpush1.msra.mxu0 0.0
  %1571 = vmatprep.subr.mxu0 0.0
  %1572 = vmatpush1.msra.mxu0 0.0
  %1573 = vmatprep.subr.mxu0 0.0
  %1574 = vmatpush1.msra.mxu0 0.0
  %1575 = vmatprep.subr.mxu0 0.0
  %1576 = vmatpush1.msra.mxu0 0.0
  %1577 = vmatprep.subr.mxu0 0.0
  %1578 = vmatpush1.msra.mxu0 0.0
  %1579 = vmatprep.subr.mxu0 0.0
  %1580 = vmatpush1.msra.mxu0 0.0
  %1581 = vmatprep.subr.mxu0 0.0
  %1582 = vmatpush1.msra.mxu0 0.0
  %1583 = vmatprep.subr.mxu0 0.0
  %1584 = vmatpush1.msra.mxu0 0.0
  %1585 = vmatprep.subr.mxu0 0.0
  %1586 = vmatpush1.msra.mxu0 0.0
  %1587 = vmatprep.subr.mxu0 0.0
  %1588 = vmatpush1.msra.mxu0 0.0
  %1589 = vmatprep.subr.mxu0 0.0
  %1590 = vmatpush1.msra.mxu0 0.0
  %1591 = vmatprep.mubr.f32.mxu0 0.0
  %1592 = vmatmul.mubr.f32.gmra.mrb[0].mxu0 %v1512
  %v1593 = vpop.f32.mrb[0].mxu0
  %v1594 = vadd.f32 0.0, %v1593
  %v1595 = vpop.f32.mrb[0].mxu0
  %v1596 = vadd.f32 0.0, %v1595
  %1597 = vdwg.mxu0
  %1598 = vmatprep.subr.mxu0 %v1086
  %1599 = vmatpush1.msra.mxu0 %v1085
  %1600 = vmatprep.subr.mxu0 %v1090
  %1601 = vmatpush1.msra.mxu0 %v1089
  %1602 = vmatprep.subr.mxu0 %v1094
  %1603 = vmatpush1.msra.mxu0 %v1093
  %1604 = vmatprep.subr.mxu0 %v1098
  %1605 = vmatpush1.msra.mxu0 %v1097
  %1606 = vmatprep.subr.mxu0 %v1102
  %1607 = vmatpush1.msra.mxu0 %v1101
  %1608 = vmatprep.subr.mxu0 %v1106
  %1609 = vmatpush1.msra.mxu0 %v1105
  %1610 = vmatprep.subr.mxu0 %v1110
  %1611 = vmatpush1.msra.mxu0 %v1109
  %1612 = vmatprep.subr.mxu0 %v1114
  %1613 = vmatpush1.msra.mxu0 %v1113
  %1614 = vmatprep.subr.mxu0 %v1118
  %1615 = vmatpush1.msra.mxu0 %v1117
  %1616 = vmatprep.subr.mxu0 %v1122
  %1617 = vmatpush1.msra.mxu0 %v1121
  %1618 = vmatprep.subr.mxu0 %v1126
  %1619 = vmatpush1.msra.mxu0 %v1125
  %1620 = vmatprep.subr.mxu0 %v1130
  %1621 = vmatpush1.msra.mxu0 %v1129
  %1622 = vmatprep.subr.mxu0 %v1134
  %1623 = vmatpush1.msra.mxu0 %v1133
  %1624 = vmatprep.subr.mxu0 %v1138
  %1625 = vmatpush1.msra.mxu0 %v1137
  %1626 = vmatprep.subr.mxu0 %v1142
  %1627 = vmatpush1.msra.mxu0 %v1141
  %1628 = vmatprep.subr.mxu0 %v1146
  %1629 = vmatpush1.msra.mxu0 %v1145
  %1630 = vmatprep.subr.mxu0 0.0
  %1631 = vmatpush1.msra.mxu0 0.0
  %1632 = vmatprep.subr.mxu0 0.0
  %1633 = vmatpush1.msra.mxu0 0.0
  %1634 = vmatprep.subr.mxu0 0.0
  %1635 = vmatpush1.msra.mxu0 0.0
  %1636 = vmatprep.subr.mxu0 0.0
  %1637 = vmatpush1.msra.mxu0 0.0
  %1638 = vmatprep.subr.mxu0 0.0
  %1639 = vmatpush1.msra.mxu0 0.0
  %1640 = vmatprep.subr.mxu0 0.0
  %1641 = vmatpush1.msra.mxu0 0.0
  %1642 = vmatprep.subr.mxu0 0.0
  %1643 = vmatpush1.msra.mxu0 0.0
  %1644 = vmatprep.subr.mxu0 0.0
  %1645 = vmatpush1.msra.mxu0 0.0
  %1646 = vmatprep.subr.mxu0 0.0
  %1647 = vmatpush1.msra.mxu0 0.0
  %1648 = vmatprep.subr.mxu0 0.0
  %1649 = vmatpush1.msra.mxu0 0.0
  %1650 = vmatprep.subr.mxu0 0.0
  %1651 = vmatpush1.msra.mxu0 0.0
  %1652 = vmatprep.subr.mxu0 0.0
  %1653 = vmatpush1.msra.mxu0 0.0
  %1654 = vmatprep.subr.mxu0 0.0
  %1655 = vmatpush1.msra.mxu0 0.0
  %1656 = vmatprep.subr.mxu0 0.0
  %1657 = vmatpush1.msra.mxu0 0.0
  %1658 = vmatprep.subr.mxu0 0.0
  %1659 = vmatpush1.msra.mxu0 0.0
  %1660 = vmatprep.subr.mxu0 0.0
  %1661 = vmatpush1.msra.mxu0 0.0
  %1662 = vmatprep.mubr.f32.mxu0 0.0
  %1663 = vmatmul.mubr.f32.gmra.mrb[0].mxu0 %v1512
  %v1664 = vpop.f32.mrb[0].mxu0
  %v1665 = vadd.f32 0.0, %v1664
  %v1666 = vpop.f32.mrb[0].mxu0
  %v1667 = vadd.f32 0.0, %v1666
  %1668 = vdwg.mxu0
  %v1669 = vadd.f32 %v1523, %v1594
  %v1670 = vadd.f32 %v1524, %v1596
  %v1671 = vadd.f32 %v1525, %v1665
  %v1672 = vadd.f32 %v1526, %v1667
  %v1673 = vxor.u32 %v1669, 2147483648
  %v1674 = vmul.f32 %v1673, 1.442695
  %v1675 = vpow.pop %v1674
  %v1676 = vadd.f32 %v1675, 1.0
  %v1677 = vrcp.pop %v1676
  %v1678 = vmul.f32 1.0, %v1677
  %v1679 = vxor.u32 %v1670, 2147483648
  %v1680 = vmul.f32 %v1679, 1.442695
  %v1681 = vpow.pop %v1680
  %v1682 = vadd.f32 %v1681, 1.0
  %v1683 = vrcp.pop %v1682
  %v1684 = vmul.f32 1.0, %v1683
  %v1685 = vtanh.pop %v1671
  %v1686 = vxor.u32 %v1672, 2147483648
  %v1687 = vmul.f32 %v1686, 1.442695
  %v1688 = vpow.pop %v1687
  %v1689 = vadd.f32 %v1688, 1.0
  %v1690 = vrcp.pop %v1689
  %v1691 = vmul.f32 1.0, %v1690
  %v1692 = vmul.f32 %v1684, %v1510
  %v1693 = vmul.f32 %v1678, %v1685
  %v1694 = vadd.f32 %v1692, %v1693
  %v1695 = vtanh.pop %v1694
  %v1696 = vmul.f32 %v1691, %v1695
  %1697 = vst [vmem:[#allocation3 + $0x10] sm:$0xff] %v1696
  %1698 = vst [vmem:[#allocation4 + $0x28] sm:$0xff] %v1696
  %v1699 = vld [vmem:[#allocation2 + $0x60] sm:$0xff]
  %v1700 = vld [vmem:[#allocation2 + $0x68] sm:$0xff]
  %v1701 = vld [vmem:[#allocation2 + $0x70] sm:$0xff]
  %v1702 = vld [vmem:[#allocation2 + $0x78] sm:$0xff]
  %v1703 = vld [vmem:[#allocation2 + $0x80] sm:$0xff]
  %v1704 = vld [vmem:[#allocation2 + $0x88] sm:$0xff]
  %v1705 = vld [vmem:[#allocation2 + $0x90] sm:$0xff]
  %v1706 = vld [vmem:[#allocation2 + $0x98] sm:$0xff]
  %v1707 = vsel %vm1079, %v1699, %v1703
  %v1708 = vsel %vm1080, %v1700, %v1704
  %v1709 = vsel %vm1081, %v1701, %v1705
  %v1710 = vsel %vm1082, %v1702, %v1706
  %1711 = vmatprep.subr.mxu0 %v1084
  %1712 = vmatpush1.msra.mxu0 %v1083
  %1713 = vmatprep.subr.mxu0 %v1088
  %1714 = vmatpush1.msra.mxu0 %v1087
  %1715 = vmatprep.subr.mxu0 %v1092
  %1716 = vmatpush1.msra.mxu0 %v1091
  %1717 = vmatprep.subr.mxu0 %v1096
  %1718 = vmatpush1.msra.mxu0 %v1095
  %1719 = vmatprep.subr.mxu0 %v1100
  %1720 = vmatpush1.msra.mxu0 %v1099
  %1721 = vmatprep.subr.mxu0 %v1104
  %1722 = vmatpush1.msra.mxu0 %v1103
  %1723 = vmatprep.subr.mxu0 %v1108
  %1724 = vmatpush1.msra.mxu0 %v1107
  %1725 = vmatprep.subr.mxu0 %v1112
  %1726 = vmatpush1.msra.mxu0 %v1111
  %1727 = vmatprep.subr.mxu0 %v1116
  %1728 = vmatpush1.msra.mxu0 %v1115
  %1729 = vmatprep.subr.mxu0 %v1120
  %1730 = vmatpush1.msra.mxu0 %v1119
  %1731 = vmatprep.subr.mxu0 %v1124
  %1732 = vmatpush1.msra.mxu0 %v1123
  %1733 = vmatprep.subr.mxu0 %v1128
  %1734 = vmatpush1.msra.mxu0 %v1127
  %1735 = vmatprep.subr.mxu0 %v1132
  %1736 = vmatpush1.msra.mxu0 %v1131
  %1737 = vmatprep.subr.mxu0 %v1136
  %1738 = vmatpush1.msra.mxu0 %v1135
  %1739 = vmatprep.subr.mxu0 %v1140
  %1740 = vmatpush1.msra.mxu0 %v1139
  %1741 = vmatprep.subr.mxu0 %v1144
  %1742 = vmatpush1.msra.mxu0 %v1143
  %1743 = vmatprep.subr.mxu0 0.0
  %1744 = vmatpush1.msra.mxu0 0.0
  %1745 = vmatprep.subr.mxu0 0.0
  %1746 = vmatpush1.msra.mxu0 0.0
  %1747 = vmatprep.subr.mxu0 0.0
  %1748 = vmatpush1.msra.mxu0 0.0
  %1749 = vmatprep.subr.mxu0 0.0
  %1750 = vmatpush1.msra.mxu0 0.0
  %1751 = vmatprep.subr.mxu0 0.0
  %1752 = vmatpush1.msra.mxu0 0.0
  %1753 = vmatprep.subr.mxu0 0.0
  %1754 = vmatpush1.msra.mxu0 0.0
  %1755 = vmatprep.subr.mxu0 0.0
  %1756 = vmatpush1.msra.mxu0 0.0
  %1757 = vmatprep.subr.mxu0 0.0
  %1758 = vmatpush1.msra.mxu0 0.0
  %1759 = vmatprep.subr.mxu0 0.0
  %1760 = vmatpush1.msra.mxu0 0.0
  %1761 = vmatprep.subr.mxu0 0.0
  %1762 = vmatpush1.msra.mxu0 0.0
  %1763 = vmatprep.subr.mxu0 0.0
  %1764 = vmatpush1.msra.mxu0 0.0
  %1765 = vmatprep.subr.mxu0 0.0
  %1766 = vmatpush1.msra.mxu0 0.0
  %1767 = vmatprep.subr.mxu0 0.0
  %1768 = vmatpush1.msra.mxu0 0.0
  %1769 = vmatprep.subr.mxu0 0.0
  %1770 = vmatpush1.msra.mxu0 0.0
  %1771 = vmatprep.subr.mxu0 0.0
  %1772 = vmatpush1.msra.mxu0 0.0
  %1773 = vmatprep.subr.mxu0 0.0
  %1774 = vmatpush1.msra.mxu0 0.0
  %1775 = vmatprep.mubr.f32.mxu0 0.0
  %1776 = vmatmul.mubr.f32.gmra.mrb[0].mxu0 %v1696
  %v1777 = vpop.f32.mrb[0].mxu0
  %v1778 = vadd.f32 0.0, %v1777
  %v1779 = vpop.f32.mrb[0].mxu0
  %v1780 = vadd.f32 0.0, %v1779
  %1781 = vdwg.mxu0
  %1782 = vmatprep.subr.mxu0 %v1086
  %1783 = vmatpush1.msra.mxu0 %v1085
  %1784 = vmatprep.subr.mxu0 %v1090
  %1785 = vmatpush1.msra.mxu0 %v1089
  %1786 = vmatprep.subr.mxu0 %v1094
  %1787 = vmatpush1.msra.mxu0 %v1093
  %1788 = vmatprep.subr.mxu0 %v1098
  %1789 = vmatpush1.msra.mxu0 %v1097
  %1790 = vmatprep.subr.mxu0 %v1102
  %1791 = vmatpush1.msra.mxu0 %v1101
  %1792 = vmatprep.subr.mxu0 %v1106
  %1793 = vmatpush1.msra.mxu0 %v1105
  %1794 = vmatprep.subr.mxu0 %v1110
  %1795 = vmatpush1.msra.mxu0 %v1109
  %1796 = vmatprep.subr.mxu0 %v1114
  %1797 = vmatpush1.msra.mxu0 %v1113
  %1798 = vmatprep.subr.mxu0 %v1118
  %1799 = vmatpush1.msra.mxu0 %v1117
  %1800 = vmatprep.subr.mxu0 %v1122
  %1801 = vmatpush1.msra.mxu0 %v1121
  %1802 = vmatprep.subr.mxu0 %v1126
  %1803 = vmatpush1.msra.mxu0 %v1125
  %1804 = vmatprep.subr.mxu0 %v1130
  %1805 = vmatpush1.msra.mxu0 %v1129
  %1806 = vmatprep.subr.mxu0 %v1134
  %1807 = vmatpush1.msra.mxu0 %v1133
  %1808 = vmatprep.subr.mxu0 %v1138
  %1809 = vmatpush1.msra.mxu0 %v1137
  %1810 = vmatprep.subr.mxu0 %v1142
  %1811 = vmatpush1.msra.mxu0 %v1141
  %1812 = vmatprep.subr.mxu0 %v1146
  %1813 = vmatpush1.msra.mxu0 %v1145
  %1814 = vmatprep.subr.mxu0 0.0
  %1815 = vmatpush1.msra.mxu0 0.0
  %1816 = vmatprep.subr.mxu0 0.0
  %1817 = vmatpush1.msra.mxu0 0.0
  %1818 = vmatprep.subr.mxu0 0.0
  %1819 = vmatpush1.msra.mxu0 0.0
  %1820 = vmatprep.subr.mxu0 0.0
  %1821 = vmatpush1.msra.mxu0 0.0
  %1822 = vmatprep.subr.mxu0 0.0
  %1823 = vmatpush1.msra.mxu0 0.0
  %1824 = vmatprep.subr.mxu0 0.0
  %1825 = vmatpush1.msra.mxu0 0.0
  %1826 = vmatprep.subr.mxu0 0.0
  %1827 = vmatpush1.msra.mxu0 0.0
  %1828 = vmatprep.subr.mxu0 0.0
  %1829 = vmatpush1.msra.mxu0 0.0
  %1830 = vmatprep.subr.mxu0 0.0
  %1831 = vmatpush1.msra.mxu0 0.0
  %1832 = vmatprep.subr.mxu0 0.0
  %1833 = vmatpush1.msra.mxu0 0.0
  %1834 = vmatprep.subr.mxu0 0.0
  %1835 = vmatpush1.msra.mxu0 0.0
  %1836 = vmatprep.subr.mxu0 0.0
  %1837 = vmatpush1.msra.mxu0 0.0
  %1838 = vmatprep.subr.mxu0 0.0
  %1839 = vmatpush1.msra.mxu0 0.0
  %1840 = vmatprep.subr.mxu0 0.0
  %1841 = vmatpush1.msra.mxu0 0.0
  %1842 = vmatprep.subr.mxu0 0.0
  %1843 = vmatpush1.msra.mxu0 0.0
  %1844 = vmatprep.subr.mxu0 0.0
  %1845 = vmatpush1.msra.mxu0 0.0
  %1846 = vmatprep.mubr.f32.mxu0 0.0
  %1847 = vmatmul.mubr.f32.gmra.mrb[0].mxu0 %v1696
  %v1848 = vpop.f32.mrb[0].mxu0
  %v1849 = vadd.f32 0.0, %v1848
  %v1850 = vpop.f32.mrb[0].mxu0
  %v1851 = vadd.f32 0.0, %v1850
  %1852 = vdwg.mxu0
  %v1853 = vadd.f32 %v1707, %v1778
  %v1854 = vadd.f32 %v1708, %v1780
  %v1855 = vadd.f32 %v1709, %v1849
  %v1856 = vadd.f32 %v1710, %v1851
  %v1857 = vxor.u32 %v1853, 2147483648
  %v1858 = vmul.f32 %v1857, 1.442695
  %v1859 = vpow.pop %v1858
  %v1860 = vadd.f32 %v1859, 1.0
  %v1861 = vrcp.pop %v1860
  %v1862 = vmul.f32 1.0, %v1861
  %v1863 = vxor.u32 %v1854, 2147483648
  %v1864 = vmul.f32 %v1863, 1.442695
  %v1865 = vpow.pop %v1864
  %v1866 = vadd.f32 %v1865, 1.0
  %v1867 = vrcp.pop %v1866
  %v1868 = vmul.f32 1.0, %v1867
  %v1869 = vtanh.pop %v1855
  %v1870 = vxor.u32 %v1856, 2147483648
  %v1871 = vmul.f32 %v1870, 1.442695
  %v1872 = vpow.pop %v1871
  %v1873 = vadd.f32 %v1872, 1.0
  %v1874 = vrcp.pop %v1873
  %v1875 = vmul.f32 1.0, %v1874
  %v1876 = vmul.f32 %v1868, %v1694
  %v1877 = vmul.f32 %v1862, %v1869
  %v1878 = vadd.f32 %v1876, %v1877
  %v1879 = vtanh.pop %v1878
  %v1880 = vmul.f32 %v1875, %v1879
  %1881 = vst [vmem:[#allocation3 + $0x18] sm:$0xff] %v1880
  %1882 = vst [vmem:[#allocation4 + $0x20] sm:$0xff] %v1880
  %v1883 = vld [vmem:[#allocation2 + $0x80] sm:$0xff]
  %v1884 = vld [vmem:[#allocation2 + $0x88] sm:$0xff]
  %v1885 = vld [vmem:[#allocation2 + $0x90] sm:$0xff]
  %v1886 = vld [vmem:[#allocation2 + $0x98] sm:$0xff]
  %v1887 = vld [vmem:[#allocation2 + $0x60] sm:$0xff]
  %v1888 = vld [vmem:[#allocation2 + $0x68] sm:$0xff]
  %v1889 = vld [vmem:[#allocation2 + $0x70] sm:$0xff]
  %v1890 = vld [vmem:[#allocation2 + $0x78] sm:$0xff]
  %v1891 = vsel %vm1079, %v1883, %v1887
  %v1892 = vsel %vm1080, %v1884, %v1888
  %v1893 = vsel %vm1081, %v1885, %v1889
  %v1894 = vsel %vm1082, %v1886, %v1890
  %1895 = vmatprep.subr.mxu0 %v1084
  %1896 = vmatpush1.msra.mxu0 %v1083
  %1897 = vmatprep.subr.mxu0 %v1088
  %1898 = vmatpush1.msra.mxu0 %v1087
  %1899 = vmatprep.subr.mxu0 %v1092
  %1900 = vmatpush1.msra.mxu0 %v1091
  %1901 = vmatprep.subr.mxu0 %v1096
  %1902 = vmatpush1.msra.mxu0 %v1095
  %1903 = vmatprep.subr.mxu0 %v1100
  %1904 = vmatpush1.msra.mxu0 %v1099
  %1905 = vmatprep.subr.mxu0 %v1104
  %1906 = vmatpush1.msra.mxu0 %v1103
  %1907 = vmatprep.subr.mxu0 %v1108
  %1908 = vmatpush1.msra.mxu0 %v1107
  %1909 = vmatprep.subr.mxu0 %v1112
  %1910 = vmatpush1.msra.mxu0 %v1111
  %1911 = vmatprep.subr.mxu0 %v1116
  %1912 = vmatpush1.msra.mxu0 %v1115
  %1913 = vmatprep.subr.mxu0 %v1120
  %1914 = vmatpush1.msra.mxu0 %v1119
  %1915 = vmatprep.subr.mxu0 %v1124
  %1916 = vmatpush1.msra.mxu0 %v1123
  %1917 = vmatprep.subr.mxu0 %v1128
  %1918 = vmatpush1.msra.mxu0 %v1127
  %1919 = vmatprep.subr.mxu0 %v1132
  %1920 = vmatpush1.msra.mxu0 %v1131
  %1921 = vmatprep.subr.mxu0 %v1136
  %1922 = vmatpush1.msra.mxu0 %v1135
  %1923 = vmatprep.subr.mxu0 %v1140
  %1924 = vmatpush1.msra.mxu0 %v1139
  %1925 = vmatprep.subr.mxu0 %v1144
  %1926 = vmatpush1.msra.mxu0 %v1143
  %1927 = vmatprep.subr.mxu0 0.0
  %1928 = vmatpush1.msra.mxu0 0.0
  %1929 = vmatprep.subr.mxu0 0.0
  %1930 = vmatpush1.msra.mxu0 0.0
  %1931 = vmatprep.subr.mxu0 0.0
  %1932 = vmatpush1.msra.mxu0 0.0
  %1933 = vmatprep.subr.mxu0 0.0
  %1934 = vmatpush1.msra.mxu0 0.0
  %1935 = vmatprep.subr.mxu0 0.0
  %1936 = vmatpush1.msra.mxu0 0.0
  %1937 = vmatprep.subr.mxu0 0.0
  %1938 = vmatpush1.msra.mxu0 0.0
  %1939 = vmatprep.subr.mxu0 0.0
  %1940 = vmatpush1.msra.mxu0 0.0
  %1941 = vmatprep.subr.mxu0 0.0
  %1942 = vmatpush1.msra.mxu0 0.0
  %1943 = vmatprep.subr.mxu0 0.0
  %1944 = vmatpush1.msra.mxu0 0.0
  %1945 = vmatprep.subr.mxu0 0.0
  %1946 = vmatpush1.msra.mxu0 0.0
  %1947 = vmatprep.subr.mxu0 0.0
  %1948 = vmatpush1.msra.mxu0 0.0
  %1949 = vmatprep.subr.mxu0 0.0
  %1950 = vmatpush1.msra.mxu0 0.0
  %1951 = vmatprep.subr.mxu0 0.0
  %1952 = vmatpush1.msra.mxu0 0.0
  %1953 = vmatprep.subr.mxu0 0.0
  %1954 = vmatpush1.msra.mxu0 0.0
  %1955 = vmatprep.subr.mxu0 0.0
  %1956 = vmatpush1.msra.mxu0 0.0
  %1957 = vmatprep.subr.mxu0 0.0
  %1958 = vmatpush1.msra.mxu0 0.0
  %1959 = vmatprep.mubr.f32.mxu0 0.0
  %1960 = vmatmul.mubr.f32.gmra.mrb[0].mxu0 %v1880
  %v1961 = vpop.f32.mrb[0].mxu0
  %v1962 = vadd.f32 0.0, %v1961
  %v1963 = vpop.f32.mrb[0].mxu0
  %v1964 = vadd.f32 0.0, %v1963
  %1965 = vdwg.mxu0
  %1966 = vmatprep.subr.mxu0 %v1086
  %1967 = vmatpush1.msra.mxu0 %v1085
  %1968 = vmatprep.subr.mxu0 %v1090
  %1969 = vmatpush1.msra.mxu0 %v1089
  %1970 = vmatprep.subr.mxu0 %v1094
  %1971 = vmatpush1.msra.mxu0 %v1093
  %1972 = vmatprep.subr.mxu0 %v1098
  %1973 = vmatpush1.msra.mxu0 %v1097
  %1974 = vmatprep.subr.mxu0 %v1102
  %1975 = vmatpush1.msra.mxu0 %v1101
  %1976 = vmatprep.subr.mxu0 %v1106
  %1977 = vmatpush1.msra.mxu0 %v1105
  %1978 = vmatprep.subr.mxu0 %v1110
  %1979 = vmatpush1.msra.mxu0 %v1109
  %1980 = vmatprep.subr.mxu0 %v1114
  %1981 = vmatpush1.msra.mxu0 %v1113
  %1982 = vmatprep.subr.mxu0 %v1118
  %1983 = vmatpush1.msra.mxu0 %v1117
  %1984 = vmatprep.subr.mxu0 %v1122
  %1985 = vmatpush1.msra.mxu0 %v1121
  %1986 = vmatprep.subr.mxu0 %v1126
  %1987 = vmatpush1.msra.mxu0 %v1125
  %1988 = vmatprep.subr.mxu0 %v1130
  %1989 = vmatpush1.msra.mxu0 %v1129
  %1990 = vmatprep.subr.mxu0 %v1134
  %1991 = vmatpush1.msra.mxu0 %v1133
  %1992 = vmatprep.subr.mxu0 %v1138
  %1993 = vmatpush1.msra.mxu0 %v1137
  %1994 = vmatprep.subr.mxu0 %v1142
  %1995 = vmatpush1.msra.mxu0 %v1141
  %1996 = vmatprep.subr.mxu0 %v1146
  %1997 = vmatpush1.msra.mxu0 %v1145
  %1998 = vmatprep.subr.mxu0 0.0
  %1999 = vmatpush1.msra.mxu0 0.0
  %2000 = vmatprep.subr.mxu0 0.0
  %2001 = vmatpush1.msra.mxu0 0.0
  %2002 = vmatprep.subr.mxu0 0.0
  %2003 = vmatpush1.msra.mxu0 0.0
  %2004 = vmatprep.subr.mxu0 0.0
  %2005 = vmatpush1.msra.mxu0 0.0
  %2006 = vmatprep.subr.mxu0 0.0
  %2007 = vmatpush1.msra.mxu0 0.0
  %2008 = vmatprep.subr.mxu0 0.0
  %2009 = vmatpush1.msra.mxu0 0.0
  %2010 = vmatprep.subr.mxu0 0.0
  %2011 = vmatpush1.msra.mxu0 0.0
  %2012 = vmatprep.subr.mxu0 0.0
  %2013 = vmatpush1.msra.mxu0 0.0
  %2014 = vmatprep.subr.mxu0 0.0
  %2015 = vmatpush1.msra.mxu0 0.0
  %2016 = vmatprep.subr.mxu0 0.0
  %2017 = vmatpush1.msra.mxu0 0.0
  %2018 = vmatprep.subr.mxu0 0.0
  %2019 = vmatpush1.msra.mxu0 0.0
  %2020 = vmatprep.subr.mxu0 0.0
  %2021 = vmatpush1.msra.mxu0 0.0
  %2022 = vmatprep.subr.mxu0 0.0
  %2023 = vmatpush1.msra.mxu0 0.0
  %2024 = vmatprep.subr.mxu0 0.0
  %2025 = vmatpush1.msra.mxu0 0.0
  %2026 = vmatprep.subr.mxu0 0.0
  %2027 = vmatpush1.msra.mxu0 0.0
  %2028 = vmatprep.subr.mxu0 0.0
  %2029 = vmatpush1.msra.mxu0 0.0
  %2030 = vmatprep.mubr.f32.mxu0 0.0
  %2031 = vmatmul.mubr.f32.gmra.mrb[0].mxu0 %v1880
  %v2032 = vpop.f32.mrb[0].mxu0
  %v2033 = vadd.f32 0.0, %v2032
  %v2034 = vpop.f32.mrb[0].mxu0
  %v2035 = vadd.f32 0.0, %v2034
  %2036 = vdwg.mxu0
  %v2037 = vadd.f32 %v1891, %v1962
  %v2038 = vadd.f32 %v1892, %v1964
  %v2039 = vadd.f32 %v1893, %v2033
  %v2040 = vadd.f32 %v1894, %v2035
  %v2041 = vxor.u32 %v2037, 2147483648
  %v2042 = vmul.f32 %v2041, 1.442695
  %v2043 = vpow.pop %v2042
  %v2044 = vadd.f32 %v2043, 1.0
  %v2045 = vrcp.pop %v2044
  %v2046 = vmul.f32 1.0, %v2045
  %v2047 = vxor.u32 %v2038, 2147483648
  %v2048 = vmul.f32 %v2047, 1.442695
  %v2049 = vpow.pop %v2048
  %v2050 = vadd.f32 %v2049, 1.0
  %v2051 = vrcp.pop %v2050
  %v2052 = vmul.f32 1.0, %v2051
  %v2053 = vtanh.pop %v2039
  %v2054 = vxor.u32 %v2040, 2147483648
  %v2055 = vmul.f32 %v2054, 1.442695
  %v2056 = vpow.pop %v2055
  %v2057 = vadd.f32 %v2056, 1.0
  %v2058 = vrcp.pop %v2057
  %v2059 = vmul.f32 1.0, %v2058
  %v2060 = vmul.f32 %v2052, %v1878
  %v2061 = vmul.f32 %v2046, %v2053
  %v2062 = vadd.f32 %v2060, %v2061
  %v2063 = vtanh.pop %v2062
  %v2064 = vmul.f32 %v2059, %v2063
  %2065 = vst [vmem:[#allocation3 + $0x20] sm:$0xff] %v2064
  %2066 = vst [vmem:[#allocation4 + $0x18] sm:$0xff] %v2064
  %v2067 = vld [vmem:[#allocation2 + $0xa0] sm:$0xff]
  %v2068 = vld [vmem:[#allocation2 + $0xa8] sm:$0xff]
  %v2069 = vld [vmem:[#allocation2 + $0xb0] sm:$0xff]
  %v2070 = vld [vmem:[#allocation2 + $0xb8] sm:$0xff]
  %v2071 = vld [vmem:[#allocation2 + $0x40] sm:$0xff]
  %v2072 = vld [vmem:[#allocation2 + $0x48] sm:$0xff]
  %v2073 = vld [vmem:[#allocation2 + $0x50] sm:$0xff]
  %v2074 = vld [vmem:[#allocation2 + $0x58] sm:$0xff]
  %v2075 = vsel %vm1079, %v2067, %v2071
  %v2076 = vsel %vm1080, %v2068, %v2072
  %v2077 = vsel %vm1081, %v2069, %v2073
  %v2078 = vsel %vm1082, %v2070, %v2074
  %2079 = vmatprep.subr.mxu0 %v1084
  %2080 = vmatpush1.msra.mxu0 %v1083
  %2081 = vmatprep.subr.mxu0 %v1088
  %2082 = vmatpush1.msra.mxu0 %v1087
  %2083 = vmatprep.subr.mxu0 %v1092
  %2084 = vmatpush1.msra.mxu0 %v1091
  %2085 = vmatprep.subr.mxu0 %v1096
  %2086 = vmatpush1.msra.mxu0 %v1095
  %2087 = vmatprep.subr.mxu0 %v1100
  %2088 = vmatpush1.msra.mxu0 %v1099
  %2089 = vmatprep.subr.mxu0 %v1104
  %2090 = vmatpush1.msra.mxu0 %v1103
  %2091 = vmatprep.subr.mxu0 %v1108
  %2092 = vmatpush1.msra.mxu0 %v1107
  %2093 = vmatprep.subr.mxu0 %v1112
  %2094 = vmatpush1.msra.mxu0 %v1111
  %2095 = vmatprep.subr.mxu0 %v1116
  %2096 = vmatpush1.msra.mxu0 %v1115
  %2097 = vmatprep.subr.mxu0 %v1120
  %2098 = vmatpush1.msra.mxu0 %v1119
  %2099 = vmatprep.subr.mxu0 %v1124
  %2100 = vmatpush1.msra.mxu0 %v1123
  %2101 = vmatprep.subr.mxu0 %v1128
  %2102 = vmatpush1.msra.mxu0 %v1127
  %2103 = vmatprep.subr.mxu0 %v1132
  %2104 = vmatpush1.msra.mxu0 %v1131
  %2105 = vmatprep.subr.mxu0 %v1136
  %2106 = vmatpush1.msra.mxu0 %v1135
  %2107 = vmatprep.subr.mxu0 %v1140
  %2108 = vmatpush1.msra.mxu0 %v1139
  %2109 = vmatprep.subr.mxu0 %v1144
  %2110 = vmatpush1.msra.mxu0 %v1143
  %2111 = vmatprep.subr.mxu0 0.0
  %2112 = vmatpush1.msra.mxu0 0.0
  %2113 = vmatprep.subr.mxu0 0.0
  %2114 = vmatpush1.msra.mxu0 0.0
  %2115 = vmatprep.subr.mxu0 0.0
  %2116 = vmatpush1.msra.mxu0 0.0
  %2117 = vmatprep.subr.mxu0 0.0
  %2118 = vmatpush1.msra.mxu0 0.0
  %2119 = vmatprep.subr.mxu0 0.0
  %2120 = vmatpush1.msra.mxu0 0.0
  %2121 = vmatprep.subr.mxu0 0.0
  %2122 = vmatpush1.msra.mxu0 0.0
  %2123 = vmatprep.subr.mxu0 0.0
  %2124 = vmatpush1.msra.mxu0 0.0
  %2125 = vmatprep.subr.mxu0 0.0
  %2126 = vmatpush1.msra.mxu0 0.0
  %2127 = vmatprep.subr.mxu0 0.0
  %2128 = vmatpush1.msra.mxu0 0.0
  %2129 = vmatprep.subr.mxu0 0.0
  %2130 = vmatpush1.msra.mxu0 0.0
  %2131 = vmatprep.subr.mxu0 0.0
  %2132 = vmatpush1.msra.mxu0 0.0
  %2133 = vmatprep.subr.mxu0 0.0
  %2134 = vmatpush1.msra.mxu0 0.0
  %2135 = vmatprep.subr.mxu0 0.0
  %2136 = vmatpush1.msra.mxu0 0.0
  %2137 = vmatprep.subr.mxu0 0.0
  %2138 = vmatpush1.msra.mxu0 0.0
  %2139 = vmatprep.subr.mxu0 0.0
  %2140 = vmatpush1.msra.mxu0 0.0
  %2141 = vmatprep.subr.mxu0 0.0
  %2142 = vmatpush1.msra.mxu0 0.0
  %2143 = vmatprep.mubr.f32.mxu0 0.0
  %2144 = vmatmul.mubr.f32.gmra.mrb[0].mxu0 %v2064
  %v2145 = vpop.f32.mrb[0].mxu0
  %v2146 = vadd.f32 0.0, %v2145
  %v2147 = vpop.f32.mrb[0].mxu0
  %v2148 = vadd.f32 0.0, %v2147
  %2149 = vdwg.mxu0
  %2150 = vmatprep.subr.mxu0 %v1086
  %2151 = vmatpush1.msra.mxu0 %v1085
  %2152 = vmatprep.subr.mxu0 %v1090
  %2153 = vmatpush1.msra.mxu0 %v1089
  %2154 = vmatprep.subr.mxu0 %v1094
  %2155 = vmatpush1.msra.mxu0 %v1093
  %2156 = vmatprep.subr.mxu0 %v1098
  %2157 = vmatpush1.msra.mxu0 %v1097
  %2158 = vmatprep.subr.mxu0 %v1102
  %2159 = vmatpush1.msra.mxu0 %v1101
  %2160 = vmatprep.subr.mxu0 %v1106
  %2161 = vmatpush1.msra.mxu0 %v1105
  %2162 = vmatprep.subr.mxu0 %v1110
  %2163 = vmatpush1.msra.mxu0 %v1109
  %2164 = vmatprep.subr.mxu0 %v1114
  %2165 = vmatpush1.msra.mxu0 %v1113
  %2166 = vmatprep.subr.mxu0 %v1118
  %2167 = vmatpush1.msra.mxu0 %v1117
  %2168 = vmatprep.subr.mxu0 %v1122
  %2169 = vmatpush1.msra.mxu0 %v1121
  %2170 = vmatprep.subr.mxu0 %v1126
  %2171 = vmatpush1.msra.mxu0 %v1125
  %2172 = vmatprep.subr.mxu0 %v1130
  %2173 = vmatpush1.msra.mxu0 %v1129
  %2174 = vmatprep.subr.mxu0 %v1134
  %2175 = vmatpush1.msra.mxu0 %v1133
  %2176 = vmatprep.subr.mxu0 %v1138
  %2177 = vmatpush1.msra.mxu0 %v1137
  %2178 = vmatprep.subr.mxu0 %v1142
  %2179 = vmatpush1.msra.mxu0 %v1141
  %2180 = vmatprep.subr.mxu0 %v1146
  %2181 = vmatpush1.msra.mxu0 %v1145
  %2182 = vmatprep.subr.mxu0 0.0
  %2183 = vmatpush1.msra.mxu0 0.0
  %2184 = vmatprep.subr.mxu0 0.0
  %2185 = vmatpush1.msra.mxu0 0.0
  %2186 = vmatprep.subr.mxu0 0.0
  %2187 = vmatpush1.msra.mxu0 0.0
  %2188 = vmatprep.subr.mxu0 0.0
  %2189 = vmatpush1.msra.mxu0 0.0
  %2190 = vmatprep.subr.mxu0 0.0
  %2191 = vmatpush1.msra.mxu0 0.0
  %2192 = vmatprep.subr.mxu0 0.0
  %2193 = vmatpush1.msra.mxu0 0.0
  %2194 = vmatprep.subr.mxu0 0.0
  %2195 = vmatpush1.msra.mxu0 0.0
  %2196 = vmatprep.subr.mxu0 0.0
  %2197 = vmatpush1.msra.mxu0 0.0
  %2198 = vmatprep.subr.mxu0 0.0
  %2199 = vmatpush1.msra.mxu0 0.0
  %2200 = vmatprep.subr.mxu0 0.0
  %2201 = vmatpush1.msra.mxu0 0.0
  %2202 = vmatprep.subr.mxu0 0.0
  %2203 = vmatpush1.msra.mxu0 0.0
  %2204 = vmatprep.subr.mxu0 0.0
  %2205 = vmatpush1.msra.mxu0 0.0
  %2206 = vmatprep.subr.mxu0 0.0
  %2207 = vmatpush1.msra.mxu0 0.0
  %2208 = vmatprep.subr.mxu0 0.0
  %2209 = vmatpush1.msra.mxu0 0.0
  %2210 = vmatprep.subr.mxu0 0.0
  %2211 = vmatpush1.msra.mxu0 0.0
  %2212 = vmatprep.subr.mxu0 0.0
  %2213 = vmatpush1.msra.mxu0 0.0
  %2214 = vmatprep.mubr.f32.mxu0 0.0
  %2215 = vmatmul.mubr.f32.gmra.mrb[0].mxu0 %v2064
  %v2216 = vpop.f32.mrb[0].mxu0
  %v2217 = vadd.f32 0.0, %v2216
  %v2218 = vpop.f32.mrb[0].mxu0
  %v2219 = vadd.f32 0.0, %v2218
  %2220 = vdwg.mxu0
  %v2221 = vadd.f32 %v2075, %v2146
  %v2222 = vadd.f32 %v2076, %v2148
  %v2223 = vadd.f32 %v2077, %v2217
  %v2224 = vadd.f32 %v2078, %v2219
  %v2225 = vxor.u32 %v2221, 2147483648
  %v2226 = vmul.f32 %v2225, 1.442695
  %v2227 = vpow.pop %v2226
  %v2228 = vadd.f32 %v2227, 1.0
  %v2229 = vrcp.pop %v2228
  %v2230 = vmul.f32 1.0, %v2229
  %v2231 = vxor.u32 %v2222, 2147483648
  %v2232 = vmul.f32 %v2231, 1.442695
  %v2233 = vpow.pop %v2232
  %v2234 = vadd.f32 %v2233, 1.0
  %v2235 = vrcp.pop %v2234
  %v2236 = vmul.f32 1.0, %v2235
  %v2237 = vtanh.pop %v2223
  %v2238 = vxor.u32 %v2224, 2147483648
  %v2239 = vmul.f32 %v2238, 1.442695
  %v2240 = vpow.pop %v2239
  %v2241 = vadd.f32 %v2240, 1.0
  %v2242 = vrcp.pop %v2241
  %v2243 = vmul.f32 1.0, %v2242
  %v2244 = vmul.f32 %v2236, %v2062
  %v2245 = vmul.f32 %v2230, %v2237
  %v2246 = vadd.f32 %v2244, %v2245
  %v2247 = vtanh.pop %v2246
  %v2248 = vmul.f32 %v2243, %v2247
  %2249 = vst [vmem:[#allocation3 + $0x28] sm:$0xff] %v2248
  %2250 = vst [vmem:[#allocation4 + $0x10] sm:$0xff] %v2248
  %v2251 = vld [vmem:[#allocation2 + $0xc0] sm:$0xff]
  %v2252 = vld [vmem:[#allocation2 + $0xc8] sm:$0xff]
  %v2253 = vld [vmem:[#allocation2 + $0xd0] sm:$0xff]
  %v2254 = vld [vmem:[#allocation2 + $0xd8] sm:$0xff]
  %v2255 = vld [vmem:[#allocation2 + $0x20] sm:$0xff]
  %v2256 = vld [vmem:[#allocation2 + $0x28] sm:$0xff]
  %v2257 = vld [vmem:[#allocation2 + $0x30] sm:$0xff]
  %v2258 = vld [vmem:[#allocation2 + $0x38] sm:$0xff]
  %v2259 = vsel %vm1079, %v2251, %v2255
  %v2260 = vsel %vm1080, %v2252, %v2256
  %v2261 = vsel %vm1081, %v2253, %v2257
  %v2262 = vsel %vm1082, %v2254, %v2258
  %2263 = vmatprep.subr.mxu0 %v1084
  %2264 = vmatpush1.msra.mxu0 %v1083
  %2265 = vmatprep.subr.mxu0 %v1088
  %2266 = vmatpush1.msra.mxu0 %v1087
  %2267 = vmatprep.subr.mxu0 %v1092
  %2268 = vmatpush1.msra.mxu0 %v1091
  %2269 = vmatprep.subr.mxu0 %v1096
  %2270 = vmatpush1.msra.mxu0 %v1095
  %2271 = vmatprep.subr.mxu0 %v1100
  %2272 = vmatpush1.msra.mxu0 %v1099
  %2273 = vmatprep.subr.mxu0 %v1104
  %2274 = vmatpush1.msra.mxu0 %v1103
  %2275 = vmatprep.subr.mxu0 %v1108
  %2276 = vmatpush1.msra.mxu0 %v1107
  %2277 = vmatprep.subr.mxu0 %v1112
  %2278 = vmatpush1.msra.mxu0 %v1111
  %2279 = vmatprep.subr.mxu0 %v1116
  %2280 = vmatpush1.msra.mxu0 %v1115
  %2281 = vmatprep.subr.mxu0 %v1120
  %2282 = vmatpush1.msra.mxu0 %v1119
  %2283 = vmatprep.subr.mxu0 %v1124
  %2284 = vmatpush1.msra.mxu0 %v1123
  %2285 = vmatprep.subr.mxu0 %v1128
  %2286 = vmatpush1.msra.mxu0 %v1127
  %2287 = vmatprep.subr.mxu0 %v1132
  %2288 = vmatpush1.msra.mxu0 %v1131
  %2289 = vmatprep.subr.mxu0 %v1136
  %2290 = vmatpush1.msra.mxu0 %v1135
  %2291 = vmatprep.subr.mxu0 %v1140
  %2292 = vmatpush1.msra.mxu0 %v1139
  %2293 = vmatprep.subr.mxu0 %v1144
  %2294 = vmatpush1.msra.mxu0 %v1143
  %2295 = vmatprep.subr.mxu0 0.0
  %2296 = vmatpush1.msra.mxu0 0.0
  %2297 = vmatprep.subr.mxu0 0.0
  %2298 = vmatpush1.msra.mxu0 0.0
  %2299 = vmatprep.subr.mxu0 0.0
  %2300 = vmatpush1.msra.mxu0 0.0
  %2301 = vmatprep.subr.mxu0 0.0
  %2302 = vmatpush1.msra.mxu0 0.0
  %2303 = vmatprep.subr.mxu0 0.0
  %2304 = vmatpush1.msra.mxu0 0.0
  %2305 = vmatprep.subr.mxu0 0.0
  %2306 = vmatpush1.msra.mxu0 0.0
  %2307 = vmatprep.subr.mxu0 0.0
  %2308 = vmatpush1.msra.mxu0 0.0
  %2309 = vmatprep.subr.mxu0 0.0
  %2310 = vmatpush1.msra.mxu0 0.0
  %2311 = vmatprep.subr.mxu0 0.0
  %2312 = vmatpush1.msra.mxu0 0.0
  %2313 = vmatprep.subr.mxu0 0.0
  %2314 = vmatpush1.msra.mxu0 0.0
  %2315 = vmatprep.subr.mxu0 0.0
  %2316 = vmatpush1.msra.mxu0 0.0
  %2317 = vmatprep.subr.mxu0 0.0
  %2318 = vmatpush1.msra.mxu0 0.0
  %2319 = vmatprep.subr.mxu0 0.0
  %2320 = vmatpush1.msra.mxu0 0.0
  %2321 = vmatprep.subr.mxu0 0.0
  %2322 = vmatpush1.msra.mxu0 0.0
  %2323 = vmatprep.subr.mxu0 0.0
  %2324 = vmatpush1.msra.mxu0 0.0
  %2325 = vmatprep.subr.mxu0 0.0
  %2326 = vmatpush1.msra.mxu0 0.0
  %2327 = vmatprep.mubr.f32.mxu0 0.0
  %2328 = vmatmul.mubr.f32.gmra.mrb[0].mxu0 %v2248
  %v2329 = vpop.f32.mrb[0].mxu0
  %v2330 = vadd.f32 0.0, %v2329
  %v2331 = vpop.f32.mrb[0].mxu0
  %v2332 = vadd.f32 0.0, %v2331
  %2333 = vdwg.mxu0
  %2334 = vmatprep.subr.mxu0 %v1086
  %2335 = vmatpush1.msra.mxu0 %v1085
  %2336 = vmatprep.subr.mxu0 %v1090
  %2337 = vmatpush1.msra.mxu0 %v1089
  %2338 = vmatprep.subr.mxu0 %v1094
  %2339 = vmatpush1.msra.mxu0 %v1093
  %2340 = vmatprep.subr.mxu0 %v1098
  %2341 = vmatpush1.msra.mxu0 %v1097
  %2342 = vmatprep.subr.mxu0 %v1102
  %2343 = vmatpush1.msra.mxu0 %v1101
  %2344 = vmatprep.subr.mxu0 %v1106
  %2345 = vmatpush1.msra.mxu0 %v1105
  %2346 = vmatprep.subr.mxu0 %v1110
  %2347 = vmatpush1.msra.mxu0 %v1109
  %2348 = vmatprep.subr.mxu0 %v1114
  %2349 = vmatpush1.msra.mxu0 %v1113
  %2350 = vmatprep.subr.mxu0 %v1118
  %2351 = vmatpush1.msra.mxu0 %v1117
  %2352 = vmatprep.subr.mxu0 %v1122
  %2353 = vmatpush1.msra.mxu0 %v1121
  %2354 = vmatprep.subr.mxu0 %v1126
  %2355 = vmatpush1.msra.mxu0 %v1125
  %2356 = vmatprep.subr.mxu0 %v1130
  %2357 = vmatpush1.msra.mxu0 %v1129
  %2358 = vmatprep.subr.mxu0 %v1134
  %2359 = vmatpush1.msra.mxu0 %v1133
  %2360 = vmatprep.subr.mxu0 %v1138
  %2361 = vmatpush1.msra.mxu0 %v1137
  %2362 = vmatprep.subr.mxu0 %v1142
  %2363 = vmatpush1.msra.mxu0 %v1141
  %2364 = vmatprep.subr.mxu0 %v1146
  %2365 = vmatpush1.msra.mxu0 %v1145
  %2366 = vmatprep.subr.mxu0 0.0
  %2367 = vmatpush1.msra.mxu0 0.0
  %2368 = vmatprep.subr.mxu0 0.0
  %2369 = vmatpush1.msra.mxu0 0.0
  %2370 = vmatprep.subr.mxu0 0.0
  %2371 = vmatpush1.msra.mxu0 0.0
  %2372 = vmatprep.subr.mxu0 0.0
  %2373 = vmatpush1.msra.mxu0 0.0
  %2374 = vmatprep.subr.mxu0 0.0
  %2375 = vmatpush1.msra.mxu0 0.0
  %2376 = vmatprep.subr.mxu0 0.0
  %2377 = vmatpush1.msra.mxu0 0.0
  %2378 = vmatprep.subr.mxu0 0.0
  %2379 = vmatpush1.msra.mxu0 0.0
  %2380 = vmatprep.subr.mxu0 0.0
  %2381 = vmatpush1.msra.mxu0 0.0
  %2382 = vmatprep.subr.mxu0 0.0
  %2383 = vmatpush1.msra.mxu0 0.0
  %2384 = vmatprep.subr.mxu0 0.0
  %2385 = vmatpush1.msra.mxu0 0.0
  %2386 = vmatprep.subr.mxu0 0.0
  %2387 = vmatpush1.msra.mxu0 0.0
  %2388 = vmatprep.subr.mxu0 0.0
  %2389 = vmatpush1.msra.mxu0 0.0
  %2390 = vmatprep.subr.mxu0 0.0
  %2391 = vmatpush1.msra.mxu0 0.0
  %2392 = vmatprep.subr.mxu0 0.0
  %2393 = vmatpush1.msra.mxu0 0.0
  %2394 = vmatprep.subr.mxu0 0.0
  %2395 = vmatpush1.msra.mxu0 0.0
  %2396 = vmatprep.subr.mxu0 0.0
  %2397 = vmatpush1.msra.mxu0 0.0
  %2398 = vmatprep.mubr.f32.mxu0 0.0
  %2399 = vmatmul.mubr.f32.gmra.mrb[0].mxu0 %v2248
  %v2400 = vpop.f32.mrb[0].mxu0
  %v2401 = vadd.f32 0.0, %v2400
  %v2402 = vpop.f32.mrb[0].mxu0
  %v2403 = vadd.f32 0.0, %v2402
  %2404 = vdwg.mxu0
  %v2405 = vadd.f32 %v2259, %v2330
  %v2406 = vadd.f32 %v2260, %v2332
  %v2407 = vadd.f32 %v2261, %v2401
  %v2408 = vadd.f32 %v2262, %v2403
  %v2409 = vxor.u32 %v2405, 2147483648
  %v2410 = vmul.f32 %v2409, 1.442695
  %v2411 = vpow.pop %v2410
  %v2412 = vadd.f32 %v2411, 1.0
  %v2413 = vrcp.pop %v2412
  %v2414 = vmul.f32 1.0, %v2413
  %v2415 = vxor.u32 %v2406, 2147483648
  %v2416 = vmul.f32 %v2415, 1.442695
  %v2417 = vpow.pop %v2416
  %v2418 = vadd.f32 %v2417, 1.0
  %v2419 = vrcp.pop %v2418
  %v2420 = vmul.f32 1.0, %v2419
  %v2421 = vtanh.pop %v2407
  %v2422 = vxor.u32 %v2408, 2147483648
  %v2423 = vmul.f32 %v2422, 1.442695
  %v2424 = vpow.pop %v2423
  %v2425 = vadd.f32 %v2424, 1.0
  %v2426 = vrcp.pop %v2425
  %v2427 = vmul.f32 1.0, %v2426
  %v2428 = vmul.f32 %v2420, %v2246
  %v2429 = vmul.f32 %v2414, %v2421
  %v2430 = vadd.f32 %v2428, %v2429
  %v2431 = vtanh.pop %v2430
  %v2432 = vmul.f32 %v2427, %v2431
  %2433 = vst [vmem:[#allocation3 + $0x30] sm:$0xff] %v2432
  %2434 = vst [vmem:[#allocation4 + $0x8] sm:$0xff] %v2432
  %v2435 = vld [vmem:[#allocation2 + $0xe0] sm:$0xff]
  %v2436 = vld [vmem:[#allocation2 + $0xe8] sm:$0xff]
  %v2437 = vld [vmem:[#allocation2 + $0xf0] sm:$0xff]
  %v2438 = vld [vmem:[#allocation2 + $0xf8] sm:$0xff]
  %v2439 = vld [vmem:[#allocation2] sm:$0xff]
  %v2440 = vld [vmem:[#allocation2 + $0x8] sm:$0xff]
  %v2441 = vld [vmem:[#allocation2 + $0x10] sm:$0xff]
  %v2442 = vld [vmem:[#allocation2 + $0x18] sm:$0xff]
  %v2443 = vsel %vm1079, %v2435, %v2439
  %v2444 = vsel %vm1080, %v2436, %v2440
  %v2445 = vsel %vm1081, %v2437, %v2441
  %v2446 = vsel %vm1082, %v2438, %v2442
  %2447 = vmatprep.subr.mxu0 %v1084
  %2448 = vmatpush1.msra.mxu0 %v1083
  %2449 = vmatprep.subr.mxu0 %v1088
  %2450 = vmatpush1.msra.mxu0 %v1087
  %2451 = vmatprep.subr.mxu0 %v1092
  %2452 = vmatpush1.msra.mxu0 %v1091
  %2453 = vmatprep.subr.mxu0 %v1096
  %2454 = vmatpush1.msra.mxu0 %v1095
  %2455 = vmatprep.subr.mxu0 %v1100
  %2456 = vmatpush1.msra.mxu0 %v1099
  %2457 = vmatprep.subr.mxu0 %v1104
  %2458 = vmatpush1.msra.mxu0 %v1103
  %2459 = vmatprep.subr.mxu0 %v1108
  %2460 = vmatpush1.msra.mxu0 %v1107
  %2461 = vmatprep.subr.mxu0 %v1112
  %2462 = vmatpush1.msra.mxu0 %v1111
  %2463 = vmatprep.subr.mxu0 %v1116
  %2464 = vmatpush1.msra.mxu0 %v1115
  %2465 = vmatprep.subr.mxu0 %v1120
  %2466 = vmatpush1.msra.mxu0 %v1119
  %2467 = vmatprep.subr.mxu0 %v1124
  %2468 = vmatpush1.msra.mxu0 %v1123
  %2469 = vmatprep.subr.mxu0 %v1128
  %2470 = vmatpush1.msra.mxu0 %v1127
  %2471 = vmatprep.subr.mxu0 %v1132
  %2472 = vmatpush1.msra.mxu0 %v1131
  %2473 = vmatprep.subr.mxu0 %v1136
  %2474 = vmatpush1.msra.mxu0 %v1135
  %2475 = vmatprep.subr.mxu0 %v1140
  %2476 = vmatpush1.msra.mxu0 %v1139
  %2477 = vmatprep.subr.mxu0 %v1144
  %2478 = vmatpush1.msra.mxu0 %v1143
  %2479 = vmatprep.subr.mxu0 0.0
  %2480 = vmatpush1.msra.mxu0 0.0
  %2481 = vmatprep.subr.mxu0 0.0
  %2482 = vmatpush1.msra.mxu0 0.0
  %2483 = vmatprep.subr.mxu0 0.0
  %2484 = vmatpush1.msra.mxu0 0.0
  %2485 = vmatprep.subr.mxu0 0.0
  %2486 = vmatpush1.msra.mxu0 0.0
  %2487 = vmatprep.subr.mxu0 0.0
  %2488 = vmatpush1.msra.mxu0 0.0
  %2489 = vmatprep.subr.mxu0 0.0
  %2490 = vmatpush1.msra.mxu0 0.0
  %2491 = vmatprep.subr.mxu0 0.0
  %2492 = vmatpush1.msra.mxu0 0.0
  %2493 = vmatprep.subr.mxu0 0.0
  %2494 = vmatpush1.msra.mxu0 0.0
  %2495 = vmatprep.subr.mxu0 0.0
  %2496 = vmatpush1.msra.mxu0 0.0
  %2497 = vmatprep.subr.mxu0 0.0
  %2498 = vmatpush1.msra.mxu0 0.0
  %2499 = vmatprep.subr.mxu0 0.0
  %2500 = vmatpush1.msra.mxu0 0.0
  %2501 = vmatprep.subr.mxu0 0.0
  %2502 = vmatpush1.msra.mxu0 0.0
  %2503 = vmatprep.subr.mxu0 0.0
  %2504 = vmatpush1.msra.mxu0 0.0
  %2505 = vmatprep.subr.mxu0 0.0
  %2506 = vmatpush1.msra.mxu0 0.0
  %2507 = vmatprep.subr.mxu0 0.0
  %2508 = vmatpush1.msra.mxu0 0.0
  %2509 = vmatprep.subr.mxu0 0.0
  %2510 = vmatpush1.msra.mxu0 0.0
  %2511 = vmatprep.mubr.f32.mxu0 0.0
  %2512 = vmatmul.mubr.f32.gmra.mrb[0].mxu0 %v2432
  %v2513 = vpop.f32.mrb[0].mxu0
  %v2514 = vadd.f32 0.0, %v2513
  %v2515 = vpop.f32.mrb[0].mxu0
  %v2516 = vadd.f32 0.0, %v2515
  %2517 = vdwg.mxu0
  %2518 = vmatprep.subr.mxu0 %v1086
  %2519 = vmatpush1.msra.mxu0 %v1085
  %2520 = vmatprep.subr.mxu0 %v1090
  %2521 = vmatpush1.msra.mxu0 %v1089
  %2522 = vmatprep.subr.mxu0 %v1094
  %2523 = vmatpush1.msra.mxu0 %v1093
  %2524 = vmatprep.subr.mxu0 %v1098
  %2525 = vmatpush1.msra.mxu0 %v1097
  %2526 = vmatprep.subr.mxu0 %v1102
  %2527 = vmatpush1.msra.mxu0 %v1101
  %2528 = vmatprep.subr.mxu0 %v1106
  %2529 = vmatpush1.msra.mxu0 %v1105
  %2530 = vmatprep.subr.mxu0 %v1110
  %2531 = vmatpush1.msra.mxu0 %v1109
  %2532 = vmatprep.subr.mxu0 %v1114
  %2533 = vmatpush1.msra.mxu0 %v1113
  %2534 = vmatprep.subr.mxu0 %v1118
  %2535 = vmatpush1.msra.mxu0 %v1117
  %2536 = vmatprep.subr.mxu0 %v1122
  %2537 = vmatpush1.msra.mxu0 %v1121
  %2538 = vmatprep.subr.mxu0 %v1126
  %2539 = vmatpush1.msra.mxu0 %v1125
  %2540 = vmatprep.subr.mxu0 %v1130
  %2541 = vmatpush1.msra.mxu0 %v1129
  %2542 = vmatprep.subr.mxu0 %v1134
  %2543 = vmatpush1.msra.mxu0 %v1133
  %2544 = vmatprep.subr.mxu0 %v1138
  %2545 = vmatpush1.msra.mxu0 %v1137
  %2546 = vmatprep.subr.mxu0 %v1142
  %2547 = vmatpush1.msra.mxu0 %v1141
  %2548 = vmatprep.subr.mxu0 %v1146
  %2549 = vmatpush1.msra.mxu0 %v1145
  %2550 = vmatprep.subr.mxu0 0.0
  %2551 = vmatpush1.msra.mxu0 0.0
  %2552 = vmatprep.subr.mxu0 0.0
  %2553 = vmatpush1.msra.mxu0 0.0
  %2554 = vmatprep.subr.mxu0 0.0
  %2555 = vmatpush1.msra.mxu0 0.0
  %2556 = vmatprep.subr.mxu0 0.0
  %2557 = vmatpush1.msra.mxu0 0.0
  %2558 = vmatprep.subr.mxu0 0.0
  %2559 = vmatpush1.msra.mxu0 0.0
  %2560 = vmatprep.subr.mxu0 0.0
  %2561 = vmatpush1.msra.mxu0 0.0
  %2562 = vmatprep.subr.mxu0 0.0
  %2563 = vmatpush1.msra.mxu0 0.0
  %2564 = vmatprep.subr.mxu0 0.0
  %2565 = vmatpush1.msra.mxu0 0.0
  %2566 = vmatprep.subr.mxu0 0.0
  %2567 = vmatpush1.msra.mxu0 0.0
  %2568 = vmatprep.subr.mxu0 0.0
  %2569 = vmatpush1.msra.mxu0 0.0
  %2570 = vmatprep.subr.mxu0 0.0
  %2571 = vmatpush1.msra.mxu0 0.0
  %2572 = vmatprep.subr.mxu0 0.0
  %2573 = vmatpush1.msra.mxu0 0.0
  %2574 = vmatprep.subr.mxu0 0.0
  %2575 = vmatpush1.msra.mxu0 0.0
  %2576 = vmatprep.subr.mxu0 0.0
  %2577 = vmatpush1.msra.mxu0 0.0
  %2578 = vmatprep.subr.mxu0 0.0
  %2579 = vmatpush1.msra.mxu0 0.0
  %2580 = vmatprep.subr.mxu0 0.0
  %2581 = vmatpush1.msra.mxu0 0.0
  %2582 = vmatprep.mubr.f32.mxu0 0.0
  %2583 = vmatmul.mubr.f32.gmra.mrb[0].mxu0 %v2432
  %v2584 = vpop.f32.mrb[0].mxu0
  %v2585 = vadd.f32 0.0, %v2584
  %v2586 = vpop.f32.mrb[0].mxu0
  %v2587 = vadd.f32 0.0, %v2586
  %2588 = vdwg.mxu0
  %v2589 = vadd.f32 %v2443, %v2514
  %v2590 = vadd.f32 %v2444, %v2516
  %v2591 = vadd.f32 %v2445, %v2585
  %v2592 = vadd.f32 %v2446, %v2587
  %v2593 = vxor.u32 %v2589, 2147483648
  %v2594 = vmul.f32 %v2593, 1.442695
  %v2595 = vpow.pop %v2594
  %v2596 = vadd.f32 %v2595, 1.0
  %v2597 = vrcp.pop %v2596
  %v2598 = vmul.f32 1.0, %v2597
  %v2599 = vxor.u32 %v2590, 2147483648
  %v2600 = vmul.f32 %v2599, 1.442695
  %v2601 = vpow.pop %v2600
  %v2602 = vadd.f32 %v2601, 1.0
  %v2603 = vrcp.pop %v2602
  %v2604 = vmul.f32 1.0, %v2603
  %v2605 = vtanh.pop %v2591
  %v2606 = vxor.u32 %v2592, 2147483648
  %v2607 = vmul.f32 %v2606, 1.442695
  %v2608 = vpow.pop %v2607
  %v2609 = vadd.f32 %v2608, 1.0
  %v2610 = vrcp.pop %v2609
  %v2611 = vmul.f32 1.0, %v2610
  %v2612 = vmul.f32 %v2604, %v2430
  %v2613 = vmul.f32 %v2598, %v2605
  %v2614 = vadd.f32 %v2612, %v2613
  %v2615 = vtanh.pop %v2614
  %v2616 = vmul.f32 %v2611, %v2615
  %2617 = vst [vmem:[#allocation3 + $0x38] sm:$0xff] %v2616
  %2618 = vst [vmem:[#allocation4] sm:$0xff] %v2616
  %vm2619 = vcmp.lt.s32.totalorder %v1027, 32
  %v2620 = vld [vmem:[#allocation3] sm:$0xff]
  %v2621 = vld [vmem:[#allocation3 + $0x8] sm:$0xff]
  %v2622 = vld [vmem:[#allocation3 + $0x10] sm:$0xff]
  %v2623 = vld [vmem:[#allocation3 + $0x18] sm:$0xff]
  %v2624 = vld [vmem:[#allocation3 + $0x20] sm:$0xff]
  %v2625 = vld [vmem:[#allocation3 + $0x28] sm:$0xff]
  %v2626 = vld [vmem:[#allocation3 + $0x30] sm:$0xff]
  %v2627 = vld [vmem:[#allocation3 + $0x38] sm:$0xff]
  %v2628 = vld [vmem:[#allocation4] sm:$0xff]
  %v2629 = vld [vmem:[#allocation4 + $0x8] sm:$0xff]
  %v2630 = vld [vmem:[#allocation4 + $0x10] sm:$0xff]
  %v2631 = vld [vmem:[#allocation4 + $0x18] sm:$0xff]
  %v2632 = vld [vmem:[#allocation4 + $0x20] sm:$0xff]
  %v2633 = vld [vmem:[#allocation4 + $0x28] sm:$0xff]
  %v2634 = vld [vmem:[#allocation4 + $0x30] sm:$0xff]
  %v2635 = vld [vmem:[#allocation4 + $0x38] sm:$0xff]
  %v2636 = vsel %vm2619, %v2620, %v2628
  %v2637 = vsel %vm2619, %v2621, %v2629
  %v2638 = vsel %vm2619, %v2622, %v2630
  %v2639 = vsel %vm2619, %v2623, %v2631
  %v2640 = vsel %vm2619, %v2624, %v2632
  %v2641 = vsel %vm2619, %v2625, %v2633
  %v2642 = vsel %vm2619, %v2626, %v2634
  %v2643 = vsel %vm2619, %v2627, %v2635
  %v2644 = vtanh.pop %v2636
  %v2645 = vtanh.pop %v2637
  %v2646 = vtanh.pop %v2638
  %v2647 = vtanh.pop %v2639
  %v2648 = vtanh.pop %v2640
  %v2649 = vtanh.pop %v2641
  %v2650 = vtanh.pop %v2642
  %v2651 = vtanh.pop %v2643
  %v2652 = vpack.c.bf16 %v2645, %v2644
  %v2653 = vpack.c.bf16 %v2647, %v2646
  %v2654 = vpack.c.bf16 %v2649, %v2648
  %v2655 = vpack.c.bf16 %v2651, %v2650
  %v2656 = vld [vmem:[%s4] sm:$0xf]
  %v2657 = vld [vmem:[%s4 + $0x4] sm:$0xf]
  %v2658 = vld [vmem:[%s4 + $0x8] sm:$0xf]
  %v2659 = vld [vmem:[%s4 + $0xc] sm:$0xf]
  %v2660 = vld [vmem:[%s4 + $0x10] sm:$0xf]
  %v2661 = vld [vmem:[%s4 + $0x14] sm:$0xf]
  %v2662 = vld [vmem:[%s4 + $0x18] sm:$0xf]
  %v2663 = vld [vmem:[%s4 + $0x1c] sm:$0xf]
  %v2664 = vld [vmem:[%s4 + $0x20] sm:$0xf]
  %v2665 = vld [vmem:[%s4 + $0x24] sm:$0xf]
  %v2666 = vld [vmem:[%s4 + $0x28] sm:$0xf]
  %v2667 = vld [vmem:[%s4 + $0x2c] sm:$0xf]
  %v2668 = vld [vmem:[%s4 + $0x30] sm:$0xf]
  %v2669 = vld [vmem:[%s4 + $0x34] sm:$0xf]
  %v2670 = vld [vmem:[%s4 + $0x38] sm:$0xf]
  %v2671 = vld [vmem:[%s4 + $0x3c] sm:$0xf]
  %v2672 = vld [vmem:[%s5] sm:$0x1]
  %v2674 = vlaneseq
  %v2675 = vshrl.u32 %v2674, 7
  %v2676 = vsub.s32 0, %v2675
  %v2677 = vrot.slane %v2672, %v2676
  %v2695 = vunpack.c.l.b16 %v2656
  %v2696 = vunpack.c.l.b16 %v2657
  %v2697 = vunpack.c.l.b16 %v2658
  %v2698 = vunpack.c.l.b16 %v2659
  %v2699 = vunpack.c.l.b16 %v2660
  %v2700 = vunpack.c.l.b16 %v2661
  %v2701 = vunpack.c.l.b16 %v2662
  %v2702 = vunpack.c.l.b16 %v2663
  %v2703 = vunpack.c.l.b16 %v2664
  %v2704 = vunpack.c.l.b16 %v2665
  %v2705 = vunpack.c.l.b16 %v2666
  %v2706 = vunpack.c.l.b16 %v2667
  %v2707 = vunpack.c.l.b16 %v2668
  %v2708 = vunpack.c.l.b16 %v2669
  %v2709 = vunpack.c.l.b16 %v2670
  %v2710 = vunpack.c.l.b16 %v2671
  %v2711 = vpack.c.b16 %v2696, %v2695
  %v2712 = vpack.c.b16 %v2698, %v2697
  %v2713 = vpack.c.b16 %v2700, %v2699
  %v2714 = vpack.c.b16 %v2702, %v2701
  %v2715 = vpack.c.b16 %v2704, %v2703
  %v2716 = vpack.c.b16 %v2706, %v2705
  %v2717 = vpack.c.b16 %v2708, %v2707
  %v2718 = vpack.c.b16 %v2710, %v2709
  %2727 = vmatprep.subr.bf16.mxu0 0
  %2728 = vmatpush1.bf16.msra.mxu0 %v2711
  %2729 = vmatprep.subr.bf16.mxu0 0
  %2730 = vmatpush1.bf16.msra.mxu0 %v2712
  %2731 = vmatprep.subr.bf16.mxu0 0
  %2732 = vmatpush1.bf16.msra.mxu0 %v2713
  %2733 = vmatprep.subr.bf16.mxu0 0
  %2734 = vmatpush1.bf16.msra.mxu0 %v2714
  %2735 = vmatprep.subr.bf16.mxu0 0
  %2736 = vmatpush1.bf16.msra.mxu0 %v2715
  %2737 = vmatprep.subr.bf16.mxu0 0
  %2738 = vmatpush1.bf16.msra.mxu0 %v2716
  %2739 = vmatprep.subr.bf16.mxu0 0
  %2740 = vmatpush1.bf16.msra.mxu0 %v2717
  %2741 = vmatprep.subr.bf16.mxu0 0
  %2742 = vmatpush1.bf16.msra.mxu0 %v2718
  %2743 = vmatprep.subr.bf16.mxu0 0
  %2744 = vmatpush1.bf16.msra.mxu0 0
  %2745 = vmatprep.subr.bf16.mxu0 0
  %2746 = vmatpush1.bf16.msra.mxu0 0
  %2747 = vmatprep.subr.bf16.mxu0 0
  %2748 = vmatpush1.bf16.msra.mxu0 0
  %2749 = vmatprep.subr.bf16.mxu0 0
  %2750 = vmatpush1.bf16.msra.mxu0 0
  %2751 = vmatprep.subr.bf16.mxu0 0
  %2752 = vmatpush1.bf16.msra.mxu0 0
  %2753 = vmatprep.subr.bf16.mxu0 0
  %2754 = vmatpush1.bf16.msra.mxu0 0
  %2755 = vmatprep.subr.bf16.mxu0 0
  %2756 = vmatpush1.bf16.msra.mxu0 0
  %2757 = vmatprep.subr.bf16.mxu0 0
  %2758 = vmatpush1.bf16.msra.mxu0 0
  %2759 = vmatprep.mubr.bf16.mxu0 0
  %2760 = vmatmul.mubr.bf16.gmra.mrb[0].mxu0 %v2652
  %v2761 = vpop.f32.mrb[0].mxu0
  %v2762 = vadd.f32 %v2677, %v2761
  %v2763 = vpop.f32.mrb[0].mxu0
  %v2764 = vpop.f32.mrb[0].mxu0
  %v2765 = vadd.f32 %v2677, %v2764
  %v2766 = vpop.f32.mrb[0].mxu0
  %2767 = vmatprep.mubr.bf16.mxu0 0
  %2768 = vmatmul.mubr.bf16.gmra.mrb[0].mxu0 %v2653
  %v2769 = vpop.f32.mrb[0].mxu0
  %v2770 = vadd.f32 %v2677, %v2769
  %v2771 = vpop.f32.mrb[0].mxu0
  %v2772 = vpop.f32.mrb[0].mxu0
  %v2773 = vadd.f32 %v2677, %v2772
  %v2774 = vpop.f32.mrb[0].mxu0
  %2775 = vmatprep.mubr.bf16.mxu0 0
  %2776 = vmatmul.mubr.bf16.gmra.mrb[0].mxu0 %v2654
  %v2777 = vpop.f32.mrb[0].mxu0
  %v2778 = vadd.f32 %v2677, %v2777
  %v2779 = vpop.f32.mrb[0].mxu0
  %v2780 = vpop.f32.mrb[0].mxu0
  %v2781 = vadd.f32 %v2677, %v2780
  %v2782 = vpop.f32.mrb[0].mxu0
  %2783 = vmatprep.mubr.bf16.mxu0 0
  %2784 = vmatmul.mubr.bf16.gmra.mrb[0].mxu0 %v2655
  %v2785 = vpop.f32.mrb[0].mxu0
  %v2786 = vadd.f32 %v2677, %v2785
  %v2787 = vpop.f32.mrb[0].mxu0
  %v2788 = vpop.f32.mrb[0].mxu0
  %v2789 = vadd.f32 %v2677, %v2788
  %v2790 = vpop.f32.mrb[0].mxu0
  %2791 = vdwg.mxu0
  %2792 = vst [vmem:[%s6] sm:$0xff] %v2762
  %2793 = vst [vmem:[%s6 + $0x8] sm:$0xff] %v2765
  %2794 = vst [vmem:[%s6 + $0x10] sm:$0xff] %v2770
  %2795 = vst [vmem:[%s6 + $0x18] sm:$0xff] %v2773
  %2796 = vst [vmem:[%s6 + $0x20] sm:$0xff] %v2778
  %2797 = vst [vmem:[%s6 + $0x28] sm:$0xff] %v2781
  %2798 = vst [vmem:[%s6 + $0x30] sm:$0xff] %v2786
  %2799 = vst [vmem:[%s6 + $0x38] sm:$0xff] %v2789
  // Predicated region
  $region26: #{model_forward.1} parent=0 // pred_check
    _
  $region27: #{model_forward.1} parent=0 // pred_check_branch
    %2801 = sbr.rel (0) target = $region29
  $region28: #{model_forward.1} parent=0 // pred_region
    _
  $region29: #{model_forward.1} parent=0 // pred_fallthru
    _
  // Predicated region
  $region30: #{model_forward.1} parent=0 // pred_check
    _
  $region31: #{model_forward.1} parent=0 // pred_check_branch
    %2803 = sbr.rel (0) target = $region33
  $region32: #{model_forward.1} parent=0 // pred_region
    _
  $region33: #{model_forward.1} parent=0 // pred_fallthru
    _

</llo_original>
